<compile_context>
chip_gen: v7x
topology: tpu7x:2x2x1
jax: 0.10.0
libtpu: 0.0.40
codegen_flags: <defaults>
</compile_context>

<pallas_src>
import jax
import jax.numpy as jnp
import numpy as np
from jax.experimental import pallas as pl
from jax.experimental.pallas import tpu as pltpu  # noqa: F401  (TPU backend)

B, S = 2, 16
BS = B * S
D = 128          # hidden size (scaled-down stand-in for 768)
NH = 4
DH = D // NH
DFF = 256
NLAYERS = 2
VOCAB = 100
NTYPES = 2
NCLS = 2
NCLS_PAD = 128   # lane-padded classifier width
LN_EPS = 1e-12
NEG = -1e9

# wA layout (per layer, bf16, columns): [ wqkv 0:384 | wo 384:512 | w1 512:768 ]
WA_COLS = 3 * D + D + DFF
# wB layout (bf16, 128 cols, rows): [ w2 L0 0:256 | w2 L1 256:512 | wc 512:640 | emb 640:896 ]
WB_WC = NLAYERS * DFF            # 512
WB_EMB = WB_WC + D               # 640
WB_ROWS = WB_EMB + 2 * D         # 896


# ----------------------------------------------------------------------------
# Fused kernel: embedding gather + NLAYERS transformer blocks + pool + classifier
# ----------------------------------------------------------------------------
def fused_xlnet_kernel(ids_ref, abias_ref, wA_ref, wB_ref, bias_ref, out_ref):
    # ---- embedding lookup as a one-hot MXU matmul (word + segment in one dot) ----
    ids = ids_ref[...]                                     # (BS, 2) int32
    word_ids = ids[:, 0:1]                                 # (BS, 1)
    seg_ids = ids[:, 1:2]
    col = jax.lax.broadcasted_iota(jnp.int32, (BS, 2 * D), 1)
    hot = ((col < D) & (col == word_ids)) | ((col >= D) & ((col - D) == seg_ids))
    onehot = jnp.where(hot, 1.0, 0.0).astype(jnp.bfloat16)             # (BS, 2D)
    emb_tab = wB_ref[WB_EMB:WB_EMB + 2 * D, :]                          # (2D, D) bf16
    h = jnp.dot(onehot, emb_tab, preferred_element_type=jnp.float32)    # (BS, D) f32

    attn_bias = abias_ref[...]                             # (BS, BS) f32 additive mask

    for li in range(NLAYERS):                              # static unroll
        wa = wA_ref[li]                                    # (D, 768) bf16
        bl = bias_ref[li]                                  # (8, 256) f32
        rwb = bl[0:1, 0:D]                                 # r_w_bias (scale pre-folded)
        ln1g, ln1b = bl[1:2, 0:D], bl[2:3, 0:D]
        b1 = bl[3:4, 0:DFF]
        b2 = bl[4:5, 0:D]
        ln2g, ln2b = bl[5:6, 0:D], bl[6:7, 0:D]

        # fused QKV projection: one MXU push, N = 3D = 384
        qkv = jnp.dot(h.astype(jnp.bfloat16), wa[:, 0:3 * D],
                      preferred_element_type=jnp.float32)  # (BS, 3D)
        q = qkv[:, 0:D] + rwb
        k = qkv[:, D:2 * D]
        v = qkv[:, 2 * D:3 * D]

        # per-head attention on flat (BS, BS) scores; padding + cross-batch handled
        # by the precomputed additive bias.  All dot inputs bf16, f32 accumulation.
        ctx_heads = []
        for hh in range(NH):                               # 4 heads, static unroll
            qs = q[:, hh * DH:(hh + 1) * DH].astype(jnp.bfloat16)
            ks = k[:, hh * DH:(hh + 1) * DH].astype(jnp.bfloat16)
            vs = v[:, hh * DH:(hh + 1) * DH].astype(jnp.bfloat16)
            sc = jax.lax.dot_general(qs, ks, (((1,), (1,)), ((), ())),
                                     preferred_element_type=jnp.float32)  # (BS, BS)
            sc = sc + attn_bias
            m = jnp.max(sc, axis=-1, keepdims=True)
            p = jnp.exp(sc - m)
            p = p * pl.reciprocal(jnp.sum(p, axis=-1, keepdims=True), approx=True)
            ctx_heads.append(jnp.dot(p.astype(jnp.bfloat16), vs,
                                     preferred_element_type=jnp.float32))  # (BS, DH)
        ctx = jnp.concatenate(ctx_heads, axis=-1)          # (BS, D)

        attn_out = jnp.dot(ctx.astype(jnp.bfloat16), wa[:, 3 * D:4 * D],
                           preferred_element_type=jnp.float32)

        # residual + LayerNorm 1 (post-LN)
        x = h + attn_out
        mu = jnp.mean(x, axis=-1, keepdims=True)
        var = jnp.mean((x - mu) ** 2, axis=-1, keepdims=True)
        x = (x - mu) * jax.lax.rsqrt(var + LN_EPS) * ln1g + ln1b

        # FFN (GELU, tanh approx — see TODO)
        ff = jnp.dot(x.astype(jnp.bfloat16), wa[:, 4 * D:4 * D + DFF],
                     preferred_element_type=jnp.float32) + b1            # (BS, DFF)
        ff = jax.nn.gelu(ff)
        w2 = wB_ref[li * DFF:(li + 1) * DFF, :]                          # (DFF, D)
        ff = jnp.dot(ff.astype(jnp.bfloat16), w2,
                     preferred_element_type=jnp.float32) + b2            # (BS, D)

        # residual + LayerNorm 2
        y = x + ff
        mu = jnp.mean(y, axis=-1, keepdims=True)
        var = jnp.mean((y - mu) ** 2, axis=-1, keepdims=True)
        h = (y - mu) * jax.lax.rsqrt(var + LN_EPS) * ln2g + ln2b

    # epilogue: mean pool over sequence (dropout = identity) + lane-padded classifier
    pooled = jnp.mean(h.reshape(B, S, D), axis=1)                        # (B, D)
    wc = wB_ref[WB_WC:WB_WC + D, :]                                      # (D, 128) bf16
    bc = bias_ref[0][7:8, 0:NCLS_PAD]                                    # (1, 128) f32
    logits = jnp.dot(pooled.astype(jnp.bfloat16), wc,
                     preferred_element_type=jnp.float32) + bc            # (B, 128)
    out_ref[...] = logits.astype(out_ref.dtype)


def fused_forward(ids, attn_bias, params):
    return pl.pallas_call(
        fused_xlnet_kernel,
        out_shape=jax.ShapeDtypeStruct((B, NCLS_PAD), jnp.float32),
    )(ids, attn_bias, params["wA"], params["wB"], params["biases"])


# ----------------------------------------------------------------------------
# Parameter construction (deterministic, in-script)
# ----------------------------------------------------------------------------
def init_params(key):
    ks = jax.random.split(key, 10)

    def nrm(k, shape, std=0.02):
        return jax.random.normal(k, shape, jnp.float32) * std

    scale = 1.0 / float(np.sqrt(DH))
    wq = nrm(ks[0], (NLAYERS, D, D)) * scale           # 1/sqrt(DH) folded into Wq
    wk = nrm(ks[1], (NLAYERS, D, D))
    wv = nrm(ks[2], (NLAYERS, D, D))
    wo = nrm(ks[3], (NLAYERS, D, D))
    w1 = nrm(ks[4], (NLAYERS, D, DFF))
    w2 = nrm(ks[5], (NLAYERS, DFF, D))
    wc = nrm(ks[6], (D, NCLS))
    word_emb = nrm(ks[7], (VOCAB, D))
    seg_emb = nrm(ks[8], (NTYPES, D))
    rwb = nrm(ks[9], (NLAYERS, D)) * scale             # r_w_bias (scale folded in)

    # blob A: per-layer [wqkv | wo | w1], bf16
    wqkv = jnp.concatenate([wq, wk, wv], axis=-1)                        # (L, D, 3D)
    wA = jnp.concatenate([wqkv, wo, w1], axis=-1).astype(jnp.bfloat16)   # (L, D, 768)

    # blob B: 128-col row stack [w2 per layer | wc lane-padded | embedding table], bf16
    wc_pad = jnp.zeros((D, NCLS_PAD), jnp.float32).at[:, :NCLS].set(wc)
    emb_tab = jnp.zeros((2 * D, D), jnp.float32)
    emb_tab = emb_tab.at[:VOCAB].set(word_emb)
    emb_tab = emb_tab.at[D:D + NTYPES].set(seg_emb)
    wB = jnp.concatenate([w2.reshape(NLAYERS * DFF, D), wc_pad, emb_tab],
                         axis=0).astype(jnp.bfloat16)                    # (896, 128)

    # bias/LN blob (f32): per-layer rows [rwb, ln1g, ln1b, b1, b2, ln2g, ln2b, bc(l0)]
    biases = jnp.zeros((NLAYERS, 8, 256), jnp.float32)
    biases = biases.at[:, 0, :D].set(rwb)
    biases = biases.at[:, 1, :D].set(1.0)      # LN1 gamma
    biases = biases.at[:, 5, :D].set(1.0)      # LN2 gamma
    # rows 2 (ln1b), 3 (b1), 4 (b2), 6 (ln2b) and classifier bias (row 7, layer 0) are zero

    return {"wA": wA, "wB": wB, "biases": biases}


# ----------------------------------------------------------------------------
# Full model forward (mirrors XLNet_model.forward)
# ----------------------------------------------------------------------------
@jax.jit
def xlnet_model_forward(params, enc_inputs, attention_mask, token_type_ids):
    # tiny glue only: pack ids and build the additive attention bias
    ids = jnp.stack([enc_inputs.reshape(-1), token_type_ids.reshape(-1)],
                    axis=-1).astype(jnp.int32)                           # (BS, 2)
    key_mask = attention_mask.reshape(-1).astype(jnp.float32)            # (BS,)
    bidx = jnp.arange(BS, dtype=jnp.int32) // S
    attend = (bidx[:, None] == bidx[None, :]) & (key_mask[None, :] > 0.5)
    attn_bias = jnp.where(attend, 0.0, NEG).astype(jnp.float32)          # (BS, BS)

    logits_pad = fused_forward(ids, attn_bias, params)                   # (B, 128)
    return logits_pad[:, :NCLS]


if __name__ == "__main__":
    key = jax.random.PRNGKey(0)
    pkey, k_ids, k_seg = jax.random.split(key, 3)

    params = init_params(pkey)

    enc_inputs = jax.random.randint(k_ids, (B, S), 0, VOCAB, dtype=jnp.int32)
    attention_mask = jnp.ones((B, S), dtype=jnp.int32)
    attention_mask = attention_mask.at[1, -4:].set(0)   # pad tail of second example
    token_type_ids = jax.random.randint(k_seg, (B, S), 0, NTYPES, dtype=jnp.int32)

    logits = xlnet_model_forward(params, enc_inputs, attention_mask, token_type_ids)
    logits = jax.block_until_ready(logits)

    assert logits.shape == (B, NCLS), logits.shape
    assert bool(jnp.all(jnp.isfinite(logits)))
    print("KERNEL_OK")
</pallas_src>

<mosaic_0001>
module attributes {stable_mosaic.version = 11 : i64} {
  func.func @fused_xlnet_kernel(%arg0: memref<32x2xi32, #tpu.memory_space<vmem>>, %arg1: memref<32x32xf32, #tpu.memory_space<vmem>>, %arg2: memref<2x128x768xbf16, #tpu.memory_space<vmem>>, %arg3: memref<896x128xbf16, #tpu.memory_space<vmem>>, %arg4: memref<2x8x256xf32, #tpu.memory_space<vmem>>, %arg5: memref<2x128xf32, #tpu.memory_space<vmem>>) attributes {dimension_semantics = [], scalar_prefetch = 0 : i64, scratch_operands = 0 : i64, tpu.core_type = #tpu.core_type<tc>} {
    %c0 = arith.constant 0 : index
    %c0_0 = arith.constant 0 : index
    %0 = vector.load %arg0[%c0, %c0_0] : memref<32x2xi32, #tpu.memory_space<vmem>>, vector<32x2xi32>
    %1 = vector.extract_strided_slice %0 {offsets = [0, 0], sizes = [32, 1], strides = [1, 1]} : vector<32x2xi32> to vector<32x1xi32>
    %2 = vector.extract_strided_slice %0 {offsets = [0, 1], sizes = [32, 1], strides = [1, 1]} : vector<32x2xi32> to vector<32x1xi32>
    %3 = tpu.iota {dimensions = array<i32: 1>} : vector<32x256xi32>
    %c128_i32 = arith.constant 128 : i32
    %4 = vector.broadcast %c128_i32 : i32 to vector<32x256xi32>
    %5 = arith.cmpi slt, %3, %4 : vector<32x256xi32>
    %6 = vector.broadcast %1 : vector<32x1xi32> to vector<32x256xi32>
    %7 = arith.cmpi eq, %3, %6 : vector<32x256xi32>
    %8 = arith.andi %5, %7 : vector<32x256xi1>
    %c128_i32_1 = arith.constant 128 : i32
    %9 = vector.broadcast %c128_i32_1 : i32 to vector<32x256xi32>
    %10 = arith.cmpi sge, %3, %9 : vector<32x256xi32>
    %c128_i32_2 = arith.constant 128 : i32
    %11 = vector.broadcast %c128_i32_2 : i32 to vector<32x256xi32>
    %12 = arith.subi %3, %11 : vector<32x256xi32>
    %13 = vector.broadcast %2 : vector<32x1xi32> to vector<32x256xi32>
    %14 = arith.cmpi eq, %12, %13 : vector<32x256xi32>
    %15 = arith.andi %10, %14 : vector<32x256xi1>
    %16 = arith.ori %8, %15 : vector<32x256xi1>
    %cst = arith.constant 1.000000e+00 : f32
    %cst_3 = arith.constant 0.000000e+00 : f32
    %17 = vector.broadcast %cst : f32 to vector<32x256xf32>
    %18 = vector.broadcast %cst_3 : f32 to vector<32x256xf32>
    %19 = arith.select %16, %17, %18 : vector<32x256xi1>, vector<32x256xf32>
    %20 = arith.truncf %19 : vector<32x256xf32> to vector<32x256xbf16>
    %c640 = arith.constant 640 : index
    %c0_4 = arith.constant 0 : index
    %21 = vector.load %arg3[%c640, %c0_4] : memref<896x128xbf16, #tpu.memory_space<vmem>>, vector<256x128xbf16>
    %cst_5 = arith.constant dense<0.000000e+00> : vector<32x128xf32>
    %22 = tpu.matmul %20, %21, %cst_5 {dimension_numbers = #tpu.dot_dimension_numbers<[1], [0], [0], [1], [0, 0, 1, 1], [], []>} : vector<32x256xbf16>, vector<256x128xbf16>, vector<32x128xf32> -> vector<32x128xf32>
    %c0_6 = arith.constant 0 : index
    %c0_7 = arith.constant 0 : index
    %23 = vector.load %arg1[%c0_6, %c0_7] : memref<32x32xf32, #tpu.memory_space<vmem>>, vector<32x32xf32>
    %c0_8 = arith.constant 0 : index
    %c0_9 = arith.constant 0 : index
    %c0_10 = arith.constant 0 : index
    %24 = vector.load %arg2[%c0_8, %c0_9, %c0_10] : memref<2x128x768xbf16, #tpu.memory_space<vmem>>, vector<1x128x768xbf16>
    %25 = vector.shape_cast %24 : vector<1x128x768xbf16> to vector<128x768xbf16>
    %c0_11 = arith.constant 0 : index
    %c0_12 = arith.constant 0 : index
    %c0_13 = arith.constant 0 : index
    %26 = vector.load %arg4[%c0_11, %c0_12, %c0_13] : memref<2x8x256xf32, #tpu.memory_space<vmem>>, vector<1x8x256xf32>
    %27 = vector.shape_cast %26 : vector<1x8x256xf32> to vector<8x256xf32>
    %28 = vector.extract_strided_slice %27 {offsets = [0, 0], sizes = [1, 128], strides = [1, 1]} : vector<8x256xf32> to vector<1x128xf32>
    %29 = vector.extract_strided_slice %27 {offsets = [1, 0], sizes = [1, 128], strides = [1, 1]} : vector<8x256xf32> to vector<1x128xf32>
    %30 = vector.extract_strided_slice %27 {offsets = [2, 0], sizes = [1, 128], strides = [1, 1]} : vector<8x256xf32> to vector<1x128xf32>
    %31 = vector.extract_strided_slice %27 {offsets = [3, 0], sizes = [1, 256], strides = [1, 1]} : vector<8x256xf32> to vector<1x256xf32>
    %32 = vector.extract_strided_slice %27 {offsets = [4, 0], sizes = [1, 128], strides = [1, 1]} : vector<8x256xf32> to vector<1x128xf32>
    %33 = vector.extract_strided_slice %27 {offsets = [5, 0], sizes = [1, 128], strides = [1, 1]} : vector<8x256xf32> to vector<1x128xf32>
    %34 = vector.extract_strided_slice %27 {offsets = [6, 0], sizes = [1, 128], strides = [1, 1]} : vector<8x256xf32> to vector<1x128xf32>
    %35 = arith.truncf %22 : vector<32x128xf32> to vector<32x128xbf16>
    %36 = vector.extract_strided_slice %25 {offsets = [0, 0], sizes = [128, 384], strides = [1, 1]} : vector<128x768xbf16> to vector<128x384xbf16>
    %cst_14 = arith.constant dense<0.000000e+00> : vector<32x384xf32>
    %37 = tpu.matmul %35, %36, %cst_14 {dimension_numbers = #tpu.dot_dimension_numbers<[1], [0], [0], [1], [0, 0, 1, 1], [], []>} : vector<32x128xbf16>, vector<128x384xbf16>, vector<32x384xf32> -> vector<32x384xf32>
    %38 = vector.extract_strided_slice %37 {offsets = [0, 0], sizes = [32, 128], strides = [1, 1]} : vector<32x384xf32> to vector<32x128xf32>
    %39 = vector.broadcast %28 : vector<1x128xf32> to vector<32x128xf32>
    %40 = arith.addf %38, %39 : vector<32x128xf32>
    %41 = vector.extract_strided_slice %37 {offsets = [0, 128], sizes = [32, 128], strides = [1, 1]} : vector<32x384xf32> to vector<32x128xf32>
    %42 = vector.extract_strided_slice %37 {offsets = [0, 256], sizes = [32, 128], strides = [1, 1]} : vector<32x384xf32> to vector<32x128xf32>
    %43 = vector.extract_strided_slice %40 {offsets = [0, 0], sizes = [32, 32], strides = [1, 1]} : vector<32x128xf32> to vector<32x32xf32>
    %44 = arith.truncf %43 : vector<32x32xf32> to vector<32x32xbf16>
    %45 = vector.extract_strided_slice %41 {offsets = [0, 0], sizes = [32, 32], strides = [1, 1]} : vector<32x128xf32> to vector<32x32xf32>
    %46 = arith.truncf %45 : vector<32x32xf32> to vector<32x32xbf16>
    %47 = vector.extract_strided_slice %42 {offsets = [0, 0], sizes = [32, 32], strides = [1, 1]} : vector<32x128xf32> to vector<32x32xf32>
    %48 = arith.truncf %47 : vector<32x32xf32> to vector<32x32xbf16>
    %cst_15 = arith.constant dense<0.000000e+00> : vector<32x32xf32>
    %49 = tpu.matmul %44, %46, %cst_15 {dimension_numbers = #tpu.dot_dimension_numbers<[1], [1], [0], [0], [0, 0, 1, 0], [], []>} : vector<32x32xbf16>, vector<32x32xbf16>, vector<32x32xf32> -> vector<32x32xf32>
    %50 = arith.addf %49, %23 : vector<32x32xf32>
    %cst_16 = arith.constant dense<0xFF800000> : vector<32xf32>
    %51 = vector.multi_reduction <maximumf>, %50, %cst_16 [1] : vector<32x32xf32> to vector<32xf32>
    %52 = vector.shape_cast %51 : vector<32xf32> to vector<32x1xf32>
    %53 = vector.broadcast %52 : vector<32x1xf32> to vector<32x32xf32>
    %54 = arith.subf %50, %53 : vector<32x32xf32>
    %55 = math.exp %54 : vector<32x32xf32>
    %cst_17 = arith.constant dense<0.000000e+00> : vector<32xf32>
    %56 = vector.multi_reduction <add>, %55, %cst_17 [1] : vector<32x32xf32> to vector<32xf32>
    %57 = vector.shape_cast %56 : vector<32xf32> to vector<32x1xf32>
    %58 = tpu.reciprocal %57 {approx = true} : vector<32x1xf32> -> vector<32x1xf32>
    %59 = vector.broadcast %58 : vector<32x1xf32> to vector<32x32xf32>
    %60 = arith.mulf %55, %59 : vector<32x32xf32>
    %61 = arith.truncf %60 : vector<32x32xf32> to vector<32x32xbf16>
    %cst_18 = arith.constant dense<0.000000e+00> : vector<32x32xf32>
    %62 = tpu.matmul %61, %48, %cst_18 {dimension_numbers = #tpu.dot_dimension_numbers<[1], [0], [0], [1], [0, 0, 1, 1], [], []>} : vector<32x32xbf16>, vector<32x32xbf16>, vector<32x32xf32> -> vector<32x32xf32>
    %63 = vector.extract_strided_slice %40 {offsets = [0, 32], sizes = [32, 32], strides = [1, 1]} : vector<32x128xf32> to vector<32x32xf32>
    %64 = arith.truncf %63 : vector<32x32xf32> to vector<32x32xbf16>
    %65 = vector.extract_strided_slice %41 {offsets = [0, 32], sizes = [32, 32], strides = [1, 1]} : vector<32x128xf32> to vector<32x32xf32>
    %66 = arith.truncf %65 : vector<32x32xf32> to vector<32x32xbf16>
    %67 = vector.extract_strided_slice %42 {offsets = [0, 32], sizes = [32, 32], strides = [1, 1]} : vector<32x128xf32> to vector<32x32xf32>
    %68 = arith.truncf %67 : vector<32x32xf32> to vector<32x32xbf16>
    %cst_19 = arith.constant dense<0.000000e+00> : vector<32x32xf32>
    %69 = tpu.matmul %64, %66, %cst_19 {dimension_numbers = #tpu.dot_dimension_numbers<[1], [1], [0], [0], [0, 0, 1, 0], [], []>} : vector<32x32xbf16>, vector<32x32xbf16>, vector<32x32xf32> -> vector<32x32xf32>
    %70 = arith.addf %69, %23 : vector<32x32xf32>
    %cst_20 = arith.constant dense<0xFF800000> : vector<32xf32>
    %71 = vector.multi_reduction <maximumf>, %70, %cst_20 [1] : vector<32x32xf32> to vector<32xf32>
    %72 = vector.shape_cast %71 : vector<32xf32> to vector<32x1xf32>
    %73 = vector.broadcast %72 : vector<32x1xf32> to vector<32x32xf32>
    %74 = arith.subf %70, %73 : vector<32x32xf32>
    %75 = math.exp %74 : vector<32x32xf32>
    %cst_21 = arith.constant dense<0.000000e+00> : vector<32xf32>
    %76 = vector.multi_reduction <add>, %75, %cst_21 [1] : vector<32x32xf32> to vector<32xf32>
    %77 = vector.shape_cast %76 : vector<32xf32> to vector<32x1xf32>
    %78 = tpu.reciprocal %77 {approx = true} : vector<32x1xf32> -> vector<32x1xf32>
    %79 = vector.broadcast %78 : vector<32x1xf32> to vector<32x32xf32>
    %80 = arith.mulf %75, %79 : vector<32x32xf32>
    %81 = arith.truncf %80 : vector<32x32xf32> to vector<32x32xbf16>
    %cst_22 = arith.constant dense<0.000000e+00> : vector<32x32xf32>
    %82 = tpu.matmul %81, %68, %cst_22 {dimension_numbers = #tpu.dot_dimension_numbers<[1], [0], [0], [1], [0, 0, 1, 1], [], []>} : vector<32x32xbf16>, vector<32x32xbf16>, vector<32x32xf32> -> vector<32x32xf32>
    %83 = vector.extract_strided_slice %40 {offsets = [0, 64], sizes = [32, 32], strides = [1, 1]} : vector<32x128xf32> to vector<32x32xf32>
    %84 = arith.truncf %83 : vector<32x32xf32> to vector<32x32xbf16>
    %85 = vector.extract_strided_slice %41 {offsets = [0, 64], sizes = [32, 32], strides = [1, 1]} : vector<32x128xf32> to vector<32x32xf32>
    %86 = arith.truncf %85 : vector<32x32xf32> to vector<32x32xbf16>
    %87 = vector.extract_strided_slice %42 {offsets = [0, 64], sizes = [32, 32], strides = [1, 1]} : vector<32x128xf32> to vector<32x32xf32>
    %88 = arith.truncf %87 : vector<32x32xf32> to vector<32x32xbf16>
    %cst_23 = arith.constant dense<0.000000e+00> : vector<32x32xf32>
    %89 = tpu.matmul %84, %86, %cst_23 {dimension_numbers = #tpu.dot_dimension_numbers<[1], [1], [0], [0], [0, 0, 1, 0], [], []>} : vector<32x32xbf16>, vector<32x32xbf16>, vector<32x32xf32> -> vector<32x32xf32>
    %90 = arith.addf %89, %23 : vector<32x32xf32>
    %cst_24 = arith.constant dense<0xFF800000> : vector<32xf32>
    %91 = vector.multi_reduction <maximumf>, %90, %cst_24 [1] : vector<32x32xf32> to vector<32xf32>
    %92 = vector.shape_cast %91 : vector<32xf32> to vector<32x1xf32>
    %93 = vector.broadcast %92 : vector<32x1xf32> to vector<32x32xf32>
    %94 = arith.subf %90, %93 : vector<32x32xf32>
    %95 = math.exp %94 : vector<32x32xf32>
    %cst_25 = arith.constant dense<0.000000e+00> : vector<32xf32>
    %96 = vector.multi_reduction <add>, %95, %cst_25 [1] : vector<32x32xf32> to vector<32xf32>
    %97 = vector.shape_cast %96 : vector<32xf32> to vector<32x1xf32>
    %98 = tpu.reciprocal %97 {approx = true} : vector<32x1xf32> -> vector<32x1xf32>
    %99 = vector.broadcast %98 : vector<32x1xf32> to vector<32x32xf32>
    %100 = arith.mulf %95, %99 : vector<32x32xf32>
    %101 = arith.truncf %100 : vector<32x32xf32> to vector<32x32xbf16>
    %cst_26 = arith.constant dense<0.000000e+00> : vector<32x32xf32>
    %102 = tpu.matmul %101, %88, %cst_26 {dimension_numbers = #tpu.dot_dimension_numbers<[1], [0], [0], [1], [0, 0, 1, 1], [], []>} : vector<32x32xbf16>, vector<32x32xbf16>, vector<32x32xf32> -> vector<32x32xf32>
    %103 = vector.extract_strided_slice %40 {offsets = [0, 96], sizes = [32, 32], strides = [1, 1]} : vector<32x128xf32> to vector<32x32xf32>
    %104 = arith.truncf %103 : vector<32x32xf32> to vector<32x32xbf16>
    %105 = vector.extract_strided_slice %41 {offsets = [0, 96], sizes = [32, 32], strides = [1, 1]} : vector<32x128xf32> to vector<32x32xf32>
    %106 = arith.truncf %105 : vector<32x32xf32> to vector<32x32xbf16>
    %107 = vector.extract_strided_slice %42 {offsets = [0, 96], sizes = [32, 32], strides = [1, 1]} : vector<32x128xf32> to vector<32x32xf32>
    %108 = arith.truncf %107 : vector<32x32xf32> to vector<32x32xbf16>
    %cst_27 = arith.constant dense<0.000000e+00> : vector<32x32xf32>
    %109 = tpu.matmul %104, %106, %cst_27 {dimension_numbers = #tpu.dot_dimension_numbers<[1], [1], [0], [0], [0, 0, 1, 0], [], []>} : vector<32x32xbf16>, vector<32x32xbf16>, vector<32x32xf32> -> vector<32x32xf32>
    %110 = arith.addf %109, %23 : vector<32x32xf32>
    %cst_28 = arith.constant dense<0xFF800000> : vector<32xf32>
    %111 = vector.multi_reduction <maximumf>, %110, %cst_28 [1] : vector<32x32xf32> to vector<32xf32>
    %112 = vector.shape_cast %111 : vector<32xf32> to vector<32x1xf32>
    %113 = vector.broadcast %112 : vector<32x1xf32> to vector<32x32xf32>
    %114 = arith.subf %110, %113 : vector<32x32xf32>
    %115 = math.exp %114 : vector<32x32xf32>
    %cst_29 = arith.constant dense<0.000000e+00> : vector<32xf32>
    %116 = vector.multi_reduction <add>, %115, %cst_29 [1] : vector<32x32xf32> to vector<32xf32>
    %117 = vector.shape_cast %116 : vector<32xf32> to vector<32x1xf32>
    %118 = tpu.reciprocal %117 {approx = true} : vector<32x1xf32> -> vector<32x1xf32>
    %119 = vector.broadcast %118 : vector<32x1xf32> to vector<32x32xf32>
    %120 = arith.mulf %115, %119 : vector<32x32xf32>
    %121 = arith.truncf %120 : vector<32x32xf32> to vector<32x32xbf16>
    %cst_30 = arith.constant dense<0.000000e+00> : vector<32x32xf32>
    %122 = tpu.matmul %121, %108, %cst_30 {dimension_numbers = #tpu.dot_dimension_numbers<[1], [0], [0], [1], [0, 0, 1, 1], [], []>} : vector<32x32xbf16>, vector<32x32xbf16>, vector<32x32xf32> -> vector<32x32xf32>
    %123 = tpu.concatenate %62, %82, %102, %122 in 1 : vector<32x32xf32>, vector<32x32xf32>, vector<32x32xf32>, vector<32x32xf32> -> vector<32x128xf32>
    %124 = arith.truncf %123 : vector<32x128xf32> to vector<32x128xbf16>
    %125 = vector.extract_strided_slice %25 {offsets = [0, 384], sizes = [128, 128], strides = [1, 1]} : vector<128x768xbf16> to vector<128x128xbf16>
    %cst_31 = arith.constant dense<0.000000e+00> : vector<32x128xf32>
    %126 = tpu.matmul %124, %125, %cst_31 {dimension_numbers = #tpu.dot_dimension_numbers<[1], [0], [0], [1], [0, 0, 1, 1], [], []>} : vector<32x128xbf16>, vector<128x128xbf16>, vector<32x128xf32> -> vector<32x128xf32>
    %127 = arith.addf %22, %126 : vector<32x128xf32>
    %cst_32 = arith.constant dense<0.000000e+00> : vector<32xf32>
    %128 = vector.multi_reduction <add>, %127, %cst_32 [1] : vector<32x128xf32> to vector<32xf32>
    %129 = vector.shape_cast %128 : vector<32xf32> to vector<32x1xf32>
    %cst_33 = arith.constant 1.280000e+02 : f32
    %130 = vector.broadcast %cst_33 : f32 to vector<32x1xf32>
    %131 = arith.divf %129, %130 : vector<32x1xf32>
    %132 = vector.broadcast %131 : vector<32x1xf32> to vector<32x128xf32>
    %133 = arith.subf %127, %132 : vector<32x128xf32>
    %134 = arith.mulf %133, %133 : vector<32x128xf32>
    %cst_34 = arith.constant dense<0.000000e+00> : vector<32xf32>
    %135 = vector.multi_reduction <add>, %134, %cst_34 [1] : vector<32x128xf32> to vector<32xf32>
    %136 = vector.shape_cast %135 : vector<32xf32> to vector<32x1xf32>
    %cst_35 = arith.constant 1.280000e+02 : f32
    %137 = vector.broadcast %cst_35 : f32 to vector<32x1xf32>
    %138 = arith.divf %136, %137 : vector<32x1xf32>
    %139 = vector.broadcast %131 : vector<32x1xf32> to vector<32x128xf32>
    %140 = arith.subf %127, %139 : vector<32x128xf32>
    %cst_36 = arith.constant 9.99999996E-13 : f32
    %141 = vector.broadcast %cst_36 : f32 to vector<32x1xf32>
    %142 = arith.addf %138, %141 : vector<32x1xf32>
    %143 = math.rsqrt %142 : vector<32x1xf32>
    %144 = vector.broadcast %143 : vector<32x1xf32> to vector<32x128xf32>
    %145 = arith.mulf %140, %144 : vector<32x128xf32>
    %146 = vector.broadcast %29 : vector<1x128xf32> to vector<32x128xf32>
    %147 = arith.mulf %145, %146 : vector<32x128xf32>
    %148 = vector.broadcast %30 : vector<1x128xf32> to vector<32x128xf32>
    %149 = arith.addf %147, %148 : vector<32x128xf32>
    %150 = arith.truncf %149 : vector<32x128xf32> to vector<32x128xbf16>
    %151 = vector.extract_strided_slice %25 {offsets = [0, 512], sizes = [128, 256], strides = [1, 1]} : vector<128x768xbf16> to vector<128x256xbf16>
    %cst_37 = arith.constant dense<0.000000e+00> : vector<32x256xf32>
    %152 = tpu.matmul %150, %151, %cst_37 {dimension_numbers = #tpu.dot_dimension_numbers<[1], [0], [0], [1], [0, 0, 1, 1], [], []>} : vector<32x128xbf16>, vector<128x256xbf16>, vector<32x256xf32> -> vector<32x256xf32>
    %153 = vector.broadcast %31 : vector<1x256xf32> to vector<32x256xf32>
    %154 = arith.addf %152, %153 : vector<32x256xf32>
    %155 = arith.mulf %154, %154 : vector<32x256xf32>
    %156 = arith.mulf %154, %155 : vector<32x256xf32>
    %cst_38 = arith.constant 4.471500e-02 : f32
    %157 = vector.broadcast %cst_38 : f32 to vector<32x256xf32>
    %158 = arith.mulf %157, %156 : vector<32x256xf32>
    %159 = arith.addf %154, %158 : vector<32x256xf32>
    %cst_39 = arith.constant 0.797884583 : f32
    %160 = vector.broadcast %cst_39 : f32 to vector<32x256xf32>
    %161 = arith.mulf %160, %159 : vector<32x256xf32>
    %162 = math.tanh %161 : vector<32x256xf32>
    %cst_40 = arith.constant 1.000000e+00 : f32
    %163 = vector.broadcast %cst_40 : f32 to vector<32x256xf32>
    %164 = arith.addf %163, %162 : vector<32x256xf32>
    %cst_41 = arith.constant 5.000000e-01 : f32
    %165 = vector.broadcast %cst_41 : f32 to vector<32x256xf32>
    %166 = arith.mulf %165, %164 : vector<32x256xf32>
    %167 = arith.mulf %154, %166 : vector<32x256xf32>
    %c0_42 = arith.constant 0 : index
    %c0_43 = arith.constant 0 : index
    %168 = vector.load %arg3[%c0_42, %c0_43] : memref<896x128xbf16, #tpu.memory_space<vmem>>, vector<256x128xbf16>
    %169 = arith.truncf %167 : vector<32x256xf32> to vector<32x256xbf16>
    %cst_44 = arith.constant dense<0.000000e+00> : vector<32x128xf32>
    %170 = tpu.matmul %169, %168, %cst_44 {dimension_numbers = #tpu.dot_dimension_numbers<[1], [0], [0], [1], [0, 0, 1, 1], [], []>} : vector<32x256xbf16>, vector<256x128xbf16>, vector<32x128xf32> -> vector<32x128xf32>
    %171 = vector.broadcast %32 : vector<1x128xf32> to vector<32x128xf32>
    %172 = arith.addf %170, %171 : vector<32x128xf32>
    %173 = arith.addf %149, %172 : vector<32x128xf32>
    %cst_45 = arith.constant dense<0.000000e+00> : vector<32xf32>
    %174 = vector.multi_reduction <add>, %173, %cst_45 [1] : vector<32x128xf32> to vector<32xf32>
    %175 = vector.shape_cast %174 : vector<32xf32> to vector<32x1xf32>
    %cst_46 = arith.constant 1.280000e+02 : f32
    %176 = vector.broadcast %cst_46 : f32 to vector<32x1xf32>
    %177 = arith.divf %175, %176 : vector<32x1xf32>
    %178 = vector.broadcast %177 : vector<32x1xf32> to vector<32x128xf32>
    %179 = arith.subf %173, %178 : vector<32x128xf32>
    %180 = arith.mulf %179, %179 : vector<32x128xf32>
    %cst_47 = arith.constant dense<0.000000e+00> : vector<32xf32>
    %181 = vector.multi_reduction <add>, %180, %cst_47 [1] : vector<32x128xf32> to vector<32xf32>
    %182 = vector.shape_cast %181 : vector<32xf32> to vector<32x1xf32>
    %cst_48 = arith.constant 1.280000e+02 : f32
    %183 = vector.broadcast %cst_48 : f32 to vector<32x1xf32>
    %184 = arith.divf %182, %183 : vector<32x1xf32>
    %185 = vector.broadcast %177 : vector<32x1xf32> to vector<32x128xf32>
    %186 = arith.subf %173, %185 : vector<32x128xf32>
    %cst_49 = arith.constant 9.99999996E-13 : f32
    %187 = vector.broadcast %cst_49 : f32 to vector<32x1xf32>
    %188 = arith.addf %184, %187 : vector<32x1xf32>
    %189 = math.rsqrt %188 : vector<32x1xf32>
    %190 = vector.broadcast %189 : vector<32x1xf32> to vector<32x128xf32>
    %191 = arith.mulf %186, %190 : vector<32x128xf32>
    %192 = vector.broadcast %33 : vector<1x128xf32> to vector<32x128xf32>
    %193 = arith.mulf %191, %192 : vector<32x128xf32>
    %194 = vector.broadcast %34 : vector<1x128xf32> to vector<32x128xf32>
    %195 = arith.addf %193, %194 : vector<32x128xf32>
    %c1 = arith.constant 1 : index
    %c0_50 = arith.constant 0 : index
    %c0_51 = arith.constant 0 : index
    %196 = vector.load %arg2[%c1, %c0_50, %c0_51] : memref<2x128x768xbf16, #tpu.memory_space<vmem>>, vector<1x128x768xbf16>
    %197 = vector.shape_cast %196 : vector<1x128x768xbf16> to vector<128x768xbf16>
    %c1_52 = arith.constant 1 : index
    %c0_53 = arith.constant 0 : index
    %c0_54 = arith.constant 0 : index
    %198 = vector.load %arg4[%c1_52, %c0_53, %c0_54] : memref<2x8x256xf32, #tpu.memory_space<vmem>>, vector<1x8x256xf32>
    %199 = vector.shape_cast %198 : vector<1x8x256xf32> to vector<8x256xf32>
    %200 = vector.extract_strided_slice %199 {offsets = [0, 0], sizes = [1, 128], strides = [1, 1]} : vector<8x256xf32> to vector<1x128xf32>
    %201 = vector.extract_strided_slice %199 {offsets = [1, 0], sizes = [1, 128], strides = [1, 1]} : vector<8x256xf32> to vector<1x128xf32>
    %202 = vector.extract_strided_slice %199 {offsets = [2, 0], sizes = [1, 128], strides = [1, 1]} : vector<8x256xf32> to vector<1x128xf32>
    %203 = vector.extract_strided_slice %199 {offsets = [3, 0], sizes = [1, 256], strides = [1, 1]} : vector<8x256xf32> to vector<1x256xf32>
    %204 = vector.extract_strided_slice %199 {offsets = [4, 0], sizes = [1, 128], strides = [1, 1]} : vector<8x256xf32> to vector<1x128xf32>
    %205 = vector.extract_strided_slice %199 {offsets = [5, 0], sizes = [1, 128], strides = [1, 1]} : vector<8x256xf32> to vector<1x128xf32>
    %206 = vector.extract_strided_slice %199 {offsets = [6, 0], sizes = [1, 128], strides = [1, 1]} : vector<8x256xf32> to vector<1x128xf32>
    %207 = arith.truncf %195 : vector<32x128xf32> to vector<32x128xbf16>
    %208 = vector.extract_strided_slice %197 {offsets = [0, 0], sizes = [128, 384], strides = [1, 1]} : vector<128x768xbf16> to vector<128x384xbf16>
    %cst_55 = arith.constant dense<0.000000e+00> : vector<32x384xf32>
    %209 = tpu.matmul %207, %208, %cst_55 {dimension_numbers = #tpu.dot_dimension_numbers<[1], [0], [0], [1], [0, 0, 1, 1], [], []>} : vector<32x128xbf16>, vector<128x384xbf16>, vector<32x384xf32> -> vector<32x384xf32>
    %210 = vector.extract_strided_slice %209 {offsets = [0, 0], sizes = [32, 128], strides = [1, 1]} : vector<32x384xf32> to vector<32x128xf32>
    %211 = vector.broadcast %200 : vector<1x128xf32> to vector<32x128xf32>
    %212 = arith.addf %210, %211 : vector<32x128xf32>
    %213 = vector.extract_strided_slice %209 {offsets = [0, 128], sizes = [32, 128], strides = [1, 1]} : vector<32x384xf32> to vector<32x128xf32>
    %214 = vector.extract_strided_slice %209 {offsets = [0, 256], sizes = [32, 128], strides = [1, 1]} : vector<32x384xf32> to vector<32x128xf32>
    %215 = vector.extract_strided_slice %212 {offsets = [0, 0], sizes = [32, 32], strides = [1, 1]} : vector<32x128xf32> to vector<32x32xf32>
    %216 = arith.truncf %215 : vector<32x32xf32> to vector<32x32xbf16>
    %217 = vector.extract_strided_slice %213 {offsets = [0, 0], sizes = [32, 32], strides = [1, 1]} : vector<32x128xf32> to vector<32x32xf32>
    %218 = arith.truncf %217 : vector<32x32xf32> to vector<32x32xbf16>
    %219 = vector.extract_strided_slice %214 {offsets = [0, 0], sizes = [32, 32], strides = [1, 1]} : vector<32x128xf32> to vector<32x32xf32>
    %220 = arith.truncf %219 : vector<32x32xf32> to vector<32x32xbf16>
    %cst_56 = arith.constant dense<0.000000e+00> : vector<32x32xf32>
    %221 = tpu.matmul %216, %218, %cst_56 {dimension_numbers = #tpu.dot_dimension_numbers<[1], [1], [0], [0], [0, 0, 1, 0], [], []>} : vector<32x32xbf16>, vector<32x32xbf16>, vector<32x32xf32> -> vector<32x32xf32>
    %222 = arith.addf %221, %23 : vector<32x32xf32>
    %cst_57 = arith.constant dense<0xFF800000> : vector<32xf32>
    %223 = vector.multi_reduction <maximumf>, %222, %cst_57 [1] : vector<32x32xf32> to vector<32xf32>
    %224 = vector.shape_cast %223 : vector<32xf32> to vector<32x1xf32>
    %225 = vector.broadcast %224 : vector<32x1xf32> to vector<32x32xf32>
    %226 = arith.subf %222, %225 : vector<32x32xf32>
    %227 = math.exp %226 : vector<32x32xf32>
    %cst_58 = arith.constant dense<0.000000e+00> : vector<32xf32>
    %228 = vector.multi_reduction <add>, %227, %cst_58 [1] : vector<32x32xf32> to vector<32xf32>
    %229 = vector.shape_cast %228 : vector<32xf32> to vector<32x1xf32>
    %230 = tpu.reciprocal %229 {approx = true} : vector<32x1xf32> -> vector<32x1xf32>
    %231 = vector.broadcast %230 : vector<32x1xf32> to vector<32x32xf32>
    %232 = arith.mulf %227, %231 : vector<32x32xf32>
    %233 = arith.truncf %232 : vector<32x32xf32> to vector<32x32xbf16>
    %cst_59 = arith.constant dense<0.000000e+00> : vector<32x32xf32>
    %234 = tpu.matmul %233, %220, %cst_59 {dimension_numbers = #tpu.dot_dimension_numbers<[1], [0], [0], [1], [0, 0, 1, 1], [], []>} : vector<32x32xbf16>, vector<32x32xbf16>, vector<32x32xf32> -> vector<32x32xf32>
    %235 = vector.extract_strided_slice %212 {offsets = [0, 32], sizes = [32, 32], strides = [1, 1]} : vector<32x128xf32> to vector<32x32xf32>
    %236 = arith.truncf %235 : vector<32x32xf32> to vector<32x32xbf16>
    %237 = vector.extract_strided_slice %213 {offsets = [0, 32], sizes = [32, 32], strides = [1, 1]} : vector<32x128xf32> to vector<32x32xf32>
    %238 = arith.truncf %237 : vector<32x32xf32> to vector<32x32xbf16>
    %239 = vector.extract_strided_slice %214 {offsets = [0, 32], sizes = [32, 32], strides = [1, 1]} : vector<32x128xf32> to vector<32x32xf32>
    %240 = arith.truncf %239 : vector<32x32xf32> to vector<32x32xbf16>
    %cst_60 = arith.constant dense<0.000000e+00> : vector<32x32xf32>
    %241 = tpu.matmul %236, %238, %cst_60 {dimension_numbers = #tpu.dot_dimension_numbers<[1], [1], [0], [0], [0, 0, 1, 0], [], []>} : vector<32x32xbf16>, vector<32x32xbf16>, vector<32x32xf32> -> vector<32x32xf32>
    %242 = arith.addf %241, %23 : vector<32x32xf32>
    %cst_61 = arith.constant dense<0xFF800000> : vector<32xf32>
    %243 = vector.multi_reduction <maximumf>, %242, %cst_61 [1] : vector<32x32xf32> to vector<32xf32>
    %244 = vector.shape_cast %243 : vector<32xf32> to vector<32x1xf32>
    %245 = vector.broadcast %244 : vector<32x1xf32> to vector<32x32xf32>
    %246 = arith.subf %242, %245 : vector<32x32xf32>
    %247 = math.exp %246 : vector<32x32xf32>
    %cst_62 = arith.constant dense<0.000000e+00> : vector<32xf32>
    %248 = vector.multi_reduction <add>, %247, %cst_62 [1] : vector<32x32xf32> to vector<32xf32>
    %249 = vector.shape_cast %248 : vector<32xf32> to vector<32x1xf32>
    %250 = tpu.reciprocal %249 {approx = true} : vector<32x1xf32> -> vector<32x1xf32>
    %251 = vector.broadcast %250 : vector<32x1xf32> to vector<32x32xf32>
    %252 = arith.mulf %247, %251 : vector<32x32xf32>
    %253 = arith.truncf %252 : vector<32x32xf32> to vector<32x32xbf16>
    %cst_63 = arith.constant dense<0.000000e+00> : vector<32x32xf32>
    %254 = tpu.matmul %253, %240, %cst_63 {dimension_numbers = #tpu.dot_dimension_numbers<[1], [0], [0], [1], [0, 0, 1, 1], [], []>} : vector<32x32xbf16>, vector<32x32xbf16>, vector<32x32xf32> -> vector<32x32xf32>
    %255 = vector.extract_strided_slice %212 {offsets = [0, 64], sizes = [32, 32], strides = [1, 1]} : vector<32x128xf32> to vector<32x32xf32>
    %256 = arith.truncf %255 : vector<32x32xf32> to vector<32x32xbf16>
    %257 = vector.extract_strided_slice %213 {offsets = [0, 64], sizes = [32, 32], strides = [1, 1]} : vector<32x128xf32> to vector<32x32xf32>
    %258 = arith.truncf %257 : vector<32x32xf32> to vector<32x32xbf16>
    %259 = vector.extract_strided_slice %214 {offsets = [0, 64], sizes = [32, 32], strides = [1, 1]} : vector<32x128xf32> to vector<32x32xf32>
    %260 = arith.truncf %259 : vector<32x32xf32> to vector<32x32xbf16>
    %cst_64 = arith.constant dense<0.000000e+00> : vector<32x32xf32>
    %261 = tpu.matmul %256, %258, %cst_64 {dimension_numbers = #tpu.dot_dimension_numbers<[1], [1], [0], [0], [0, 0, 1, 0], [], []>} : vector<32x32xbf16>, vector<32x32xbf16>, vector<32x32xf32> -> vector<32x32xf32>
    %262 = arith.addf %261, %23 : vector<32x32xf32>
    %cst_65 = arith.constant dense<0xFF800000> : vector<32xf32>
    %263 = vector.multi_reduction <maximumf>, %262, %cst_65 [1] : vector<32x32xf32> to vector<32xf32>
    %264 = vector.shape_cast %263 : vector<32xf32> to vector<32x1xf32>
    %265 = vector.broadcast %264 : vector<32x1xf32> to vector<32x32xf32>
    %266 = arith.subf %262, %265 : vector<32x32xf32>
    %267 = math.exp %266 : vector<32x32xf32>
    %cst_66 = arith.constant dense<0.000000e+00> : vector<32xf32>
    %268 = vector.multi_reduction <add>, %267, %cst_66 [1] : vector<32x32xf32> to vector<32xf32>
    %269 = vector.shape_cast %268 : vector<32xf32> to vector<32x1xf32>
    %270 = tpu.reciprocal %269 {approx = true} : vector<32x1xf32> -> vector<32x1xf32>
    %271 = vector.broadcast %270 : vector<32x1xf32> to vector<32x32xf32>
    %272 = arith.mulf %267, %271 : vector<32x32xf32>
    %273 = arith.truncf %272 : vector<32x32xf32> to vector<32x32xbf16>
    %cst_67 = arith.constant dense<0.000000e+00> : vector<32x32xf32>
    %274 = tpu.matmul %273, %260, %cst_67 {dimension_numbers = #tpu.dot_dimension_numbers<[1], [0], [0], [1], [0, 0, 1, 1], [], []>} : vector<32x32xbf16>, vector<32x32xbf16>, vector<32x32xf32> -> vector<32x32xf32>
    %275 = vector.extract_strided_slice %212 {offsets = [0, 96], sizes = [32, 32], strides = [1, 1]} : vector<32x128xf32> to vector<32x32xf32>
    %276 = arith.truncf %275 : vector<32x32xf32> to vector<32x32xbf16>
    %277 = vector.extract_strided_slice %213 {offsets = [0, 96], sizes = [32, 32], strides = [1, 1]} : vector<32x128xf32> to vector<32x32xf32>
    %278 = arith.truncf %277 : vector<32x32xf32> to vector<32x32xbf16>
    %279 = vector.extract_strided_slice %214 {offsets = [0, 96], sizes = [32, 32], strides = [1, 1]} : vector<32x128xf32> to vector<32x32xf32>
    %280 = arith.truncf %279 : vector<32x32xf32> to vector<32x32xbf16>
    %cst_68 = arith.constant dense<0.000000e+00> : vector<32x32xf32>
    %281 = tpu.matmul %276, %278, %cst_68 {dimension_numbers = #tpu.dot_dimension_numbers<[1], [1], [0], [0], [0, 0, 1, 0], [], []>} : vector<32x32xbf16>, vector<32x32xbf16>, vector<32x32xf32> -> vector<32x32xf32>
    %282 = arith.addf %281, %23 : vector<32x32xf32>
    %cst_69 = arith.constant dense<0xFF800000> : vector<32xf32>
    %283 = vector.multi_reduction <maximumf>, %282, %cst_69 [1] : vector<32x32xf32> to vector<32xf32>
    %284 = vector.shape_cast %283 : vector<32xf32> to vector<32x1xf32>
    %285 = vector.broadcast %284 : vector<32x1xf32> to vector<32x32xf32>
    %286 = arith.subf %282, %285 : vector<32x32xf32>
    %287 = math.exp %286 : vector<32x32xf32>
    %cst_70 = arith.constant dense<0.000000e+00> : vector<32xf32>
    %288 = vector.multi_reduction <add>, %287, %cst_70 [1] : vector<32x32xf32> to vector<32xf32>
    %289 = vector.shape_cast %288 : vector<32xf32> to vector<32x1xf32>
    %290 = tpu.reciprocal %289 {approx = true} : vector<32x1xf32> -> vector<32x1xf32>
    %291 = vector.broadcast %290 : vector<32x1xf32> to vector<32x32xf32>
    %292 = arith.mulf %287, %291 : vector<32x32xf32>
    %293 = arith.truncf %292 : vector<32x32xf32> to vector<32x32xbf16>
    %cst_71 = arith.constant dense<0.000000e+00> : vector<32x32xf32>
    %294 = tpu.matmul %293, %280, %cst_71 {dimension_numbers = #tpu.dot_dimension_numbers<[1], [0], [0], [1], [0, 0, 1, 1], [], []>} : vector<32x32xbf16>, vector<32x32xbf16>, vector<32x32xf32> -> vector<32x32xf32>
    %295 = tpu.concatenate %234, %254, %274, %294 in 1 : vector<32x32xf32>, vector<32x32xf32>, vector<32x32xf32>, vector<32x32xf32> -> vector<32x128xf32>
    %296 = arith.truncf %295 : vector<32x128xf32> to vector<32x128xbf16>
    %297 = vector.extract_strided_slice %197 {offsets = [0, 384], sizes = [128, 128], strides = [1, 1]} : vector<128x768xbf16> to vector<128x128xbf16>
    %cst_72 = arith.constant dense<0.000000e+00> : vector<32x128xf32>
    %298 = tpu.matmul %296, %297, %cst_72 {dimension_numbers = #tpu.dot_dimension_numbers<[1], [0], [0], [1], [0, 0, 1, 1], [], []>} : vector<32x128xbf16>, vector<128x128xbf16>, vector<32x128xf32> -> vector<32x128xf32>
    %299 = arith.addf %195, %298 : vector<32x128xf32>
    %cst_73 = arith.constant dense<0.000000e+00> : vector<32xf32>
    %300 = vector.multi_reduction <add>, %299, %cst_73 [1] : vector<32x128xf32> to vector<32xf32>
    %301 = vector.shape_cast %300 : vector<32xf32> to vector<32x1xf32>
    %cst_74 = arith.constant 1.280000e+02 : f32
    %302 = vector.broadcast %cst_74 : f32 to vector<32x1xf32>
    %303 = arith.divf %301, %302 : vector<32x1xf32>
    %304 = vector.broadcast %303 : vector<32x1xf32> to vector<32x128xf32>
    %305 = arith.subf %299, %304 : vector<32x128xf32>
    %306 = arith.mulf %305, %305 : vector<32x128xf32>
    %cst_75 = arith.constant dense<0.000000e+00> : vector<32xf32>
    %307 = vector.multi_reduction <add>, %306, %cst_75 [1] : vector<32x128xf32> to vector<32xf32>
    %308 = vector.shape_cast %307 : vector<32xf32> to vector<32x1xf32>
    %cst_76 = arith.constant 1.280000e+02 : f32
    %309 = vector.broadcast %cst_76 : f32 to vector<32x1xf32>
    %310 = arith.divf %308, %309 : vector<32x1xf32>
    %311 = vector.broadcast %303 : vector<32x1xf32> to vector<32x128xf32>
    %312 = arith.subf %299, %311 : vector<32x128xf32>
    %cst_77 = arith.constant 9.99999996E-13 : f32
    %313 = vector.broadcast %cst_77 : f32 to vector<32x1xf32>
    %314 = arith.addf %310, %313 : vector<32x1xf32>
    %315 = math.rsqrt %314 : vector<32x1xf32>
    %316 = vector.broadcast %315 : vector<32x1xf32> to vector<32x128xf32>
    %317 = arith.mulf %312, %316 : vector<32x128xf32>
    %318 = vector.broadcast %201 : vector<1x128xf32> to vector<32x128xf32>
    %319 = arith.mulf %317, %318 : vector<32x128xf32>
    %320 = vector.broadcast %202 : vector<1x128xf32> to vector<32x128xf32>
    %321 = arith.addf %319, %320 : vector<32x128xf32>
    %322 = arith.truncf %321 : vector<32x128xf32> to vector<32x128xbf16>
    %323 = vector.extract_strided_slice %197 {offsets = [0, 512], sizes = [128, 256], strides = [1, 1]} : vector<128x768xbf16> to vector<128x256xbf16>
    %cst_78 = arith.constant dense<0.000000e+00> : vector<32x256xf32>
    %324 = tpu.matmul %322, %323, %cst_78 {dimension_numbers = #tpu.dot_dimension_numbers<[1], [0], [0], [1], [0, 0, 1, 1], [], []>} : vector<32x128xbf16>, vector<128x256xbf16>, vector<32x256xf32> -> vector<32x256xf32>
    %325 = vector.broadcast %203 : vector<1x256xf32> to vector<32x256xf32>
    %326 = arith.addf %324, %325 : vector<32x256xf32>
    %327 = arith.mulf %326, %326 : vector<32x256xf32>
    %328 = arith.mulf %326, %327 : vector<32x256xf32>
    %cst_79 = arith.constant 4.471500e-02 : f32
    %329 = vector.broadcast %cst_79 : f32 to vector<32x256xf32>
    %330 = arith.mulf %329, %328 : vector<32x256xf32>
    %331 = arith.addf %326, %330 : vector<32x256xf32>
    %cst_80 = arith.constant 0.797884583 : f32
    %332 = vector.broadcast %cst_80 : f32 to vector<32x256xf32>
    %333 = arith.mulf %332, %331 : vector<32x256xf32>
    %334 = math.tanh %333 : vector<32x256xf32>
    %cst_81 = arith.constant 1.000000e+00 : f32
    %335 = vector.broadcast %cst_81 : f32 to vector<32x256xf32>
    %336 = arith.addf %335, %334 : vector<32x256xf32>
    %cst_82 = arith.constant 5.000000e-01 : f32
    %337 = vector.broadcast %cst_82 : f32 to vector<32x256xf32>
    %338 = arith.mulf %337, %336 : vector<32x256xf32>
    %339 = arith.mulf %326, %338 : vector<32x256xf32>
    %c256 = arith.constant 256 : index
    %c0_83 = arith.constant 0 : index
    %340 = vector.load %arg3[%c256, %c0_83] : memref<896x128xbf16, #tpu.memory_space<vmem>>, vector<256x128xbf16>
    %341 = arith.truncf %339 : vector<32x256xf32> to vector<32x256xbf16>
    %cst_84 = arith.constant dense<0.000000e+00> : vector<32x128xf32>
    %342 = tpu.matmul %341, %340, %cst_84 {dimension_numbers = #tpu.dot_dimension_numbers<[1], [0], [0], [1], [0, 0, 1, 1], [], []>} : vector<32x256xbf16>, vector<256x128xbf16>, vector<32x128xf32> -> vector<32x128xf32>
    %343 = vector.broadcast %204 : vector<1x128xf32> to vector<32x128xf32>
    %344 = arith.addf %342, %343 : vector<32x128xf32>
    %345 = arith.addf %321, %344 : vector<32x128xf32>
    %cst_85 = arith.constant dense<0.000000e+00> : vector<32xf32>
    %346 = vector.multi_reduction <add>, %345, %cst_85 [1] : vector<32x128xf32> to vector<32xf32>
    %347 = vector.shape_cast %346 : vector<32xf32> to vector<32x1xf32>
    %cst_86 = arith.constant 1.280000e+02 : f32
    %348 = vector.broadcast %cst_86 : f32 to vector<32x1xf32>
    %349 = arith.divf %347, %348 : vector<32x1xf32>
    %350 = vector.broadcast %349 : vector<32x1xf32> to vector<32x128xf32>
    %351 = arith.subf %345, %350 : vector<32x128xf32>
    %352 = arith.mulf %351, %351 : vector<32x128xf32>
    %cst_87 = arith.constant dense<0.000000e+00> : vector<32xf32>
    %353 = vector.multi_reduction <add>, %352, %cst_87 [1] : vector<32x128xf32> to vector<32xf32>
    %354 = vector.shape_cast %353 : vector<32xf32> to vector<32x1xf32>
    %cst_88 = arith.constant 1.280000e+02 : f32
    %355 = vector.broadcast %cst_88 : f32 to vector<32x1xf32>
    %356 = arith.divf %354, %355 : vector<32x1xf32>
    %357 = vector.broadcast %349 : vector<32x1xf32> to vector<32x128xf32>
    %358 = arith.subf %345, %357 : vector<32x128xf32>
    %cst_89 = arith.constant 9.99999996E-13 : f32
    %359 = vector.broadcast %cst_89 : f32 to vector<32x1xf32>
    %360 = arith.addf %356, %359 : vector<32x1xf32>
    %361 = math.rsqrt %360 : vector<32x1xf32>
    %362 = vector.broadcast %361 : vector<32x1xf32> to vector<32x128xf32>
    %363 = arith.mulf %358, %362 : vector<32x128xf32>
    %364 = vector.broadcast %205 : vector<1x128xf32> to vector<32x128xf32>
    %365 = arith.mulf %363, %364 : vector<32x128xf32>
    %366 = vector.broadcast %206 : vector<1x128xf32> to vector<32x128xf32>
    %367 = arith.addf %365, %366 : vector<32x128xf32>
    %368 = vector.shape_cast %367 : vector<32x128xf32> to vector<2x16x128xf32>
    %cst_90 = arith.constant dense<0.000000e+00> : vector<2x128xf32>
    %369 = vector.multi_reduction <add>, %368, %cst_90 [1] : vector<2x16x128xf32> to vector<2x128xf32>
    %cst_91 = arith.constant 1.600000e+01 : f32
    %370 = vector.broadcast %cst_91 : f32 to vector<2x128xf32>
    %371 = arith.divf %369, %370 : vector<2x128xf32>
    %c512 = arith.constant 512 : index
    %c0_92 = arith.constant 0 : index
    %372 = vector.load %arg3[%c512, %c0_92] : memref<896x128xbf16, #tpu.memory_space<vmem>>, vector<128x128xbf16>
    %c0_93 = arith.constant 0 : index
    %c0_94 = arith.constant 0 : index
    %c0_95 = arith.constant 0 : index
    %373 = vector.load %arg4[%c0_93, %c0_94, %c0_95] : memref<2x8x256xf32, #tpu.memory_space<vmem>>, vector<1x8x256xf32>
    %374 = vector.shape_cast %373 : vector<1x8x256xf32> to vector<8x256xf32>
    %375 = vector.extract_strided_slice %374 {offsets = [7, 0], sizes = [1, 128], strides = [1, 1]} : vector<8x256xf32> to vector<1x128xf32>
    %376 = arith.truncf %371 : vector<2x128xf32> to vector<2x128xbf16>
    %cst_96 = arith.constant dense<0.000000e+00> : vector<2x128xf32>
    %377 = tpu.matmul %376, %372, %cst_96 {dimension_numbers = #tpu.dot_dimension_numbers<[1], [0], [0], [1], [0, 0, 1, 1], [], []>} : vector<2x128xbf16>, vector<128x128xbf16>, vector<2x128xf32> -> vector<2x128xf32>
    %378 = vector.broadcast %375 : vector<1x128xf32> to vector<2x128xf32>
    %379 = arith.addf %377, %378 : vector<2x128xf32>
    %c0_97 = arith.constant 0 : index
    %c0_98 = arith.constant 0 : index
    %380 = vector.load %arg5[%c0_97, %c0_98] : memref<2x128xf32, #tpu.memory_space<vmem>>, vector<2x128xf32>
    tpu.vector_store %arg5[%c0_97, %c0_98], %379 {strides = array<i32>} : memref<2x128xf32, #tpu.memory_space<vmem>>, vector<2x128xf32>,
    return
  }
}

</mosaic_0001>

<llo_original>
// kernel: xlnet_model_forward.1
$region0: #{xlnet_model_forward.1}
  #allocation0 [shape = 'u32[]', space=smem, size = 0x4, offset = 0x4, fixed_abs, tag = 'smem constant byte address 0x4 - core index']
  #allocation1 [shape = 'u32[144,128]{1,0:T(1,128)}', space=vmem, size = 0x12000, scoped, tag = 'internal scratch']
  %s0 = inlined_call_operand.vmem [shape: s32[32,2], index: 0, kind: input, shape index: {}]
  %s1 = inlined_call_operand.vmem [shape: f32[32,32], index: 1, kind: input, shape index: {}]
  %s2 = inlined_call_operand.hbm [shape: bf16[2,128,768], index: 2, kind: input, shape index: {}]
  %s3 = inlined_call_operand.hbm [shape: bf16[896,128], index: 3, kind: input, shape index: {}]
  %s4 = inlined_call_operand.vmem [shape: f32[2,8,256], index: 4, kind: input, shape index: {}]
  %s5 = inlined_call_operand.hbm [shape: f32[2,128], index: 5, kind: output, shape index: {}]
  %s6 = sld [smem:[#allocation0]]
  $region38: #{xlnet_model_forward.1} parent=0
    _
  %s8 = ssub.s32 1, %s6
  %s9 = scalar_select 0, %s8, %s6
  $region1: #{xlnet_model_forward.1} parent=0
    #allocation2 [shape = 'u8[393216]{0}', space=vmem, size = 0x60000, scoped, tag = 'input window, operand 2, single buffered']
    #allocation3 [shape = 's32[1]{0}', space=sflag, size = 0x4, scoped, tag = 'scoped memory for xlnet_model_forward.1']
    #allocation4 [shape = 's32[1]{0}', space=sflag, size = 0x4, scoped, tag = 'scoped memory for xlnet_model_forward.1']
    #allocation5 [shape = 'u8[229376]{0}', space=vmem, size = 0x38000, scoped, tag = 'input window, operand 3, single buffered']
    #allocation6 [shape = 's32[1]{0}', space=sflag, size = 0x4, scoped, tag = 'scoped memory for xlnet_model_forward.1']
    #allocation7 [shape = 'u8[1024]{0}', space=vmem, size = 0x400, scoped, tag = 'output window, operand 0, single buffered']
    %10 = vsyncpa [#allocation3], 0
    %11 = vsyncpa [#allocation6], 0
    %12 = vsyncpa [#allocation4], 0
    // Predicated region
    $region2: #{xlnet_model_forward.1} parent=1 // pred_check
      _
    $region3: #{xlnet_model_forward.1} parent=1 // pred_check_branch
      %14 = sbr.rel (0) target = $region5
    $region4: #{xlnet_model_forward.1} parent=1 // pred_region
      _
    $region5: #{xlnet_model_forward.1} parent=1 // pred_fallthru
      _
    // Predicated region
    $region6: #{xlnet_model_forward.1} parent=1 // pred_check
      _
    $region7: #{xlnet_model_forward.1} parent=1 // pred_check_branch
      %16 = sbr.rel (0) target = $region9
    $region8: #{xlnet_model_forward.1} parent=1 // pred_region
      _
    $region9: #{xlnet_model_forward.1} parent=1 // pred_fallthru
      _
    // Predicated region
    $region10: #{xlnet_model_forward.1} parent=1 // pred_check
      _
    $region11: #{xlnet_model_forward.1} parent=1 // pred_check_branch
      %18 = sbr.rel (0) target = $region13
    $region12: #{xlnet_model_forward.1} parent=1 // pred_region
      %s20 = ssub.s32 12288, 12288
      %21 = vsyncadd [#allocation3], %s20
      %s22 = sshll.u32 [#allocation2], 4
      %s23 = int_to_ptr.vmem [resolvable:$true] %s22
      %28 = dma.hbm_to_vmem [thread:$0]  %s2, 12288, %s23, [#allocation3], 384, 384, 24
    $region13: #{xlnet_model_forward.1} parent=1 // pred_fallthru
      _
    // Predicated region
    $region14: #{xlnet_model_forward.1} parent=1 // pred_check
      _
    $region15: #{xlnet_model_forward.1} parent=1 // pred_check_branch
      %30 = sbr.rel (0) target = $region17
    $region16: #{xlnet_model_forward.1} parent=1 // pred_region
      %s32 = ssub.s32 7168, 7168
      %33 = vsyncadd [#allocation6], %s32
      %s34 = sshll.u32 [#allocation5], 4
      %s35 = int_to_ptr.vmem [resolvable:$true] %s34
      %40 = dma.hbm_to_vmem [thread:$0]  %s3, 7168, %s35, [#allocation6], 64, 64, 4
    $region17: #{xlnet_model_forward.1} parent=1 // pred_fallthru
      _
    // Predicated region
    $region18: #{xlnet_model_forward.1} parent=1 // pred_check
      _
    $region19: #{xlnet_model_forward.1} parent=1 // pred_check_branch
      %42 = sbr.rel (0) target = $region21
    $region20: #{xlnet_model_forward.1} parent=1 // pred_region
      _
    $region21: #{xlnet_model_forward.1} parent=1 // pred_fallthru
      _
    // Predicated region
    $region22: #{xlnet_model_forward.1} parent=1 // pred_check
      _
    $region23: #{xlnet_model_forward.1} parent=1 // pred_check_branch
      %44 = sbr.rel (0) target = $region25
    $region24: #{xlnet_model_forward.1} parent=1 // pred_region
      %45 = dma.done [#allocation3], 12288
    $region25: #{xlnet_model_forward.1} parent=1 // pred_fallthru
      _
    // Predicated region
    $region26: #{xlnet_model_forward.1} parent=1 // pred_check
      _
    $region27: #{xlnet_model_forward.1} parent=1 // pred_check_branch
      %47 = sbr.rel (0) target = $region29
    $region28: #{xlnet_model_forward.1} parent=1 // pred_region
      %48 = dma.done [#allocation6], 7168
    $region29: #{xlnet_model_forward.1} parent=1 // pred_fallthru
      _
    %v50 = vld [vmem:[%s0] sm:$0xff]
    %v51 = vld [vmem:[%s0 + $0x8] sm:$0xff]
    %v52 = vld [vmem:[%s0 + $0x10] sm:$0xff]
    %v53 = vld [vmem:[%s0 + $0x18] sm:$0xff]
    %v54 = vlaneseq
    %v55 = vand.u32 %v54, 127
    %v56 = vadd.s32 %v55, 128
    %vm57 = vcmp.lt.s32.totalorder %v55, 128
    %vm58 = vcmp.lt.s32.totalorder %v56, 128
    %59 = vset.pattern.permute.xlu0 0
    %60 = vperm.xlu0 %59, %v50
    %v61 = vpop.permute.xlu0 %60
    %62 = vset.pattern.permute.xlu0 0
    %63 = vperm.xlu0 %62, %v51
    %v64 = vpop.permute.xlu0 %63
    %65 = vset.pattern.permute.xlu0 0
    %66 = vperm.xlu0 %65, %v52
    %v67 = vpop.permute.xlu0 %66
    %68 = vset.pattern.permute.xlu0 0
    %69 = vperm.xlu0 %68, %v53
    %v70 = vpop.permute.xlu0 %69
    %vm71 = vcmp.eq.s32.totalorder %v55, %v61
    %vm72 = vcmp.eq.s32.totalorder %v56, %v61
    %vm73 = vcmp.eq.s32.totalorder %v55, %v64
    %vm74 = vcmp.eq.s32.totalorder %v56, %v64
    %vm75 = vcmp.eq.s32.totalorder %v55, %v67
    %vm76 = vcmp.eq.s32.totalorder %v56, %v67
    %vm77 = vcmp.eq.s32.totalorder %v55, %v70
    %vm78 = vcmp.eq.s32.totalorder %v56, %v70
    %vm79 = vmand %vm57, %vm71
    %vm80 = vmand %vm58, %vm72
    %vm81 = vmand %vm57, %vm73
    %vm82 = vmand %vm58, %vm74
    %vm83 = vmand %vm57, %vm75
    %vm84 = vmand %vm58, %vm76
    %vm85 = vmand %vm57, %vm77
    %vm86 = vmand %vm58, %vm78
    %vm87 = vcmp.ge.s32.totalorder %v55, 128
    %vm88 = vcmp.ge.s32.totalorder %v56, 128
    %v89 = vsub.s32 %v55, 128
    %90 = vset.pattern.permute.xlu0 1
    %91 = vperm.xlu0 %90, %v50
    %v92 = vpop.permute.xlu0 %91
    %93 = vset.pattern.permute.xlu0 1
    %94 = vperm.xlu0 %93, %v51
    %v95 = vpop.permute.xlu0 %94
    %96 = vset.pattern.permute.xlu0 1
    %97 = vperm.xlu0 %96, %v52
    %v98 = vpop.permute.xlu0 %97
    %99 = vset.pattern.permute.xlu0 1
    %100 = vperm.xlu0 %99, %v53
    %v101 = vpop.permute.xlu0 %100
    %vm102 = vcmp.eq.s32.totalorder %v89, %v92
    %vm103 = vcmp.eq.s32.totalorder %v55, %v92
    %vm104 = vcmp.eq.s32.totalorder %v89, %v95
    %vm105 = vcmp.eq.s32.totalorder %v55, %v95
    %vm106 = vcmp.eq.s32.totalorder %v89, %v98
    %vm107 = vcmp.eq.s32.totalorder %v55, %v98
    %vm108 = vcmp.eq.s32.totalorder %v89, %v101
    %vm109 = vcmp.eq.s32.totalorder %v55, %v101
    %vm110 = vmand %vm87, %vm102
    %vm111 = vmand %vm88, %vm103
    %vm112 = vmand %vm87, %vm104
    %vm113 = vmand %vm88, %vm105
    %vm114 = vmand %vm87, %vm106
    %vm115 = vmand %vm88, %vm107
    %vm116 = vmand %vm87, %vm108
    %vm117 = vmand %vm88, %vm109
    %vm118 = vmor %vm79, %vm110
    %vm119 = vmor %vm80, %vm111
    %vm120 = vmor %vm81, %vm112
    %vm121 = vmor %vm82, %vm113
    %vm122 = vmor %vm83, %vm114
    %vm123 = vmor %vm84, %vm115
    %vm124 = vmor %vm85, %vm116
    %vm125 = vmor %vm86, %vm117
    %v126 = vsel %vm118, 1.0, 0.0
    %v127 = vsel %vm119, 1.0, 0.0
    %v128 = vsel %vm120, 1.0, 0.0
    %v129 = vsel %vm121, 1.0, 0.0
    %v130 = vsel %vm122, 1.0, 0.0
    %v131 = vsel %vm123, 1.0, 0.0
    %v132 = vsel %vm124, 1.0, 0.0
    %v133 = vsel %vm125, 1.0, 0.0
    %v134 = vpack.c.bf16 %v128, %v126
    %v135 = vpack.c.bf16 %v129, %v127
    %v136 = vpack.c.bf16 %v132, %v130
    %v137 = vpack.c.bf16 %v133, %v131
    %v138 = vld [vmem:[#allocation5 + $0x140] sm:$0xf]
    %v139 = vld [vmem:[#allocation5 + $0x144] sm:$0xf]
    %v140 = vld [vmem:[#allocation5 + $0x148] sm:$0xf]
    %v141 = vld [vmem:[#allocation5 + $0x14c] sm:$0xf]
    %v142 = vld [vmem:[#allocation5 + $0x150] sm:$0xf]
    %v143 = vld [vmem:[#allocation5 + $0x154] sm:$0xf]
    %v144 = vld [vmem:[#allocation5 + $0x158] sm:$0xf]
    %v145 = vld [vmem:[#allocation5 + $0x15c] sm:$0xf]
    %v146 = vld [vmem:[#allocation5 + $0x160] sm:$0xf]
    %v147 = vld [vmem:[#allocation5 + $0x164] sm:$0xf]
    %v148 = vld [vmem:[#allocation5 + $0x168] sm:$0xf]
    %v149 = vld [vmem:[#allocation5 + $0x16c] sm:$0xf]
    %v150 = vld [vmem:[#allocation5 + $0x170] sm:$0xf]
    %v151 = vld [vmem:[#allocation5 + $0x174] sm:$0xf]
    %v152 = vld [vmem:[#allocation5 + $0x178] sm:$0xf]
    %v153 = vld [vmem:[#allocation5 + $0x17c] sm:$0xf]
    %v154 = vld [vmem:[#allocation5 + $0x180] sm:$0xf]
    %v155 = vld [vmem:[#allocation5 + $0x184] sm:$0xf]
    %v156 = vld [vmem:[#allocation5 + $0x188] sm:$0xf]
    %v157 = vld [vmem:[#allocation5 + $0x18c] sm:$0xf]
    %v158 = vld [vmem:[#allocation5 + $0x190] sm:$0xf]
    %v159 = vld [vmem:[#allocation5 + $0x194] sm:$0xf]
    %v160 = vld [vmem:[#allocation5 + $0x198] sm:$0xf]
    %v161 = vld [vmem:[#allocation5 + $0x19c] sm:$0xf]
    %v162 = vld [vmem:[#allocation5 + $0x1a0] sm:$0xf]
    %v163 = vld [vmem:[#allocation5 + $0x1a4] sm:$0xf]
    %v164 = vld [vmem:[#allocation5 + $0x1a8] sm:$0xf]
    %v165 = vld [vmem:[#allocation5 + $0x1ac] sm:$0xf]
    %v166 = vld [vmem:[#allocation5 + $0x1b0] sm:$0xf]
    %v167 = vld [vmem:[#allocation5 + $0x1b4] sm:$0xf]
    %v168 = vld [vmem:[#allocation5 + $0x1b8] sm:$0xf]
    %v169 = vld [vmem:[#allocation5 + $0x1bc] sm:$0xf]
    %v202 = vunpack.c.l.b16 %v138
    %v203 = vunpack.c.l.b16 %v139
    %v204 = vunpack.c.l.b16 %v140
    %v205 = vunpack.c.l.b16 %v141
    %v206 = vunpack.c.l.b16 %v142
    %v207 = vunpack.c.l.b16 %v143
    %v208 = vunpack.c.l.b16 %v144
    %v209 = vunpack.c.l.b16 %v145
    %v210 = vunpack.c.l.b16 %v146
    %v211 = vunpack.c.l.b16 %v147
    %v212 = vunpack.c.l.b16 %v148
    %v213 = vunpack.c.l.b16 %v149
    %v214 = vunpack.c.l.b16 %v150
    %v215 = vunpack.c.l.b16 %v151
    %v216 = vunpack.c.l.b16 %v152
    %v217 = vunpack.c.l.b16 %v153
    %v218 = vunpack.c.l.b16 %v154
    %v219 = vunpack.c.l.b16 %v155
    %v220 = vunpack.c.l.b16 %v156
    %v221 = vunpack.c.l.b16 %v157
    %v222 = vunpack.c.l.b16 %v158
    %v223 = vunpack.c.l.b16 %v159
    %v224 = vunpack.c.l.b16 %v160
    %v225 = vunpack.c.l.b16 %v161
    %v226 = vunpack.c.l.b16 %v162
    %v227 = vunpack.c.l.b16 %v163
    %v228 = vunpack.c.l.b16 %v164
    %v229 = vunpack.c.l.b16 %v165
    %v230 = vunpack.c.l.b16 %v166
    %v231 = vunpack.c.l.b16 %v167
    %v232 = vunpack.c.l.b16 %v168
    %v233 = vunpack.c.l.b16 %v169
    %v234 = vpack.c.b16 %v203, %v202
    %v235 = vpack.c.b16 %v205, %v204
    %v236 = vpack.c.b16 %v207, %v206
    %v237 = vpack.c.b16 %v209, %v208
    %v238 = vpack.c.b16 %v211, %v210
    %v239 = vpack.c.b16 %v213, %v212
    %v240 = vpack.c.b16 %v215, %v214
    %v241 = vpack.c.b16 %v217, %v216
    %v242 = vpack.c.b16 %v219, %v218
    %v243 = vpack.c.b16 %v221, %v220
    %v244 = vpack.c.b16 %v223, %v222
    %v245 = vpack.c.b16 %v225, %v224
    %v246 = vpack.c.b16 %v227, %v226
    %v247 = vpack.c.b16 %v229, %v228
    %v248 = vpack.c.b16 %v231, %v230
    %v249 = vpack.c.b16 %v233, %v232
    %266 = vmatprep.subr.bf16.mxu0 0
    %267 = vmatpush1.bf16.msra.mxu0 %v234
    %268 = vmatprep.subr.bf16.mxu0 0
    %269 = vmatpush1.bf16.msra.mxu0 %v235
    %270 = vmatprep.subr.bf16.mxu0 0
    %271 = vmatpush1.bf16.msra.mxu0 %v236
    %272 = vmatprep.subr.bf16.mxu0 0
    %273 = vmatpush1.bf16.msra.mxu0 %v237
    %274 = vmatprep.subr.bf16.mxu0 0
    %275 = vmatpush1.bf16.msra.mxu0 %v238
    %276 = vmatprep.subr.bf16.mxu0 0
    %277 = vmatpush1.bf16.msra.mxu0 %v239
    %278 = vmatprep.subr.bf16.mxu0 0
    %279 = vmatpush1.bf16.msra.mxu0 %v240
    %280 = vmatprep.subr.bf16.mxu0 0
    %281 = vmatpush1.bf16.msra.mxu0 %v241
    %282 = vmatprep.subr.bf16.mxu0 0
    %283 = vmatpush1.bf16.msra.mxu0 %v242
    %284 = vmatprep.subr.bf16.mxu0 0
    %285 = vmatpush1.bf16.msra.mxu0 %v243
    %286 = vmatprep.subr.bf16.mxu0 0
    %287 = vmatpush1.bf16.msra.mxu0 %v244
    %288 = vmatprep.subr.bf16.mxu0 0
    %289 = vmatpush1.bf16.msra.mxu0 %v245
    %290 = vmatprep.subr.bf16.mxu0 0
    %291 = vmatpush1.bf16.msra.mxu0 %v246
    %292 = vmatprep.subr.bf16.mxu0 0
    %293 = vmatpush1.bf16.msra.mxu0 %v247
    %294 = vmatprep.subr.bf16.mxu0 0
    %295 = vmatpush1.bf16.msra.mxu0 %v248
    %296 = vmatprep.subr.bf16.mxu0 0
    %297 = vmatpush1.bf16.msra.mxu0 %v249
    %298 = vmatprep.mubr.bf16.mxu0 %v135
    %299 = vmatmul.mubr.bf16.gmra.mrb[0].mxu0 %v134
    %v300 = vpop.f32.mrb[0].mxu0
    %v301 = vadd.f32 0.0, %v300
    %v302 = vpop.f32.mrb[0].mxu0
    %v303 = vpop.f32.mrb[0].mxu0
    %v304 = vadd.f32 0.0, %v303
    %v305 = vpop.f32.mrb[0].mxu0
    %306 = vmatprep.mubr.bf16.mxu0 %v137
    %307 = vmatmul.mubr.bf16.gmra.mrb[0].mxu0 %v136
    %v308 = vpop.f32.mrb[0].mxu0
    %v309 = vadd.f32 0.0, %v308
    %v310 = vpop.f32.mrb[0].mxu0
    %v311 = vpop.f32.mrb[0].mxu0
    %v312 = vadd.f32 0.0, %v311
    %v313 = vpop.f32.mrb[0].mxu0
    %314 = vdwg.mxu0
    %v315 = vld [vmem:[%s1] sm:$0xff]
    %v316 = vld [vmem:[%s1 + $0x8] sm:$0xff]
    %v317 = vld [vmem:[%s1 + $0x10] sm:$0xff]
    %v318 = vld [vmem:[%s1 + $0x18] sm:$0xff]
    %v319 = vld [vmem:[#allocation2] sm:$0xff]
    %v320 = vld [vmem:[#allocation2 + $0x8] sm:$0xff]
    %v321 = vld [vmem:[#allocation2 + $0x10] sm:$0xff]
    %v322 = vld [vmem:[#allocation2 + $0x18] sm:$0xff]
    %v323 = vld [vmem:[#allocation2 + $0x20] sm:$0xff]
    %v324 = vld [vmem:[#allocation2 + $0x28] sm:$0xff]
    %v325 = vld [vmem:[#allocation2 + $0x30] sm:$0xff]
    %v326 = vld [vmem:[#allocation2 + $0x38] sm:$0xff]
    %v327 = vld [vmem:[#allocation2 + $0x40] sm:$0xff]
    %v328 = vld [vmem:[#allocation2 + $0x48] sm:$0xff]
    %v329 = vld [vmem:[#allocation2 + $0x50] sm:$0xff]
    %v330 = vld [vmem:[#allocation2 + $0x58] sm:$0xff]
    %v331 = vld [vmem:[#allocation2 + $0x60] sm:$0xff]
    %v332 = vld [vmem:[#allocation2 + $0x68] sm:$0xff]
    %v333 = vld [vmem:[#allocation2 + $0x70] sm:$0xff]
    %v334 = vld [vmem:[#allocation2 + $0x78] sm:$0xff]
    %v335 = vld [vmem:[#allocation2 + $0x80] sm:$0xff]
    %v336 = vld [vmem:[#allocation2 + $0x88] sm:$0xff]
    %v337 = vld [vmem:[#allocation2 + $0x90] sm:$0xff]
    %v338 = vld [vmem:[#allocation2 + $0x98] sm:$0xff]
    %v339 = vld [vmem:[#allocation2 + $0xa0] sm:$0xff]
    %v340 = vld [vmem:[#allocation2 + $0xa8] sm:$0xff]
    %v341 = vld [vmem:[#allocation2 + $0xb0] sm:$0xff]
    %v342 = vld [vmem:[#allocation2 + $0xb8] sm:$0xff]
    %v343 = vld [vmem:[#allocation2 + $0xc0] sm:$0xff]
    %v344 = vld [vmem:[#allocation2 + $0xc8] sm:$0xff]
    %v345 = vld [vmem:[#allocation2 + $0xd0] sm:$0xff]
    %v346 = vld [vmem:[#allocation2 + $0xd8] sm:$0xff]
    %v347 = vld [vmem:[#allocation2 + $0xe0] sm:$0xff]
    %v348 = vld [vmem:[#allocation2 + $0xe8] sm:$0xff]
    %v349 = vld [vmem:[#allocation2 + $0xf0] sm:$0xff]
    %v350 = vld [vmem:[#allocation2 + $0xf8] sm:$0xff]
    %v351 = vld [vmem:[#allocation2 + $0x100] sm:$0xff]
    %v352 = vld [vmem:[#allocation2 + $0x108] sm:$0xff]
    %v353 = vld [vmem:[#allocation2 + $0x110] sm:$0xff]
    %v354 = vld [vmem:[#allocation2 + $0x118] sm:$0xff]
    %v355 = vld [vmem:[#allocation2 + $0x120] sm:$0xff]
    %v356 = vld [vmem:[#allocation2 + $0x128] sm:$0xff]
    %v357 = vld [vmem:[#allocation2 + $0x130] sm:$0xff]
    %v358 = vld [vmem:[#allocation2 + $0x138] sm:$0xff]
    %v359 = vld [vmem:[#allocation2 + $0x140] sm:$0xff]
    %v360 = vld [vmem:[#allocation2 + $0x148] sm:$0xff]
    %v361 = vld [vmem:[#allocation2 + $0x150] sm:$0xff]
    %v362 = vld [vmem:[#allocation2 + $0x158] sm:$0xff]
    %v363 = vld [vmem:[#allocation2 + $0x160] sm:$0xff]
    %v364 = vld [vmem:[#allocation2 + $0x168] sm:$0xff]
    %v365 = vld [vmem:[#allocation2 + $0x170] sm:$0xff]
    %v366 = vld [vmem:[#allocation2 + $0x178] sm:$0xff]
    %v367 = vld [vmem:[%s4] sm:$0xff]
    %v368 = vld [vmem:[%s4 + $0x8] sm:$0xff]
    %v369 = vpack.c.bf16 %v304, %v301
    %v370 = vpack.c.bf16 %v312, %v309
    %v403 = vunpack.c.l.b16 %v319
    %v404 = vunpack.c.h.b16 %v319
    %v405 = vunpack.c.l.b16 %v320
    %v406 = vunpack.c.l.b16 %v322
    %v407 = vunpack.c.h.b16 %v322
    %v408 = vunpack.c.l.b16 %v323
    %v409 = vunpack.c.l.b16 %v325
    %v410 = vunpack.c.h.b16 %v325
    %v411 = vunpack.c.l.b16 %v326
    %v412 = vunpack.c.l.b16 %v328
    %v413 = vunpack.c.h.b16 %v328
    %v414 = vunpack.c.l.b16 %v329
    %v415 = vunpack.c.l.b16 %v331
    %v416 = vunpack.c.h.b16 %v331
    %v417 = vunpack.c.l.b16 %v332
    %v418 = vunpack.c.l.b16 %v334
    %v419 = vunpack.c.h.b16 %v334
    %v420 = vunpack.c.l.b16 %v335
    %v421 = vunpack.c.l.b16 %v337
    %v422 = vunpack.c.h.b16 %v337
    %v423 = vunpack.c.l.b16 %v338
    %v424 = vunpack.c.l.b16 %v340
    %v425 = vunpack.c.h.b16 %v340
    %v426 = vunpack.c.l.b16 %v341
    %v427 = vunpack.c.l.b16 %v343
    %v428 = vunpack.c.h.b16 %v343
    %v429 = vunpack.c.l.b16 %v344
    %v430 = vunpack.c.l.b16 %v346
    %v431 = vunpack.c.h.b16 %v346
    %v432 = vunpack.c.l.b16 %v347
    %v433 = vunpack.c.l.b16 %v349
    %v434 = vunpack.c.h.b16 %v349
    %v435 = vunpack.c.l.b16 %v350
    %v436 = vunpack.c.l.b16 %v352
    %v437 = vunpack.c.h.b16 %v352
    %v438 = vunpack.c.l.b16 %v353
    %v439 = vunpack.c.l.b16 %v355
    %v440 = vunpack.c.h.b16 %v355
    %v441 = vunpack.c.l.b16 %v356
    %v442 = vunpack.c.l.b16 %v358
    %v443 = vunpack.c.h.b16 %v358
    %v444 = vunpack.c.l.b16 %v359
    %v445 = vunpack.c.l.b16 %v361
    %v446 = vunpack.c.h.b16 %v361
    %v447 = vunpack.c.l.b16 %v362
    %v448 = vunpack.c.l.b16 %v364
    %v449 = vunpack.c.h.b16 %v364
    %v450 = vunpack.c.l.b16 %v365
    %v451 = vpack.c.b16 %v406, %v403
    %v452 = vpack.c.b16 %v407, %v404
    %v453 = vpack.c.b16 %v408, %v405
    %v454 = vpack.c.b16 %v412, %v409
    %v455 = vpack.c.b16 %v413, %v410
    %v456 = vpack.c.b16 %v414, %v411
    %v457 = vpack.c.b16 %v418, %v415
    %v458 = vpack.c.b16 %v419, %v416
    %v459 = vpack.c.b16 %v420, %v417
    %v460 = vpack.c.b16 %v424, %v421
    %v461 = vpack.c.b16 %v425, %v422
    %v462 = vpack.c.b16 %v426, %v423
    %v463 = vpack.c.b16 %v430, %v427
    %v464 = vpack.c.b16 %v431, %v428
    %v465 = vpack.c.b16 %v432, %v429
    %v466 = vpack.c.b16 %v436, %v433
    %v467 = vpack.c.b16 %v437, %v434
    %v468 = vpack.c.b16 %v438, %v435
    %v469 = vpack.c.b16 %v442, %v439
    %v470 = vpack.c.b16 %v443, %v440
    %v471 = vpack.c.b16 %v444, %v441
    %v472 = vpack.c.b16 %v448, %v445
    %v473 = vpack.c.b16 %v449, %v446
    %v474 = vpack.c.b16 %v450, %v447
    %499 = vmatprep.subr.bf16.mxu0 %v452
    %500 = vmatpush1.bf16.msra.mxu0 %v451
    %501 = vmatprep.subr.bf16.mxu0 %v455
    %502 = vmatpush1.bf16.msra.mxu0 %v454
    %503 = vmatprep.subr.bf16.mxu0 %v458
    %504 = vmatpush1.bf16.msra.mxu0 %v457
    %505 = vmatprep.subr.bf16.mxu0 %v461
    %506 = vmatpush1.bf16.msra.mxu0 %v460
    %507 = vmatprep.subr.bf16.mxu0 %v464
    %508 = vmatpush1.bf16.msra.mxu0 %v463
    %509 = vmatprep.subr.bf16.mxu0 %v467
    %510 = vmatpush1.bf16.msra.mxu0 %v466
    %511 = vmatprep.subr.bf16.mxu0 %v470
    %512 = vmatpush1.bf16.msra.mxu0 %v469
    %513 = vmatprep.subr.bf16.mxu0 %v473
    %514 = vmatpush1.bf16.msra.mxu0 %v472
    %515 = vmatprep.subr.bf16.mxu0 0
    %516 = vmatpush1.bf16.msra.mxu0 0
    %517 = vmatprep.subr.bf16.mxu0 0
    %518 = vmatpush1.bf16.msra.mxu0 0
    %519 = vmatprep.subr.bf16.mxu0 0
    %520 = vmatpush1.bf16.msra.mxu0 0
    %521 = vmatprep.subr.bf16.mxu0 0
    %522 = vmatpush1.bf16.msra.mxu0 0
    %523 = vmatprep.subr.bf16.mxu0 0
    %524 = vmatpush1.bf16.msra.mxu0 0
    %525 = vmatprep.subr.bf16.mxu0 0
    %526 = vmatpush1.bf16.msra.mxu0 0
    %527 = vmatprep.subr.bf16.mxu0 0
    %528 = vmatpush1.bf16.msra.mxu0 0
    %529 = vmatprep.subr.bf16.mxu0 0
    %530 = vmatpush1.bf16.msra.mxu0 0
    %531 = vmatprep.mubr.bf16.mxu0 0
    %532 = vmatmul.mubr.bf16.gmra.mrb[0].mxu0 %v369
    %v533 = vpop.f32.mrb[0].mxu0
    %v534 = vadd.f32 0.0, %v533
    %v535 = vpop.f32.mrb[0].mxu0
    %v536 = vadd.f32 0.0, %v535
    %v537 = vpop.f32.mrb[0].mxu0
    %v538 = vadd.f32 0.0, %v537
    %v539 = vpop.f32.mrb[0].mxu0
    %v540 = vadd.f32 0.0, %v539
    %541 = vmatprep.mubr.bf16.mxu0 0
    %542 = vmatmul.mubr.bf16.gmra.mrb[0].mxu0 %v370
    %v543 = vpop.f32.mrb[0].mxu0
    %v544 = vadd.f32 0.0, %v543
    %v545 = vpop.f32.mrb[0].mxu0
    %v546 = vadd.f32 0.0, %v545
    %v547 = vpop.f32.mrb[0].mxu0
    %v548 = vadd.f32 0.0, %v547
    %v549 = vpop.f32.mrb[0].mxu0
    %v550 = vadd.f32 0.0, %v549
    %551 = vdwg.mxu0
    %552 = vmatprep.subr.bf16.mxu0 0
    %553 = vmatpush1.bf16.msra.mxu0 %v453
    %554 = vmatprep.subr.bf16.mxu0 0
    %555 = vmatpush1.bf16.msra.mxu0 %v456
    %556 = vmatprep.subr.bf16.mxu0 0
    %557 = vmatpush1.bf16.msra.mxu0 %v459
    %558 = vmatprep.subr.bf16.mxu0 0
    %559 = vmatpush1.bf16.msra.mxu0 %v462
    %560 = vmatprep.subr.bf16.mxu0 0
    %561 = vmatpush1.bf16.msra.mxu0 %v465
    %562 = vmatprep.subr.bf16.mxu0 0
    %563 = vmatpush1.bf16.msra.mxu0 %v468
    %564 = vmatprep.subr.bf16.mxu0 0
    %565 = vmatpush1.bf16.msra.mxu0 %v471
    %566 = vmatprep.subr.bf16.mxu0 0
    %567 = vmatpush1.bf16.msra.mxu0 %v474
    %568 = vmatprep.subr.bf16.mxu0 0
    %569 = vmatpush1.bf16.msra.mxu0 0
    %570 = vmatprep.subr.bf16.mxu0 0
    %571 = vmatpush1.bf16.msra.mxu0 0
    %572 = vmatprep.subr.bf16.mxu0 0
    %573 = vmatpush1.bf16.msra.mxu0 0
    %574 = vmatprep.subr.bf16.mxu0 0
    %575 = vmatpush1.bf16.msra.mxu0 0
    %576 = vmatprep.subr.bf16.mxu0 0
    %577 = vmatpush1.bf16.msra.mxu0 0
    %578 = vmatprep.subr.bf16.mxu0 0
    %579 = vmatpush1.bf16.msra.mxu0 0
    %580 = vmatprep.subr.bf16.mxu0 0
    %581 = vmatpush1.bf16.msra.mxu0 0
    %582 = vmatprep.subr.bf16.mxu0 0
    %583 = vmatpush1.bf16.msra.mxu0 0
    %584 = vmatprep.mubr.bf16.mxu0 0
    %585 = vmatmul.mubr.bf16.gmra.mrb[0].mxu0 %v369
    %v586 = vpop.f32.mrb[0].mxu0
    %v587 = vadd.f32 0.0, %v586
    %v588 = vpop.f32.mrb[0].mxu0
    %v589 = vpop.f32.mrb[0].mxu0
    %v590 = vadd.f32 0.0, %v589
    %v591 = vpop.f32.mrb[0].mxu0
    %592 = vmatprep.mubr.bf16.mxu0 0
    %593 = vmatmul.mubr.bf16.gmra.mrb[0].mxu0 %v370
    %v594 = vpop.f32.mrb[0].mxu0
    %v595 = vadd.f32 0.0, %v594
    %v596 = vpop.f32.mrb[0].mxu0
    %v597 = vpop.f32.mrb[0].mxu0
    %v598 = vadd.f32 0.0, %v597
    %v599 = vpop.f32.mrb[0].mxu0
    %600 = vdwg.mxu0
    %v601 = vlaneseq
    %v602 = vshrl.u32 %v601, 7
    %v603 = vsub.s32 0, %v602
    %v604 = vrot.slane %v367, %v603
    %v605 = vadd.f32 %v534, %v604
    %v606 = vadd.f32 %v538, %v604
    %v607 = vadd.f32 %v544, %v604
    %v608 = vadd.f32 %v548, %v604
    %v609 = vpack.c.bf16 %v606, %v605
    %v610 = vpack.c.bf16 %v608, %v607
    %v611 = vpack.c.bf16 %v540, %v536
    %v612 = vpack.c.bf16 %v550, %v546
    %v613 = vpack.c.bf16 %v590, %v587
    %v614 = vpack.c.bf16 %v598, %v595
    %vm615 = vcmask 261120
    %v617 = vsel %vm615, %v609, 0
    %v620 = vsel %vm615, %v610, 0
    %v623 = vsel %vm615, %v611, 0
    %v626 = vsel %vm615, %v612, 0
    %628 = vmatprep.subr.bf16.mxu0 0
    %629 = vmatpush1.bf16.xpose.msra.mxu0 %v623
    %630 = vmatprep.subr.bf16.mxu0 0
    %631 = vmatpush1.bf16.xpose.msra.mxu0 %v626
    %632 = vmatprep.subr.bf16.mxu0 0
    %633 = vmatpush1.bf16.xpose.msra.mxu0 0
    %634 = vmatprep.subr.bf16.mxu0 0
    %635 = vmatpush1.bf16.xpose.msra.mxu0 0
    %636 = vmatprep.subr.bf16.mxu0 0
    %637 = vmatpush1.bf16.xpose.msra.mxu0 0
    %638 = vmatprep.subr.bf16.mxu0 0
    %639 = vmatpush1.bf16.xpose.msra.mxu0 0
    %640 = vmatprep.subr.bf16.mxu0 0
    %641 = vmatpush1.bf16.xpose.msra.mxu0 0
    %642 = vmatprep.subr.bf16.mxu0 0
    %643 = vmatpush1.bf16.xpose.msra.mxu0 0
    %644 = vmatprep.subr.bf16.mxu0 0
    %645 = vmatpush1.bf16.xpose.msra.mxu0 0
    %646 = vmatprep.subr.bf16.mxu0 0
    %647 = vmatpush1.bf16.xpose.msra.mxu0 0
    %648 = vmatprep.subr.bf16.mxu0 0
    %649 = vmatpush1.bf16.xpose.msra.mxu0 0
    %650 = vmatprep.subr.bf16.mxu0 0
    %651 = vmatpush1.bf16.xpose.msra.mxu0 0
    %652 = vmatprep.subr.bf16.mxu0 0
    %653 = vmatpush1.bf16.xpose.msra.mxu0 0
    %654 = vmatprep.subr.bf16.mxu0 0
    %655 = vmatpush1.bf16.xpose.msra.mxu0 0
    %656 = vmatprep.subr.bf16.mxu0 0
    %657 = vmatpush1.bf16.xpose.msra.mxu0 0
    %658 = vmatprep.subr.bf16.mxu0 0
    %659 = vmatpush1.bf16.xpose.msra.mxu0 0
    %660 = vmatprep.mubr.bf16.mxu0 0
    %661 = vmatmul.mubr.bf16.gmra.mrb[0].mxu0 %v617
    %v662 = vpop.f32.mrb[0].mxu0
    %v663 = vadd.f32 %v315, %v662
    %v664 = vpop.f32.mrb[0].mxu0
    %v665 = vpop.f32.mrb[0].mxu0
    %v666 = vadd.f32 %v316, %v665
    %v667 = vpop.f32.mrb[0].mxu0
    %668 = vmatprep.mubr.bf16.mxu0 0
    %669 = vmatmul.mubr.bf16.gmra.mrb[0].mxu0 %v620
    %v670 = vpop.f32.mrb[0].mxu0
    %v671 = vadd.f32 %v317, %v670
    %v672 = vpop.f32.mrb[0].mxu0
    %v673 = vpop.f32.mrb[0].mxu0
    %v674 = vadd.f32 %v318, %v673
    %v675 = vpop.f32.mrb[0].mxu0
    %676 = vdwg.mxu0
    %v677 = vsel %vm615, %v663, -inf
    %678 = vmax.xlane.f32.xlu0 %v677
    %v679 = vpop.xlane.xlu0 %678
    %v680 = vsel %vm615, %v666, -inf
    %681 = vmax.xlane.f32.xlu0 %v680
    %v682 = vpop.xlane.xlu0 %681
    %v683 = vsel %vm615, %v671, -inf
    %684 = vmax.xlane.f32.xlu0 %v683
    %v685 = vpop.xlane.xlu0 %684
    %v686 = vsel %vm615, %v674, -inf
    %687 = vmax.xlane.f32.xlu0 %v686
    %v688 = vpop.xlane.xlu0 %687
    %v689 = vsub.f32 %v663, %v679
    %v690 = vsub.f32 %v666, %v682
    %v691 = vsub.f32 %v671, %v685
    %v692 = vsub.f32 %v674, %v688
    %v693 = vmul.f32 %v689, 1.442695
    %v694 = vpow.pop %v693
    %v695 = vmul.f32 %v690, 1.442695
    %v696 = vpow.pop %v695
    %v697 = vmul.f32 %v691, 1.442695
    %v698 = vpow.pop %v697
    %v699 = vmul.f32 %v692, 1.442695
    %v700 = vpow.pop %v699
    %v701 = vsel %vm615, %v694, 0.0
    %702 = vadd.xlane.f32.xlu0 %v701
    %v703 = vpop.xlane.xlu0 %702
    %v704 = vsel %vm615, %v696, 0.0
    %705 = vadd.xlane.f32.xlu0 %v704
    %v706 = vpop.xlane.xlu0 %705
    %v707 = vsel %vm615, %v698, 0.0
    %708 = vadd.xlane.f32.xlu0 %v707
    %v709 = vpop.xlane.xlu0 %708
    %v710 = vsel %vm615, %v700, 0.0
    %711 = vadd.xlane.f32.xlu0 %v710
    %v712 = vpop.xlane.xlu0 %711
    %v713 = vrcp.pop %v703
    %v714 = vrcp.pop %v706
    %v715 = vrcp.pop %v709
    %v716 = vrcp.pop %v712
    %v717 = vmul.f32 %v694, %v713
    %v718 = vmul.f32 %v696, %v714
    %v719 = vmul.f32 %v698, %v715
    %v720 = vmul.f32 %v700, %v716
    %v721 = vpack.c.bf16 %v718, %v717
    %v722 = vpack.c.bf16 %v720, %v719
    %v724 = vsel %vm615, %v721, 0
    %v727 = vsel %vm615, %v722, 0
    %729 = vmatprep.subr.bf16.mxu0 0
    %730 = vmatpush1.bf16.msra.mxu0 %v613
    %731 = vmatprep.subr.bf16.mxu0 0
    %732 = vmatpush1.bf16.msra.mxu0 %v614
    %733 = vmatprep.subr.bf16.mxu0 0
    %734 = vmatpush1.bf16.msra.mxu0 0
    %735 = vmatprep.subr.bf16.mxu0 0
    %736 = vmatpush1.bf16.msra.mxu0 0
    %737 = vmatprep.subr.bf16.mxu0 0
    %738 = vmatpush1.bf16.msra.mxu0 0
    %739 = vmatprep.subr.bf16.mxu0 0
    %740 = vmatpush1.bf16.msra.mxu0 0
    %741 = vmatprep.subr.bf16.mxu0 0
    %742 = vmatpush1.bf16.msra.mxu0 0
    %743 = vmatprep.subr.bf16.mxu0 0
    %744 = vmatpush1.bf16.msra.mxu0 0
    %745 = vmatprep.subr.bf16.mxu0 0
    %746 = vmatpush1.bf16.msra.mxu0 0
    %747 = vmatprep.subr.bf16.mxu0 0
    %748 = vmatpush1.bf16.msra.mxu0 0
    %749 = vmatprep.subr.bf16.mxu0 0
    %750 = vmatpush1.bf16.msra.mxu0 0
    %751 = vmatprep.subr.bf16.mxu0 0
    %752 = vmatpush1.bf16.msra.mxu0 0
    %753 = vmatprep.subr.bf16.mxu0 0
    %754 = vmatpush1.bf16.msra.mxu0 0
    %755 = vmatprep.subr.bf16.mxu0 0
    %756 = vmatpush1.bf16.msra.mxu0 0
    %757 = vmatprep.subr.bf16.mxu0 0
    %758 = vmatpush1.bf16.msra.mxu0 0
    %759 = vmatprep.subr.bf16.mxu0 0
    %760 = vmatpush1.bf16.msra.mxu0 0
    %761 = vmatprep.mubr.bf16.mxu0 0
    %762 = vmatmul.mubr.bf16.gmra.mrb[0].mxu0 %v724
    %v763 = vpop.f32.mrb[0].mxu0
    %v764 = vadd.f32 0.0, %v763
    %v765 = vpop.f32.mrb[0].mxu0
    %v766 = vpop.f32.mrb[0].mxu0
    %v767 = vadd.f32 0.0, %v766
    %v768 = vpop.f32.mrb[0].mxu0
    %769 = vmatprep.mubr.bf16.mxu0 0
    %770 = vmatmul.mubr.bf16.gmra.mrb[0].mxu0 %v727
    %v771 = vpop.f32.mrb[0].mxu0
    %v772 = vadd.f32 0.0, %v771
    %v773 = vpop.f32.mrb[0].mxu0
    %v774 = vpop.f32.mrb[0].mxu0
    %v775 = vadd.f32 0.0, %v774
    %v776 = vpop.f32.mrb[0].mxu0
    %777 = vdwg.mxu0
    %780 = vrot.lane.b32.xlu0 %v609, 96
    %v781 = vpop.permute.xlu0 %780
    %782 = vrot.lane.b32.xlu0 %v610, 96
    %v783 = vpop.permute.xlu0 %782
    %786 = vrot.lane.b32.xlu0 %v611, 96
    %v787 = vpop.permute.xlu0 %786
    %788 = vrot.lane.b32.xlu0 %v612, 96
    %v789 = vpop.permute.xlu0 %788
    %v791 = vsel %vm615, %v781, 0
    %v794 = vsel %vm615, %v783, 0
    %v797 = vsel %vm615, %v787, 0
    %v800 = vsel %vm615, %v789, 0
    %802 = vmatprep.subr.bf16.mxu0 0
    %803 = vmatpush1.bf16.xpose.msra.mxu0 %v797
    %804 = vmatprep.subr.bf16.mxu0 0
    %805 = vmatpush1.bf16.xpose.msra.mxu0 %v800
    %806 = vmatprep.subr.bf16.mxu0 0
    %807 = vmatpush1.bf16.xpose.msra.mxu0 0
    %808 = vmatprep.subr.bf16.mxu0 0
    %809 = vmatpush1.bf16.xpose.msra.mxu0 0
    %810 = vmatprep.subr.bf16.mxu0 0
    %811 = vmatpush1.bf16.xpose.msra.mxu0 0
    %812 = vmatprep.subr.bf16.mxu0 0
    %813 = vmatpush1.bf16.xpose.msra.mxu0 0
    %814 = vmatprep.subr.bf16.mxu0 0
    %815 = vmatpush1.bf16.xpose.msra.mxu0 0
    %816 = vmatprep.subr.bf16.mxu0 0
    %817 = vmatpush1.bf16.xpose.msra.mxu0 0
    %818 = vmatprep.subr.bf16.mxu0 0
    %819 = vmatpush1.bf16.xpose.msra.mxu0 0
    %820 = vmatprep.subr.bf16.mxu0 0
    %821 = vmatpush1.bf16.xpose.msra.mxu0 0
    %822 = vmatprep.subr.bf16.mxu0 0
    %823 = vmatpush1.bf16.xpose.msra.mxu0 0
    %824 = vmatprep.subr.bf16.mxu0 0
    %825 = vmatpush1.bf16.xpose.msra.mxu0 0
    %826 = vmatprep.subr.bf16.mxu0 0
    %827 = vmatpush1.bf16.xpose.msra.mxu0 0
    %828 = vmatprep.subr.bf16.mxu0 0
    %829 = vmatpush1.bf16.xpose.msra.mxu0 0
    %830 = vmatprep.subr.bf16.mxu0 0
    %831 = vmatpush1.bf16.xpose.msra.mxu0 0
    %832 = vmatprep.subr.bf16.mxu0 0
    %833 = vmatpush1.bf16.xpose.msra.mxu0 0
    %834 = vmatprep.mubr.bf16.mxu0 0
    %835 = vmatmul.mubr.bf16.gmra.mrb[0].mxu0 %v791
    %v836 = vpop.f32.mrb[0].mxu0
    %v837 = vadd.f32 %v315, %v836
    %v838 = vpop.f32.mrb[0].mxu0
    %v839 = vpop.f32.mrb[0].mxu0
    %v840 = vadd.f32 %v316, %v839
    %v841 = vpop.f32.mrb[0].mxu0
    %842 = vmatprep.mubr.bf16.mxu0 0
    %843 = vmatmul.mubr.bf16.gmra.mrb[0].mxu0 %v794
    %v844 = vpop.f32.mrb[0].mxu0
    %v845 = vadd.f32 %v317, %v844
    %v846 = vpop.f32.mrb[0].mxu0
    %v847 = vpop.f32.mrb[0].mxu0
    %v848 = vadd.f32 %v318, %v847
    %v849 = vpop.f32.mrb[0].mxu0
    %850 = vdwg.mxu0
    %v851 = vsel %vm615, %v837, -inf
    %852 = vmax.xlane.f32.xlu0 %v851
    %v853 = vpop.xlane.xlu0 %852
    %v854 = vsel %vm615, %v840, -inf
    %855 = vmax.xlane.f32.xlu0 %v854
    %v856 = vpop.xlane.xlu0 %855
    %v857 = vsel %vm615, %v845, -inf
    %858 = vmax.xlane.f32.xlu0 %v857
    %v859 = vpop.xlane.xlu0 %858
    %v860 = vsel %vm615, %v848, -inf
    %861 = vmax.xlane.f32.xlu0 %v860
    %v862 = vpop.xlane.xlu0 %861
    %v863 = vsub.f32 %v837, %v853
    %v864 = vsub.f32 %v840, %v856
    %v865 = vsub.f32 %v845, %v859
    %v866 = vsub.f32 %v848, %v862
    %v867 = vmul.f32 %v863, 1.442695
    %v868 = vpow.pop %v867
    %v869 = vmul.f32 %v864, 1.442695
    %v870 = vpow.pop %v869
    %v871 = vmul.f32 %v865, 1.442695
    %v872 = vpow.pop %v871
    %v873 = vmul.f32 %v866, 1.442695
    %v874 = vpow.pop %v873
    %v875 = vsel %vm615, %v868, 0.0
    %876 = vadd.xlane.f32.xlu0 %v875
    %v877 = vpop.xlane.xlu0 %876
    %v878 = vsel %vm615, %v870, 0.0
    %879 = vadd.xlane.f32.xlu0 %v878
    %v880 = vpop.xlane.xlu0 %879
    %v881 = vsel %vm615, %v872, 0.0
    %882 = vadd.xlane.f32.xlu0 %v881
    %v883 = vpop.xlane.xlu0 %882
    %v884 = vsel %vm615, %v874, 0.0
    %885 = vadd.xlane.f32.xlu0 %v884
    %v886 = vpop.xlane.xlu0 %885
    %v887 = vrcp.pop %v877
    %v888 = vrcp.pop %v880
    %v889 = vrcp.pop %v883
    %v890 = vrcp.pop %v886
    %v891 = vmul.f32 %v868, %v887
    %v892 = vmul.f32 %v870, %v888
    %v893 = vmul.f32 %v872, %v889
    %v894 = vmul.f32 %v874, %v890
    %v895 = vpack.c.bf16 %v892, %v891
    %v896 = vpack.c.bf16 %v894, %v893
    %899 = vrot.lane.b32.xlu0 %v613, 96
    %v900 = vpop.permute.xlu0 %899
    %901 = vrot.lane.b32.xlu0 %v614, 96
    %v902 = vpop.permute.xlu0 %901
    %v906 = vsel %vm615, %v895, 0
    %v909 = vsel %vm615, %v896, 0
    %911 = vmatprep.subr.bf16.mxu0 0
    %912 = vmatpush1.bf16.msra.mxu0 %v900
    %913 = vmatprep.subr.bf16.mxu0 0
    %914 = vmatpush1.bf16.msra.mxu0 %v902
    %915 = vmatprep.subr.bf16.mxu0 0
    %916 = vmatpush1.bf16.msra.mxu0 0
    %917 = vmatprep.subr.bf16.mxu0 0
    %918 = vmatpush1.bf16.msra.mxu0 0
    %919 = vmatprep.subr.bf16.mxu0 0
    %920 = vmatpush1.bf16.msra.mxu0 0
    %921 = vmatprep.subr.bf16.mxu0 0
    %922 = vmatpush1.bf16.msra.mxu0 0
    %923 = vmatprep.subr.bf16.mxu0 0
    %924 = vmatpush1.bf16.msra.mxu0 0
    %925 = vmatprep.subr.bf16.mxu0 0
    %926 = vmatpush1.bf16.msra.mxu0 0
    %927 = vmatprep.subr.bf16.mxu0 0
    %928 = vmatpush1.bf16.msra.mxu0 0
    %929 = vmatprep.subr.bf16.mxu0 0
    %930 = vmatpush1.bf16.msra.mxu0 0
    %931 = vmatprep.subr.bf16.mxu0 0
    %932 = vmatpush1.bf16.msra.mxu0 0
    %933 = vmatprep.subr.bf16.mxu0 0
    %934 = vmatpush1.bf16.msra.mxu0 0
    %935 = vmatprep.subr.bf16.mxu0 0
    %936 = vmatpush1.bf16.msra.mxu0 0
    %937 = vmatprep.subr.bf16.mxu0 0
    %938 = vmatpush1.bf16.msra.mxu0 0
    %939 = vmatprep.subr.bf16.mxu0 0
    %940 = vmatpush1.bf16.msra.mxu0 0
    %941 = vmatprep.subr.bf16.mxu0 0
    %942 = vmatpush1.bf16.msra.mxu0 0
    %943 = vmatprep.mubr.bf16.mxu0 0
    %944 = vmatmul.mubr.bf16.gmra.mrb[0].mxu0 %v906
    %v945 = vpop.f32.mrb[0].mxu0
    %v946 = vadd.f32 0.0, %v945
    %v947 = vpop.f32.mrb[0].mxu0
    %v948 = vpop.f32.mrb[0].mxu0
    %v949 = vadd.f32 0.0, %v948
    %v950 = vpop.f32.mrb[0].mxu0
    %951 = vmatprep.mubr.bf16.mxu0 0
    %952 = vmatmul.mubr.bf16.gmra.mrb[0].mxu0 %v909
    %v953 = vpop.f32.mrb[0].mxu0
    %v954 = vadd.f32 0.0, %v953
    %v955 = vpop.f32.mrb[0].mxu0
    %v956 = vpop.f32.mrb[0].mxu0
    %v957 = vadd.f32 0.0, %v956
    %v958 = vpop.f32.mrb[0].mxu0
    %959 = vdwg.mxu0
    %960 = vrot.lane.b32.xlu0 %v609, 64
    %v961 = vpop.permute.xlu0 %960
    %962 = vrot.lane.b32.xlu0 %v610, 64
    %v963 = vpop.permute.xlu0 %962
    %964 = vrot.lane.b32.xlu0 %v611, 64
    %v965 = vpop.permute.xlu0 %964
    %966 = vrot.lane.b32.xlu0 %v612, 64
    %v967 = vpop.permute.xlu0 %966
    %v969 = vsel %vm615, %v961, 0
    %v972 = vsel %vm615, %v963, 0
    %v975 = vsel %vm615, %v965, 0
    %v978 = vsel %vm615, %v967, 0
    %980 = vmatprep.subr.bf16.mxu0 0
    %981 = vmatpush1.bf16.xpose.msra.mxu0 %v975
    %982 = vmatprep.subr.bf16.mxu0 0
    %983 = vmatpush1.bf16.xpose.msra.mxu0 %v978
    %984 = vmatprep.subr.bf16.mxu0 0
    %985 = vmatpush1.bf16.xpose.msra.mxu0 0
    %986 = vmatprep.subr.bf16.mxu0 0
    %987 = vmatpush1.bf16.xpose.msra.mxu0 0
    %988 = vmatprep.subr.bf16.mxu0 0
    %989 = vmatpush1.bf16.xpose.msra.mxu0 0
    %990 = vmatprep.subr.bf16.mxu0 0
    %991 = vmatpush1.bf16.xpose.msra.mxu0 0
    %992 = vmatprep.subr.bf16.mxu0 0
    %993 = vmatpush1.bf16.xpose.msra.mxu0 0
    %994 = vmatprep.subr.bf16.mxu0 0
    %995 = vmatpush1.bf16.xpose.msra.mxu0 0
    %996 = vmatprep.subr.bf16.mxu0 0
    %997 = vmatpush1.bf16.xpose.msra.mxu0 0
    %998 = vmatprep.subr.bf16.mxu0 0
    %999 = vmatpush1.bf16.xpose.msra.mxu0 0
    %1000 = vmatprep.subr.bf16.mxu0 0
    %1001 = vmatpush1.bf16.xpose.msra.mxu0 0
    %1002 = vmatprep.subr.bf16.mxu0 0
    %1003 = vmatpush1.bf16.xpose.msra.mxu0 0
    %1004 = vmatprep.subr.bf16.mxu0 0
    %1005 = vmatpush1.bf16.xpose.msra.mxu0 0
    %1006 = vmatprep.subr.bf16.mxu0 0
    %1007 = vmatpush1.bf16.xpose.msra.mxu0 0
    %1008 = vmatprep.subr.bf16.mxu0 0
    %1009 = vmatpush1.bf16.xpose.msra.mxu0 0
    %1010 = vmatprep.subr.bf16.mxu0 0
    %1011 = vmatpush1.bf16.xpose.msra.mxu0 0
    %1012 = vmatprep.mubr.bf16.mxu0 0
    %1013 = vmatmul.mubr.bf16.gmra.mrb[0].mxu0 %v969
    %v1014 = vpop.f32.mrb[0].mxu0
    %v1015 = vadd.f32 %v315, %v1014
    %v1016 = vpop.f32.mrb[0].mxu0
    %v1017 = vpop.f32.mrb[0].mxu0
    %v1018 = vadd.f32 %v316, %v1017
    %v1019 = vpop.f32.mrb[0].mxu0
    %1020 = vmatprep.mubr.bf16.mxu0 0
    %1021 = vmatmul.mubr.bf16.gmra.mrb[0].mxu0 %v972
    %v1022 = vpop.f32.mrb[0].mxu0
    %v1023 = vadd.f32 %v317, %v1022
    %v1024 = vpop.f32.mrb[0].mxu0
    %v1025 = vpop.f32.mrb[0].mxu0
    %v1026 = vadd.f32 %v318, %v1025
    %v1027 = vpop.f32.mrb[0].mxu0
    %1028 = vdwg.mxu0
    %v1029 = vsel %vm615, %v1015, -inf
    %1030 = vmax.xlane.f32.xlu0 %v1029
    %v1031 = vpop.xlane.xlu0 %1030
    %v1032 = vsel %vm615, %v1018, -inf
    %1033 = vmax.xlane.f32.xlu0 %v1032
    %v1034 = vpop.xlane.xlu0 %1033
    %v1035 = vsel %vm615, %v1023, -inf
    %1036 = vmax.xlane.f32.xlu0 %v1035
    %v1037 = vpop.xlane.xlu0 %1036
    %v1038 = vsel %vm615, %v1026, -inf
    %1039 = vmax.xlane.f32.xlu0 %v1038
    %v1040 = vpop.xlane.xlu0 %1039
    %v1041 = vsub.f32 %v1015, %v1031
    %v1042 = vsub.f32 %v1018, %v1034
    %v1043 = vsub.f32 %v1023, %v1037
    %v1044 = vsub.f32 %v1026, %v1040
    %v1045 = vmul.f32 %v1041, 1.442695
    %v1046 = vpow.pop %v1045
    %v1047 = vmul.f32 %v1042, 1.442695
    %v1048 = vpow.pop %v1047
    %v1049 = vmul.f32 %v1043, 1.442695
    %v1050 = vpow.pop %v1049
    %v1051 = vmul.f32 %v1044, 1.442695
    %v1052 = vpow.pop %v1051
    %v1053 = vsel %vm615, %v1046, 0.0
    %1054 = vadd.xlane.f32.xlu0 %v1053
    %v1055 = vpop.xlane.xlu0 %1054
    %v1056 = vsel %vm615, %v1048, 0.0
    %1057 = vadd.xlane.f32.xlu0 %v1056
    %v1058 = vpop.xlane.xlu0 %1057
    %v1059 = vsel %vm615, %v1050, 0.0
    %1060 = vadd.xlane.f32.xlu0 %v1059
    %v1061 = vpop.xlane.xlu0 %1060
    %v1062 = vsel %vm615, %v1052, 0.0
    %1063 = vadd.xlane.f32.xlu0 %v1062
    %v1064 = vpop.xlane.xlu0 %1063
    %v1065 = vrcp.pop %v1055
    %v1066 = vrcp.pop %v1058
    %v1067 = vrcp.pop %v1061
    %v1068 = vrcp.pop %v1064
    %v1069 = vmul.f32 %v1046, %v1065
    %v1070 = vmul.f32 %v1048, %v1066
    %v1071 = vmul.f32 %v1050, %v1067
    %v1072 = vmul.f32 %v1052, %v1068
    %v1073 = vpack.c.bf16 %v1070, %v1069
    %v1074 = vpack.c.bf16 %v1072, %v1071
    %1075 = vrot.lane.b32.xlu0 %v613, 64
    %v1076 = vpop.permute.xlu0 %1075
    %1077 = vrot.lane.b32.xlu0 %v614, 64
    %v1078 = vpop.permute.xlu0 %1077
    %v1082 = vsel %vm615, %v1073, 0
    %v1085 = vsel %vm615, %v1074, 0
    %1087 = vmatprep.subr.bf16.mxu0 0
    %1088 = vmatpush1.bf16.msra.mxu0 %v1076
    %1089 = vmatprep.subr.bf16.mxu0 0
    %1090 = vmatpush1.bf16.msra.mxu0 %v1078
    %1091 = vmatprep.subr.bf16.mxu0 0
    %1092 = vmatpush1.bf16.msra.mxu0 0
    %1093 = vmatprep.subr.bf16.mxu0 0
    %1094 = vmatpush1.bf16.msra.mxu0 0
    %1095 = vmatprep.subr.bf16.mxu0 0
    %1096 = vmatpush1.bf16.msra.mxu0 0
    %1097 = vmatprep.subr.bf16.mxu0 0
    %1098 = vmatpush1.bf16.msra.mxu0 0
    %1099 = vmatprep.subr.bf16.mxu0 0
    %1100 = vmatpush1.bf16.msra.mxu0 0
    %1101 = vmatprep.subr.bf16.mxu0 0
    %1102 = vmatpush1.bf16.msra.mxu0 0
    %1103 = vmatprep.subr.bf16.mxu0 0
    %1104 = vmatpush1.bf16.msra.mxu0 0
    %1105 = vmatprep.subr.bf16.mxu0 0
    %1106 = vmatpush1.bf16.msra.mxu0 0
    %1107 = vmatprep.subr.bf16.mxu0 0
    %1108 = vmatpush1.bf16.msra.mxu0 0
    %1109 = vmatprep.subr.bf16.mxu0 0
    %1110 = vmatpush1.bf16.msra.mxu0 0
    %1111 = vmatprep.subr.bf16.mxu0 0
    %1112 = vmatpush1.bf16.msra.mxu0 0
    %1113 = vmatprep.subr.bf16.mxu0 0
    %1114 = vmatpush1.bf16.msra.mxu0 0
    %1115 = vmatprep.subr.bf16.mxu0 0
    %1116 = vmatpush1.bf16.msra.mxu0 0
    %1117 = vmatprep.subr.bf16.mxu0 0
    %1118 = vmatpush1.bf16.msra.mxu0 0
    %1119 = vmatprep.mubr.bf16.mxu0 0
    %1120 = vmatmul.mubr.bf16.gmra.mrb[0].mxu0 %v1082
    %v1121 = vpop.f32.mrb[0].mxu0
    %v1122 = vadd.f32 0.0, %v1121
    %v1123 = vpop.f32.mrb[0].mxu0
    %v1124 = vpop.f32.mrb[0].mxu0
    %v1125 = vadd.f32 0.0, %v1124
    %v1126 = vpop.f32.mrb[0].mxu0
    %1127 = vmatprep.mubr.bf16.mxu0 0
    %1128 = vmatmul.mubr.bf16.gmra.mrb[0].mxu0 %v1085
    %v1129 = vpop.f32.mrb[0].mxu0
    %v1130 = vadd.f32 0.0, %v1129
    %v1131 = vpop.f32.mrb[0].mxu0
    %v1132 = vpop.f32.mrb[0].mxu0
    %v1133 = vadd.f32 0.0, %v1132
    %v1134 = vpop.f32.mrb[0].mxu0
    %1135 = vdwg.mxu0
    %1136 = vrot.lane.b32.xlu0 %v609, 32
    %v1137 = vpop.permute.xlu0 %1136
    %1138 = vrot.lane.b32.xlu0 %v610, 32
    %v1139 = vpop.permute.xlu0 %1138
    %1140 = vrot.lane.b32.xlu0 %v611, 32
    %v1141 = vpop.permute.xlu0 %1140
    %1142 = vrot.lane.b32.xlu0 %v612, 32
    %v1143 = vpop.permute.xlu0 %1142
    %v1145 = vsel %vm615, %v1137, 0
    %v1148 = vsel %vm615, %v1139, 0
    %v1151 = vsel %vm615, %v1141, 0
    %v1154 = vsel %vm615, %v1143, 0
    %1156 = vmatprep.subr.bf16.mxu0 0
    %1157 = vmatpush1.bf16.xpose.msra.mxu0 %v1151
    %1158 = vmatprep.subr.bf16.mxu0 0
    %1159 = vmatpush1.bf16.xpose.msra.mxu0 %v1154
    %1160 = vmatprep.subr.bf16.mxu0 0
    %1161 = vmatpush1.bf16.xpose.msra.mxu0 0
    %1162 = vmatprep.subr.bf16.mxu0 0
    %1163 = vmatpush1.bf16.xpose.msra.mxu0 0
    %1164 = vmatprep.subr.bf16.mxu0 0
    %1165 = vmatpush1.bf16.xpose.msra.mxu0 0
    %1166 = vmatprep.subr.bf16.mxu0 0
    %1167 = vmatpush1.bf16.xpose.msra.mxu0 0
    %1168 = vmatprep.subr.bf16.mxu0 0
    %1169 = vmatpush1.bf16.xpose.msra.mxu0 0
    %1170 = vmatprep.subr.bf16.mxu0 0
    %1171 = vmatpush1.bf16.xpose.msra.mxu0 0
    %1172 = vmatprep.subr.bf16.mxu0 0
    %1173 = vmatpush1.bf16.xpose.msra.mxu0 0
    %1174 = vmatprep.subr.bf16.mxu0 0
    %1175 = vmatpush1.bf16.xpose.msra.mxu0 0
    %1176 = vmatprep.subr.bf16.mxu0 0
    %1177 = vmatpush1.bf16.xpose.msra.mxu0 0
    %1178 = vmatprep.subr.bf16.mxu0 0
    %1179 = vmatpush1.bf16.xpose.msra.mxu0 0
    %1180 = vmatprep.subr.bf16.mxu0 0
    %1181 = vmatpush1.bf16.xpose.msra.mxu0 0
    %1182 = vmatprep.subr.bf16.mxu0 0
    %1183 = vmatpush1.bf16.xpose.msra.mxu0 0
    %1184 = vmatprep.subr.bf16.mxu0 0
    %1185 = vmatpush1.bf16.xpose.msra.mxu0 0
    %1186 = vmatprep.subr.bf16.mxu0 0
    %1187 = vmatpush1.bf16.xpose.msra.mxu0 0
    %1188 = vmatprep.mubr.bf16.mxu0 0
    %1189 = vmatmul.mubr.bf16.gmra.mrb[0].mxu0 %v1145
    %v1190 = vpop.f32.mrb[0].mxu0
    %v1191 = vadd.f32 %v315, %v1190
    %v1192 = vpop.f32.mrb[0].mxu0
    %v1193 = vpop.f32.mrb[0].mxu0
    %v1194 = vadd.f32 %v316, %v1193
    %v1195 = vpop.f32.mrb[0].mxu0
    %1196 = vmatprep.mubr.bf16.mxu0 0
    %1197 = vmatmul.mubr.bf16.gmra.mrb[0].mxu0 %v1148
    %v1198 = vpop.f32.mrb[0].mxu0
    %v1199 = vadd.f32 %v317, %v1198
    %v1200 = vpop.f32.mrb[0].mxu0
    %v1201 = vpop.f32.mrb[0].mxu0
    %v1202 = vadd.f32 %v318, %v1201
    %v1203 = vpop.f32.mrb[0].mxu0
    %1204 = vdwg.mxu0
    %v1205 = vsel %vm615, %v1191, -inf
    %1206 = vmax.xlane.f32.xlu0 %v1205
    %v1207 = vpop.xlane.xlu0 %1206
    %v1208 = vsel %vm615, %v1194, -inf
    %1209 = vmax.xlane.f32.xlu0 %v1208
    %v1210 = vpop.xlane.xlu0 %1209
    %v1211 = vsel %vm615, %v1199, -inf
    %1212 = vmax.xlane.f32.xlu0 %v1211
    %v1213 = vpop.xlane.xlu0 %1212
    %v1214 = vsel %vm615, %v1202, -inf
    %1215 = vmax.xlane.f32.xlu0 %v1214
    %v1216 = vpop.xlane.xlu0 %1215
    %v1217 = vsub.f32 %v1191, %v1207
    %v1218 = vsub.f32 %v1194, %v1210
    %v1219 = vsub.f32 %v1199, %v1213
    %v1220 = vsub.f32 %v1202, %v1216
    %v1221 = vmul.f32 %v1217, 1.442695
    %v1222 = vpow.pop %v1221
    %v1223 = vmul.f32 %v1218, 1.442695
    %v1224 = vpow.pop %v1223
    %v1225 = vmul.f32 %v1219, 1.442695
    %v1226 = vpow.pop %v1225
    %v1227 = vmul.f32 %v1220, 1.442695
    %v1228 = vpow.pop %v1227
    %v1229 = vsel %vm615, %v1222, 0.0
    %1230 = vadd.xlane.f32.xlu0 %v1229
    %v1231 = vpop.xlane.xlu0 %1230
    %v1232 = vsel %vm615, %v1224, 0.0
    %1233 = vadd.xlane.f32.xlu0 %v1232
    %v1234 = vpop.xlane.xlu0 %1233
    %v1235 = vsel %vm615, %v1226, 0.0
    %1236 = vadd.xlane.f32.xlu0 %v1235
    %v1237 = vpop.xlane.xlu0 %1236
    %v1238 = vsel %vm615, %v1228, 0.0
    %1239 = vadd.xlane.f32.xlu0 %v1238
    %v1240 = vpop.xlane.xlu0 %1239
    %v1241 = vrcp.pop %v1231
    %v1242 = vrcp.pop %v1234
    %v1243 = vrcp.pop %v1237
    %v1244 = vrcp.pop %v1240
    %v1245 = vmul.f32 %v1222, %v1241
    %v1246 = vmul.f32 %v1224, %v1242
    %v1247 = vmul.f32 %v1226, %v1243
    %v1248 = vmul.f32 %v1228, %v1244
    %v1249 = vpack.c.bf16 %v1246, %v1245
    %v1250 = vpack.c.bf16 %v1248, %v1247
    %1251 = vrot.lane.b32.xlu0 %v613, 32
    %v1252 = vpop.permute.xlu0 %1251
    %1253 = vrot.lane.b32.xlu0 %v614, 32
    %v1254 = vpop.permute.xlu0 %1253
    %v1258 = vsel %vm615, %v1249, 0
    %v1261 = vsel %vm615, %v1250, 0
    %1263 = vmatprep.subr.bf16.mxu0 0
    %1264 = vmatpush1.bf16.msra.mxu0 %v1252
    %1265 = vmatprep.subr.bf16.mxu0 0
    %1266 = vmatpush1.bf16.msra.mxu0 %v1254
    %1267 = vmatprep.subr.bf16.mxu0 0
    %1268 = vmatpush1.bf16.msra.mxu0 0
    %1269 = vmatprep.subr.bf16.mxu0 0
    %1270 = vmatpush1.bf16.msra.mxu0 0
    %1271 = vmatprep.subr.bf16.mxu0 0
    %1272 = vmatpush1.bf16.msra.mxu0 0
    %1273 = vmatprep.subr.bf16.mxu0 0
    %1274 = vmatpush1.bf16.msra.mxu0 0
    %1275 = vmatprep.subr.bf16.mxu0 0
    %1276 = vmatpush1.bf16.msra.mxu0 0
    %1277 = vmatprep.subr.bf16.mxu0 0
    %1278 = vmatpush1.bf16.msra.mxu0 0
    %1279 = vmatprep.subr.bf16.mxu0 0
    %1280 = vmatpush1.bf16.msra.mxu0 0
    %1281 = vmatprep.subr.bf16.mxu0 0
    %1282 = vmatpush1.bf16.msra.mxu0 0
    %1283 = vmatprep.subr.bf16.mxu0 0
    %1284 = vmatpush1.bf16.msra.mxu0 0
    %1285 = vmatprep.subr.bf16.mxu0 0
    %1286 = vmatpush1.bf16.msra.mxu0 0
    %1287 = vmatprep.subr.bf16.mxu0 0
    %1288 = vmatpush1.bf16.msra.mxu0 0
    %1289 = vmatprep.subr.bf16.mxu0 0
    %1290 = vmatpush1.bf16.msra.mxu0 0
    %1291 = vmatprep.subr.bf16.mxu0 0
    %1292 = vmatpush1.bf16.msra.mxu0 0
    %1293 = vmatprep.subr.bf16.mxu0 0
    %1294 = vmatpush1.bf16.msra.mxu0 0
    %1295 = vmatprep.mubr.bf16.mxu0 0
    %1296 = vmatmul.mubr.bf16.gmra.mrb[0].mxu0 %v1258
    %v1297 = vpop.f32.mrb[0].mxu0
    %v1298 = vadd.f32 0.0, %v1297
    %v1299 = vpop.f32.mrb[0].mxu0
    %v1300 = vpop.f32.mrb[0].mxu0
    %v1301 = vadd.f32 0.0, %v1300
    %v1302 = vpop.f32.mrb[0].mxu0
    %1303 = vmatprep.mubr.bf16.mxu0 0
    %1304 = vmatmul.mubr.bf16.gmra.mrb[0].mxu0 %v1261
    %v1305 = vpop.f32.mrb[0].mxu0
    %v1306 = vadd.f32 0.0, %v1305
    %v1307 = vpop.f32.mrb[0].mxu0
    %v1308 = vpop.f32.mrb[0].mxu0
    %v1309 = vadd.f32 0.0, %v1308
    %v1310 = vpop.f32.mrb[0].mxu0
    %1311 = vdwg.mxu0
    %1316 = vrot.lane.b32.xlu0 %v946, 32
    %v1317 = vpop.permute.xlu0 %1316
    %1318 = vrot.lane.b32.xlu0 %v949, 32
    %v1319 = vpop.permute.xlu0 %1318
    %1320 = vrot.lane.b32.xlu0 %v954, 32
    %v1321 = vpop.permute.xlu0 %1320
    %1322 = vrot.lane.b32.xlu0 %v957, 32
    %v1323 = vpop.permute.xlu0 %1322
    %1332 = vrot.lane.b32.xlu0 %v1122, 64
    %v1333 = vpop.permute.xlu0 %1332
    %1334 = vrot.lane.b32.xlu0 %v1125, 64
    %v1335 = vpop.permute.xlu0 %1334
    %1336 = vrot.lane.b32.xlu0 %v1130, 64
    %v1337 = vpop.permute.xlu0 %1336
    %1338 = vrot.lane.b32.xlu0 %v1133, 64
    %v1339 = vpop.permute.xlu0 %1338
    %1348 = vrot.lane.b32.xlu0 %v1298, 96
    %v1349 = vpop.permute.xlu0 %1348
    %1350 = vrot.lane.b32.xlu0 %v1301, 96
    %v1351 = vpop.permute.xlu0 %1350
    %1352 = vrot.lane.b32.xlu0 %v1306, 96
    %v1353 = vpop.permute.xlu0 %1352
    %1354 = vrot.lane.b32.xlu0 %v1309, 96
    %v1355 = vpop.permute.xlu0 %1354
    %v1360 = vsel %vm615, %v764, %v1317
    %v1361 = vsel %vm615, %v767, %v1319
    %v1362 = vsel %vm615, %v772, %v1321
    %v1363 = vsel %vm615, %v775, %v1323
    %vm1364 = vcmask 523264
    %v1365 = vsel %vm1364, %v1360, %v1333
    %v1366 = vsel %vm1364, %v1361, %v1335
    %v1367 = vsel %vm1364, %v1362, %v1337
    %v1368 = vsel %vm1364, %v1363, %v1339
    %vm1369 = vcmask 785408
    %v1370 = vsel %vm1369, %v1365, %v1349
    %v1371 = vsel %vm1369, %v1366, %v1351
    %v1372 = vsel %vm1369, %v1367, %v1353
    %v1373 = vsel %vm1369, %v1368, %v1355
    %v1374 = vpack.c.bf16 %v1371, %v1370
    %v1375 = vpack.c.bf16 %v1373, %v1372
    %v1376 = vunpack.c.h.b16 %v320
    %v1377 = vunpack.c.h.b16 %v323
    %v1378 = vunpack.c.h.b16 %v326
    %v1379 = vunpack.c.h.b16 %v329
    %v1380 = vunpack.c.h.b16 %v332
    %v1381 = vunpack.c.h.b16 %v335
    %v1382 = vunpack.c.h.b16 %v338
    %v1383 = vunpack.c.h.b16 %v341
    %v1384 = vunpack.c.h.b16 %v344
    %v1385 = vunpack.c.h.b16 %v347
    %v1386 = vunpack.c.h.b16 %v350
    %v1387 = vunpack.c.h.b16 %v353
    %v1388 = vunpack.c.h.b16 %v356
    %v1389 = vunpack.c.h.b16 %v359
    %v1390 = vunpack.c.h.b16 %v362
    %v1391 = vunpack.c.h.b16 %v365
    %v1392 = vpack.c.b16 %v1377, %v1376
    %v1393 = vpack.c.b16 %v1379, %v1378
    %v1394 = vpack.c.b16 %v1381, %v1380
    %v1395 = vpack.c.b16 %v1383, %v1382
    %v1396 = vpack.c.b16 %v1385, %v1384
    %v1397 = vpack.c.b16 %v1387, %v1386
    %v1398 = vpack.c.b16 %v1389, %v1388
    %v1399 = vpack.c.b16 %v1391, %v1390
    %1408 = vmatprep.subr.bf16.mxu0 0
    %1409 = vmatpush1.bf16.msra.mxu0 %v1392
    %1410 = vmatprep.subr.bf16.mxu0 0
    %1411 = vmatpush1.bf16.msra.mxu0 %v1393
    %1412 = vmatprep.subr.bf16.mxu0 0
    %1413 = vmatpush1.bf16.msra.mxu0 %v1394
    %1414 = vmatprep.subr.bf16.mxu0 0
    %1415 = vmatpush1.bf16.msra.mxu0 %v1395
    %1416 = vmatprep.subr.bf16.mxu0 0
    %1417 = vmatpush1.bf16.msra.mxu0 %v1396
    %1418 = vmatprep.subr.bf16.mxu0 0
    %1419 = vmatpush1.bf16.msra.mxu0 %v1397
    %1420 = vmatprep.subr.bf16.mxu0 0
    %1421 = vmatpush1.bf16.msra.mxu0 %v1398
    %1422 = vmatprep.subr.bf16.mxu0 0
    %1423 = vmatpush1.bf16.msra.mxu0 %v1399
    %1424 = vmatprep.subr.bf16.mxu0 0
    %1425 = vmatpush1.bf16.msra.mxu0 0
    %1426 = vmatprep.subr.bf16.mxu0 0
    %1427 = vmatpush1.bf16.msra.mxu0 0
    %1428 = vmatprep.subr.bf16.mxu0 0
    %1429 = vmatpush1.bf16.msra.mxu0 0
    %1430 = vmatprep.subr.bf16.mxu0 0
    %1431 = vmatpush1.bf16.msra.mxu0 0
    %1432 = vmatprep.subr.bf16.mxu0 0
    %1433 = vmatpush1.bf16.msra.mxu0 0
    %1434 = vmatprep.subr.bf16.mxu0 0
    %1435 = vmatpush1.bf16.msra.mxu0 0
    %1436 = vmatprep.subr.bf16.mxu0 0
    %1437 = vmatpush1.bf16.msra.mxu0 0
    %1438 = vmatprep.subr.bf16.mxu0 0
    %1439 = vmatpush1.bf16.msra.mxu0 0
    %1440 = vmatprep.mubr.bf16.mxu0 0
    %1441 = vmatmul.mubr.bf16.gmra.mrb[0].mxu0 %v1374
    %v1442 = vpop.f32.mrb[0].mxu0
    %v1443 = vadd.f32 0.0, %v1442
    %v1444 = vpop.f32.mrb[0].mxu0
    %v1445 = vpop.f32.mrb[0].mxu0
    %v1446 = vadd.f32 0.0, %v1445
    %v1447 = vpop.f32.mrb[0].mxu0
    %1448 = vmatprep.mubr.bf16.mxu0 0
    %1449 = vmatmul.mubr.bf16.gmra.mrb[0].mxu0 %v1375
    %v1450 = vpop.f32.mrb[0].mxu0
    %v1451 = vadd.f32 0.0, %v1450
    %v1452 = vpop.f32.mrb[0].mxu0
    %v1453 = vpop.f32.mrb[0].mxu0
    %v1454 = vadd.f32 0.0, %v1453
    %v1455 = vpop.f32.mrb[0].mxu0
    %1456 = vdwg.mxu0
    %v1457 = vadd.f32 %v301, %v1443
    %v1458 = vadd.f32 %v304, %v1446
    %v1459 = vadd.f32 %v309, %v1451
    %v1460 = vadd.f32 %v312, %v1454
    %1461 = vadd.xlane.f32.xlu0 %v1457
    %v1462 = vpop.xlane.xlu0 %1461
    %1463 = vadd.xlane.f32.xlu0 %v1458
    %v1464 = vpop.xlane.xlu0 %1463
    %1465 = vadd.xlane.f32.xlu0 %v1459
    %v1466 = vpop.xlane.xlu0 %1465
    %1467 = vadd.xlane.f32.xlu0 %v1460
    %v1468 = vpop.xlane.xlu0 %1467
    %v1469 = vrcp.pop 128.0
    %v1470 = vmul.f32 %v1462, %v1469
    %v1471 = vmul.f32 %v1464, %v1469
    %v1472 = vmul.f32 %v1466, %v1469
    %v1473 = vmul.f32 %v1468, %v1469
    %v1474 = vsub.f32 %v1457, %v1470
    %v1475 = vsub.f32 %v1458, %v1471
    %v1476 = vsub.f32 %v1459, %v1472
    %v1477 = vsub.f32 %v1460, %v1473
    %v1478 = vmul.f32 %v1474, %v1474
    %v1479 = vmul.f32 %v1475, %v1475
    %v1480 = vmul.f32 %v1476, %v1476
    %v1481 = vmul.f32 %v1477, %v1477
    %1482 = vadd.xlane.f32.xlu0 %v1478
    %v1483 = vpop.xlane.xlu0 %1482
    %1484 = vadd.xlane.f32.xlu0 %v1479
    %v1485 = vpop.xlane.xlu0 %1484
    %1486 = vadd.xlane.f32.xlu0 %v1480
    %v1487 = vpop.xlane.xlu0 %1486
    %1488 = vadd.xlane.f32.xlu0 %v1481
    %v1489 = vpop.xlane.xlu0 %1488
    %v1490 = vmul.f32 %v1483, %v1469
    %v1491 = vmul.f32 %v1485, %v1469
    %v1492 = vmul.f32 %v1487, %v1469
    %v1493 = vmul.f32 %v1489, %v1469
    %v1494 = vadd.f32 %v1490, 1e-12
    %v1495 = vadd.f32 %v1491, 1e-12
    %v1496 = vadd.f32 %v1492, 1e-12
    %v1497 = vadd.f32 %v1493, 1e-12
    %v1498 = vrsqrt.pop %v1494
    %v1499 = vrsqrt.pop %v1495
    %v1500 = vrsqrt.pop %v1496
    %v1501 = vrsqrt.pop %v1497
    %v1502 = vmul.f32 %v1474, %v1498
    %v1503 = vmul.f32 %v1475, %v1499
    %v1504 = vmul.f32 %v1476, %v1500
    %v1505 = vmul.f32 %v1477, %v1501
    %v1506 = vlaneseq
    %v1507 = vshrl.u32 %v1506, 7
    %v1508 = vsub.s32 1, %v1507
    %v1509 = vrot.slane %v367, %v1508
    %v1510 = vmul.f32 %v1502, %v1509
    %v1511 = vmul.f32 %v1503, %v1509
    %v1512 = vmul.f32 %v1504, %v1509
    %v1513 = vmul.f32 %v1505, %v1509
    %v1514 = vlaneseq
    %v1515 = vshrl.u32 %v1514, 7
    %v1516 = vsub.s32 2, %v1515
    %v1517 = vrot.slane %v367, %v1516
    %v1518 = vadd.f32 %v1510, %v1517
    %v1519 = vadd.f32 %v1511, %v1517
    %v1520 = vadd.f32 %v1512, %v1517
    %v1521 = vadd.f32 %v1513, %v1517
    %v1522 = vpack.c.bf16 %v1519, %v1518
    %v1523 = vpack.c.bf16 %v1521, %v1520
    %v1524 = vlaneseq
    %v1525 = vshrl.u32 %v1524, 7
    %v1526 = vsub.s32 3, %v1525
    %v1527 = vrot.slane %v367, %v1526
    %v1528 = vlaneseq
    %v1529 = vshrl.u32 %v1528, 7
    %v1530 = vsub.s32 3, %v1529
    %v1531 = vrot.slane %v368, %v1530
    %v1548 = vunpack.c.l.b16 %v321
    %v1549 = vunpack.c.h.b16 %v321
    %v1550 = vunpack.c.l.b16 %v324
    %v1551 = vunpack.c.h.b16 %v324
    %v1552 = vunpack.c.l.b16 %v327
    %v1553 = vunpack.c.h.b16 %v327
    %v1554 = vunpack.c.l.b16 %v330
    %v1555 = vunpack.c.h.b16 %v330
    %v1556 = vunpack.c.l.b16 %v333
    %v1557 = vunpack.c.h.b16 %v333
    %v1558 = vunpack.c.l.b16 %v336
    %v1559 = vunpack.c.h.b16 %v336
    %v1560 = vunpack.c.l.b16 %v339
    %v1561 = vunpack.c.h.b16 %v339
    %v1562 = vunpack.c.l.b16 %v342
    %v1563 = vunpack.c.h.b16 %v342
    %v1564 = vunpack.c.l.b16 %v345
    %v1565 = vunpack.c.h.b16 %v345
    %v1566 = vunpack.c.l.b16 %v348
    %v1567 = vunpack.c.h.b16 %v348
    %v1568 = vunpack.c.l.b16 %v351
    %v1569 = vunpack.c.h.b16 %v351
    %v1570 = vunpack.c.l.b16 %v354
    %v1571 = vunpack.c.h.b16 %v354
    %v1572 = vunpack.c.l.b16 %v357
    %v1573 = vunpack.c.h.b16 %v357
    %v1574 = vunpack.c.l.b16 %v360
    %v1575 = vunpack.c.h.b16 %v360
    %v1576 = vunpack.c.l.b16 %v363
    %v1577 = vunpack.c.h.b16 %v363
    %v1578 = vunpack.c.l.b16 %v366
    %v1579 = vunpack.c.h.b16 %v366
    %v1580 = vpack.c.b16 %v1550, %v1548
    %v1581 = vpack.c.b16 %v1551, %v1549
    %v1582 = vpack.c.b16 %v1554, %v1552
    %v1583 = vpack.c.b16 %v1555, %v1553
    %v1584 = vpack.c.b16 %v1558, %v1556
    %v1585 = vpack.c.b16 %v1559, %v1557
    %v1586 = vpack.c.b16 %v1562, %v1560
    %v1587 = vpack.c.b16 %v1563, %v1561
    %v1588 = vpack.c.b16 %v1566, %v1564
    %v1589 = vpack.c.b16 %v1567, %v1565
    %v1590 = vpack.c.b16 %v1570, %v1568
    %v1591 = vpack.c.b16 %v1571, %v1569
    %v1592 = vpack.c.b16 %v1574, %v1572
    %v1593 = vpack.c.b16 %v1575, %v1573
    %v1594 = vpack.c.b16 %v1578, %v1576
    %v1595 = vpack.c.b16 %v1579, %v1577
    %1612 = vmatprep.subr.bf16.mxu0 %v1581
    %1613 = vmatpush1.bf16.msra.mxu0 %v1580
    %1614 = vmatprep.subr.bf16.mxu0 %v1583
    %1615 = vmatpush1.bf16.msra.mxu0 %v1582
    %1616 = vmatprep.subr.bf16.mxu0 %v1585
    %1617 = vmatpush1.bf16.msra.mxu0 %v1584
    %1618 = vmatprep.subr.bf16.mxu0 %v1587
    %1619 = vmatpush1.bf16.msra.mxu0 %v1586
    %1620 = vmatprep.subr.bf16.mxu0 %v1589
    %1621 = vmatpush1.bf16.msra.mxu0 %v1588
    %1622 = vmatprep.subr.bf16.mxu0 %v1591
    %1623 = vmatpush1.bf16.msra.mxu0 %v1590
    %1624 = vmatprep.subr.bf16.mxu0 %v1593
    %1625 = vmatpush1.bf16.msra.mxu0 %v1592
    %1626 = vmatprep.subr.bf16.mxu0 %v1595
    %1627 = vmatpush1.bf16.msra.mxu0 %v1594
    %1628 = vmatprep.subr.bf16.mxu0 0
    %1629 = vmatpush1.bf16.msra.mxu0 0
    %1630 = vmatprep.subr.bf16.mxu0 0
    %1631 = vmatpush1.bf16.msra.mxu0 0
    %1632 = vmatprep.subr.bf16.mxu0 0
    %1633 = vmatpush1.bf16.msra.mxu0 0
    %1634 = vmatprep.subr.bf16.mxu0 0
    %1635 = vmatpush1.bf16.msra.mxu0 0
    %1636 = vmatprep.subr.bf16.mxu0 0
    %1637 = vmatpush1.bf16.msra.mxu0 0
    %1638 = vmatprep.subr.bf16.mxu0 0
    %1639 = vmatpush1.bf16.msra.mxu0 0
    %1640 = vmatprep.subr.bf16.mxu0 0
    %1641 = vmatpush1.bf16.msra.mxu0 0
    %1642 = vmatprep.subr.bf16.mxu0 0
    %1643 = vmatpush1.bf16.msra.mxu0 0
    %1644 = vmatprep.mubr.bf16.mxu0 0
    %1645 = vmatmul.mubr.bf16.gmra.mrb[0].mxu0 %v1522
    %v1646 = vpop.f32.mrb[0].mxu0
    %v1647 = vadd.f32 %v1527, %v1646
    %v1648 = vpop.f32.mrb[0].mxu0
    %v1649 = vadd.f32 %v1531, %v1648
    %v1650 = vpop.f32.mrb[0].mxu0
    %v1651 = vadd.f32 %v1527, %v1650
    %v1652 = vpop.f32.mrb[0].mxu0
    %v1653 = vadd.f32 %v1531, %v1652
    %1654 = vmatprep.mubr.bf16.mxu0 0
    %1655 = vmatmul.mubr.bf16.gmra.mrb[0].mxu0 %v1523
    %v1656 = vpop.f32.mrb[0].mxu0
    %v1657 = vadd.f32 %v1527, %v1656
    %v1658 = vpop.f32.mrb[0].mxu0
    %v1659 = vadd.f32 %v1531, %v1658
    %v1660 = vpop.f32.mrb[0].mxu0
    %v1661 = vadd.f32 %v1527, %v1660
    %v1662 = vpop.f32.mrb[0].mxu0
    %v1663 = vadd.f32 %v1531, %v1662
    %1664 = vdwg.mxu0
    %v1665 = vmul.f32 %v1647, %v1647
    %v1666 = vmul.f32 %v1649, %v1649
    %v1667 = vmul.f32 %v1651, %v1651
    %v1668 = vmul.f32 %v1653, %v1653
    %v1669 = vmul.f32 %v1657, %v1657
    %v1670 = vmul.f32 %v1659, %v1659
    %v1671 = vmul.f32 %v1661, %v1661
    %v1672 = vmul.f32 %v1663, %v1663
    %v1673 = vmul.f32 %v1647, %v1665
    %v1674 = vmul.f32 %v1649, %v1666
    %v1675 = vmul.f32 %v1651, %v1667
    %v1676 = vmul.f32 %v1653, %v1668
    %v1677 = vmul.f32 %v1657, %v1669
    %v1678 = vmul.f32 %v1659, %v1670
    %v1679 = vmul.f32 %v1661, %v1671
    %v1680 = vmul.f32 %v1663, %v1672
    %v1681 = vmul.f32 %v1673, 0.044715
    %v1682 = vmul.f32 %v1674, 0.044715
    %v1683 = vmul.f32 %v1675, 0.044715
    %v1684 = vmul.f32 %v1676, 0.044715
    %v1685 = vmul.f32 %v1677, 0.044715
    %v1686 = vmul.f32 %v1678, 0.044715
    %v1687 = vmul.f32 %v1679, 0.044715
    %v1688 = vmul.f32 %v1680, 0.044715
    %v1689 = vadd.f32 %v1647, %v1681
    %v1690 = vadd.f32 %v1649, %v1682
    %v1691 = vadd.f32 %v1651, %v1683
    %v1692 = vadd.f32 %v1653, %v1684
    %v1693 = vadd.f32 %v1657, %v1685
    %v1694 = vadd.f32 %v1659, %v1686
    %v1695 = vadd.f32 %v1661, %v1687
    %v1696 = vadd.f32 %v1663, %v1688
    %v1697 = vmul.f32 %v1689, 0.7978846
    %v1698 = vmul.f32 %v1690, 0.7978846
    %v1699 = vmul.f32 %v1691, 0.7978846
    %v1700 = vmul.f32 %v1692, 0.7978846
    %v1701 = vmul.f32 %v1693, 0.7978846
    %v1702 = vmul.f32 %v1694, 0.7978846
    %v1703 = vmul.f32 %v1695, 0.7978846
    %v1704 = vmul.f32 %v1696, 0.7978846
    %v1705 = vtanh.pop %v1697
    %v1706 = vtanh.pop %v1698
    %v1707 = vtanh.pop %v1699
    %v1708 = vtanh.pop %v1700
    %v1709 = vtanh.pop %v1701
    %v1710 = vtanh.pop %v1702
    %v1711 = vtanh.pop %v1703
    %v1712 = vtanh.pop %v1704
    %v1713 = vadd.f32 %v1705, 1.0
    %v1714 = vadd.f32 %v1706, 1.0
    %v1715 = vadd.f32 %v1707, 1.0
    %v1716 = vadd.f32 %v1708, 1.0
    %v1717 = vadd.f32 %v1709, 1.0
    %v1718 = vadd.f32 %v1710, 1.0
    %v1719 = vadd.f32 %v1711, 1.0
    %v1720 = vadd.f32 %v1712, 1.0
    %v1721 = vmul.f32 %v1713, 0.5
    %v1722 = vmul.f32 %v1714, 0.5
    %v1723 = vmul.f32 %v1715, 0.5
    %v1724 = vmul.f32 %v1716, 0.5
    %v1725 = vmul.f32 %v1717, 0.5
    %v1726 = vmul.f32 %v1718, 0.5
    %v1727 = vmul.f32 %v1719, 0.5
    %v1728 = vmul.f32 %v1720, 0.5
    %v1729 = vmul.f32 %v1647, %v1721
    %v1730 = vmul.f32 %v1649, %v1722
    %v1731 = vmul.f32 %v1651, %v1723
    %v1732 = vmul.f32 %v1653, %v1724
    %v1733 = vmul.f32 %v1657, %v1725
    %v1734 = vmul.f32 %v1659, %v1726
    %v1735 = vmul.f32 %v1661, %v1727
    %v1736 = vmul.f32 %v1663, %v1728
    %v1737 = vld [vmem:[#allocation5] sm:$0xf]
    %v1738 = vld [vmem:[#allocation5 + $0x4] sm:$0xf]
    %v1739 = vld [vmem:[#allocation5 + $0x8] sm:$0xf]
    %v1740 = vld [vmem:[#allocation5 + $0xc] sm:$0xf]
    %v1741 = vld [vmem:[#allocation5 + $0x10] sm:$0xf]
    %v1742 = vld [vmem:[#allocation5 + $0x14] sm:$0xf]
    %v1743 = vld [vmem:[#allocation5 + $0x18] sm:$0xf]
    %v1744 = vld [vmem:[#allocation5 + $0x1c] sm:$0xf]
    %v1745 = vld [vmem:[#allocation5 + $0x20] sm:$0xf]
    %v1746 = vld [vmem:[#allocation5 + $0x24] sm:$0xf]
    %v1747 = vld [vmem:[#allocation5 + $0x28] sm:$0xf]
    %v1748 = vld [vmem:[#allocation5 + $0x2c] sm:$0xf]
    %v1749 = vld [vmem:[#allocation5 + $0x30] sm:$0xf]
    %v1750 = vld [vmem:[#allocation5 + $0x34] sm:$0xf]
    %v1751 = vld [vmem:[#allocation5 + $0x38] sm:$0xf]
    %v1752 = vld [vmem:[#allocation5 + $0x3c] sm:$0xf]
    %v1753 = vld [vmem:[#allocation5 + $0x40] sm:$0xf]
    %v1754 = vld [vmem:[#allocation5 + $0x44] sm:$0xf]
    %v1755 = vld [vmem:[#allocation5 + $0x48] sm:$0xf]
    %v1756 = vld [vmem:[#allocation5 + $0x4c] sm:$0xf]
    %v1757 = vld [vmem:[#allocation5 + $0x50] sm:$0xf]
    %v1758 = vld [vmem:[#allocation5 + $0x54] sm:$0xf]
    %v1759 = vld [vmem:[#allocation5 + $0x58] sm:$0xf]
    %v1760 = vld [vmem:[#allocation5 + $0x5c] sm:$0xf]
    %v1761 = vld [vmem:[#allocation5 + $0x60] sm:$0xf]
    %v1762 = vld [vmem:[#allocation5 + $0x64] sm:$0xf]
    %v1763 = vld [vmem:[#allocation5 + $0x68] sm:$0xf]
    %v1764 = vld [vmem:[#allocation5 + $0x6c] sm:$0xf]
    %v1765 = vld [vmem:[#allocation5 + $0x70] sm:$0xf]
    %v1766 = vld [vmem:[#allocation5 + $0x74] sm:$0xf]
    %v1767 = vld [vmem:[#allocation5 + $0x78] sm:$0xf]
    %v1768 = vld [vmem:[#allocation5 + $0x7c] sm:$0xf]
    %v1769 = vpack.c.bf16 %v1731, %v1729
    %v1770 = vpack.c.bf16 %v1732, %v1730
    %v1771 = vpack.c.bf16 %v1735, %v1733
    %v1772 = vpack.c.bf16 %v1736, %v1734
    %v1773 = vlaneseq
    %v1774 = vshrl.u32 %v1773, 7
    %v1775 = vsub.s32 4, %v1774
    %v1776 = vrot.slane %v367, %v1775
    %v1809 = vunpack.c.l.b16 %v1737
    %v1810 = vunpack.c.l.b16 %v1738
    %v1811 = vunpack.c.l.b16 %v1739
    %v1812 = vunpack.c.l.b16 %v1740
    %v1813 = vunpack.c.l.b16 %v1741
    %v1814 = vunpack.c.l.b16 %v1742
    %v1815 = vunpack.c.l.b16 %v1743
    %v1816 = vunpack.c.l.b16 %v1744
    %v1817 = vunpack.c.l.b16 %v1745
    %v1818 = vunpack.c.l.b16 %v1746
    %v1819 = vunpack.c.l.b16 %v1747
    %v1820 = vunpack.c.l.b16 %v1748
    %v1821 = vunpack.c.l.b16 %v1749
    %v1822 = vunpack.c.l.b16 %v1750
    %v1823 = vunpack.c.l.b16 %v1751
    %v1824 = vunpack.c.l.b16 %v1752
    %v1825 = vunpack.c.l.b16 %v1753
    %v1826 = vunpack.c.l.b16 %v1754
    %v1827 = vunpack.c.l.b16 %v1755
    %v1828 = vunpack.c.l.b16 %v1756
    %v1829 = vunpack.c.l.b16 %v1757
    %v1830 = vunpack.c.l.b16 %v1758
    %v1831 = vunpack.c.l.b16 %v1759
    %v1832 = vunpack.c.l.b16 %v1760
    %v1833 = vunpack.c.l.b16 %v1761
    %v1834 = vunpack.c.l.b16 %v1762
    %v1835 = vunpack.c.l.b16 %v1763
    %v1836 = vunpack.c.l.b16 %v1764
    %v1837 = vunpack.c.l.b16 %v1765
    %v1838 = vunpack.c.l.b16 %v1766
    %v1839 = vunpack.c.l.b16 %v1767
    %v1840 = vunpack.c.l.b16 %v1768
    %v1841 = vpack.c.b16 %v1810, %v1809
    %v1842 = vpack.c.b16 %v1812, %v1811
    %v1843 = vpack.c.b16 %v1814, %v1813
    %v1844 = vpack.c.b16 %v1816, %v1815
    %v1845 = vpack.c.b16 %v1818, %v1817
    %v1846 = vpack.c.b16 %v1820, %v1819
    %v1847 = vpack.c.b16 %v1822, %v1821
    %v1848 = vpack.c.b16 %v1824, %v1823
    %v1849 = vpack.c.b16 %v1826, %v1825
    %v1850 = vpack.c.b16 %v1828, %v1827
    %v1851 = vpack.c.b16 %v1830, %v1829
    %v1852 = vpack.c.b16 %v1832, %v1831
    %v1853 = vpack.c.b16 %v1834, %v1833
    %v1854 = vpack.c.b16 %v1836, %v1835
    %v1855 = vpack.c.b16 %v1838, %v1837
    %v1856 = vpack.c.b16 %v1840, %v1839
    %1873 = vmatprep.subr.bf16.mxu0 0
    %1874 = vmatpush1.bf16.msra.mxu0 %v1841
    %1875 = vmatprep.subr.bf16.mxu0 0
    %1876 = vmatpush1.bf16.msra.mxu0 %v1842
    %1877 = vmatprep.subr.bf16.mxu0 0
    %1878 = vmatpush1.bf16.msra.mxu0 %v1843
    %1879 = vmatprep.subr.bf16.mxu0 0
    %1880 = vmatpush1.bf16.msra.mxu0 %v1844
    %1881 = vmatprep.subr.bf16.mxu0 0
    %1882 = vmatpush1.bf16.msra.mxu0 %v1845
    %1883 = vmatprep.subr.bf16.mxu0 0
    %1884 = vmatpush1.bf16.msra.mxu0 %v1846
    %1885 = vmatprep.subr.bf16.mxu0 0
    %1886 = vmatpush1.bf16.msra.mxu0 %v1847
    %1887 = vmatprep.subr.bf16.mxu0 0
    %1888 = vmatpush1.bf16.msra.mxu0 %v1848
    %1889 = vmatprep.subr.bf16.mxu0 0
    %1890 = vmatpush1.bf16.msra.mxu0 %v1849
    %1891 = vmatprep.subr.bf16.mxu0 0
    %1892 = vmatpush1.bf16.msra.mxu0 %v1850
    %1893 = vmatprep.subr.bf16.mxu0 0
    %1894 = vmatpush1.bf16.msra.mxu0 %v1851
    %1895 = vmatprep.subr.bf16.mxu0 0
    %1896 = vmatpush1.bf16.msra.mxu0 %v1852
    %1897 = vmatprep.subr.bf16.mxu0 0
    %1898 = vmatpush1.bf16.msra.mxu0 %v1853
    %1899 = vmatprep.subr.bf16.mxu0 0
    %1900 = vmatpush1.bf16.msra.mxu0 %v1854
    %1901 = vmatprep.subr.bf16.mxu0 0
    %1902 = vmatpush1.bf16.msra.mxu0 %v1855
    %1903 = vmatprep.subr.bf16.mxu0 0
    %1904 = vmatpush1.bf16.msra.mxu0 %v1856
    %1905 = vmatprep.mubr.bf16.mxu0 %v1770
    %1906 = vmatmul.mubr.bf16.gmra.mrb[0].mxu0 %v1769
    %v1907 = vpop.f32.mrb[0].mxu0
    %v1908 = vadd.f32 %v1776, %v1907
    %v1909 = vpop.f32.mrb[0].mxu0
    %v1910 = vpop.f32.mrb[0].mxu0
    %v1911 = vadd.f32 %v1776, %v1910
    %v1912 = vpop.f32.mrb[0].mxu0
    %1913 = vmatprep.mubr.bf16.mxu0 %v1772
    %1914 = vmatmul.mubr.bf16.gmra.mrb[0].mxu0 %v1771
    %v1915 = vpop.f32.mrb[0].mxu0
    %v1916 = vadd.f32 %v1776, %v1915
    %v1917 = vpop.f32.mrb[0].mxu0
    %v1918 = vpop.f32.mrb[0].mxu0
    %v1919 = vadd.f32 %v1776, %v1918
    %v1920 = vpop.f32.mrb[0].mxu0
    %1921 = vdwg.mxu0
    %v1922 = vadd.f32 %v1518, %v1908
    %v1923 = vadd.f32 %v1519, %v1911
    %v1924 = vadd.f32 %v1520, %v1916
    %v1925 = vadd.f32 %v1521, %v1919
    %1926 = vadd.xlane.f32.xlu0 %v1922
    %v1927 = vpop.xlane.xlu0 %1926
    %1928 = vadd.xlane.f32.xlu0 %v1923
    %v1929 = vpop.xlane.xlu0 %1928
    %1930 = vadd.xlane.f32.xlu0 %v1924
    %v1931 = vpop.xlane.xlu0 %1930
    %1932 = vadd.xlane.f32.xlu0 %v1925
    %v1933 = vpop.xlane.xlu0 %1932
    %v1934 = vmul.f32 %v1927, %v1469
    %v1935 = vmul.f32 %v1929, %v1469
    %v1936 = vmul.f32 %v1931, %v1469
    %v1937 = vmul.f32 %v1933, %v1469
    %v1938 = vsub.f32 %v1922, %v1934
    %v1939 = vsub.f32 %v1923, %v1935
    %v1940 = vsub.f32 %v1924, %v1936
    %v1941 = vsub.f32 %v1925, %v1937
    %v1942 = vmul.f32 %v1938, %v1938
    %v1943 = vmul.f32 %v1939, %v1939
    %v1944 = vmul.f32 %v1940, %v1940
    %v1945 = vmul.f32 %v1941, %v1941
    %1946 = vadd.xlane.f32.xlu0 %v1942
    %v1947 = vpop.xlane.xlu0 %1946
    %1948 = vadd.xlane.f32.xlu0 %v1943
    %v1949 = vpop.xlane.xlu0 %1948
    %1950 = vadd.xlane.f32.xlu0 %v1944
    %v1951 = vpop.xlane.xlu0 %1950
    %1952 = vadd.xlane.f32.xlu0 %v1945
    %v1953 = vpop.xlane.xlu0 %1952
    %v1954 = vmul.f32 %v1947, %v1469
    %v1955 = vmul.f32 %v1949, %v1469
    %v1956 = vmul.f32 %v1951, %v1469
    %v1957 = vmul.f32 %v1953, %v1469
    %v1958 = vadd.f32 %v1954, 1e-12
    %v1959 = vadd.f32 %v1955, 1e-12
    %v1960 = vadd.f32 %v1956, 1e-12
    %v1961 = vadd.f32 %v1957, 1e-12
    %v1962 = vrsqrt.pop %v1958
    %v1963 = vrsqrt.pop %v1959
    %v1964 = vrsqrt.pop %v1960
    %v1965 = vrsqrt.pop %v1961
    %v1966 = vmul.f32 %v1938, %v1962
    %v1967 = vmul.f32 %v1939, %v1963
    %v1968 = vmul.f32 %v1940, %v1964
    %v1969 = vmul.f32 %v1941, %v1965
    %v1970 = vlaneseq
    %v1971 = vshrl.u32 %v1970, 7
    %v1972 = vsub.s32 5, %v1971
    %v1973 = vrot.slane %v367, %v1972
    %v1974 = vmul.f32 %v1966, %v1973
    %v1975 = vmul.f32 %v1967, %v1973
    %v1976 = vmul.f32 %v1968, %v1973
    %v1977 = vmul.f32 %v1969, %v1973
    %v1978 = vlaneseq
    %v1979 = vshrl.u32 %v1978, 7
    %v1980 = vsub.s32 6, %v1979
    %v1981 = vrot.slane %v367, %v1980
    %v1982 = vadd.f32 %v1974, %v1981
    %v1983 = vadd.f32 %v1975, %v1981
    %v1984 = vadd.f32 %v1976, %v1981
    %v1985 = vadd.f32 %v1977, %v1981
    %s1986 = scalar_lea.vmem [#allocation2], 384
    %v1987 = vld [vmem:[%s1986] sm:$0xff]
    %v1988 = vld [vmem:[%s1986 + $0x8] sm:$0xff]
    %v1989 = vld [vmem:[%s1986 + $0x10] sm:$0xff]
    %v1990 = vld [vmem:[%s1986 + $0x18] sm:$0xff]
    %v1991 = vld [vmem:[%s1986 + $0x20] sm:$0xff]
    %v1992 = vld [vmem:[%s1986 + $0x28] sm:$0xff]
    %v1993 = vld [vmem:[%s1986 + $0x30] sm:$0xff]
    %v1994 = vld [vmem:[%s1986 + $0x38] sm:$0xff]
    %v1995 = vld [vmem:[%s1986 + $0x40] sm:$0xff]
    %v1996 = vld [vmem:[%s1986 + $0x48] sm:$0xff]
    %v1997 = vld [vmem:[%s1986 + $0x50] sm:$0xff]
    %v1998 = vld [vmem:[%s1986 + $0x58] sm:$0xff]
    %v1999 = vld [vmem:[%s1986 + $0x60] sm:$0xff]
    %v2000 = vld [vmem:[%s1986 + $0x68] sm:$0xff]
    %v2001 = vld [vmem:[%s1986 + $0x70] sm:$0xff]
    %v2002 = vld [vmem:[%s1986 + $0x78] sm:$0xff]
    %v2003 = vld [vmem:[%s1986 + $0x80] sm:$0xff]
    %v2004 = vld [vmem:[%s1986 + $0x88] sm:$0xff]
    %v2005 = vld [vmem:[%s1986 + $0x90] sm:$0xff]
    %v2006 = vld [vmem:[%s1986 + $0x98] sm:$0xff]
    %v2007 = vld [vmem:[%s1986 + $0xa0] sm:$0xff]
    %v2008 = vld [vmem:[%s1986 + $0xa8] sm:$0xff]
    %v2009 = vld [vmem:[%s1986 + $0xb0] sm:$0xff]
    %v2010 = vld [vmem:[%s1986 + $0xb8] sm:$0xff]
    %v2011 = vld [vmem:[%s1986 + $0xc0] sm:$0xff]
    %v2012 = vld [vmem:[%s1986 + $0xc8] sm:$0xff]
    %v2013 = vld [vmem:[%s1986 + $0xd0] sm:$0xff]
    %v2014 = vld [vmem:[%s1986 + $0xd8] sm:$0xff]
    %v2015 = vld [vmem:[%s1986 + $0xe0] sm:$0xff]
    %v2016 = vld [vmem:[%s1986 + $0xe8] sm:$0xff]
    %v2017 = vld [vmem:[%s1986 + $0xf0] sm:$0xff]
    %v2018 = vld [vmem:[%s1986 + $0xf8] sm:$0xff]
    %v2019 = vld [vmem:[%s1986 + $0x100] sm:$0xff]
    %v2020 = vld [vmem:[%s1986 + $0x108] sm:$0xff]
    %v2021 = vld [vmem:[%s1986 + $0x110] sm:$0xff]
    %v2022 = vld [vmem:[%s1986 + $0x118] sm:$0xff]
    %v2023 = vld [vmem:[%s1986 + $0x120] sm:$0xff]
    %v2024 = vld [vmem:[%s1986 + $0x128] sm:$0xff]
    %v2025 = vld [vmem:[%s1986 + $0x130] sm:$0xff]
    %v2026 = vld [vmem:[%s1986 + $0x138] sm:$0xff]
    %v2027 = vld [vmem:[%s1986 + $0x140] sm:$0xff]
    %v2028 = vld [vmem:[%s1986 + $0x148] sm:$0xff]
    %v2029 = vld [vmem:[%s1986 + $0x150] sm:$0xff]
    %v2030 = vld [vmem:[%s1986 + $0x158] sm:$0xff]
    %v2031 = vld [vmem:[%s1986 + $0x160] sm:$0xff]
    %v2032 = vld [vmem:[%s1986 + $0x168] sm:$0xff]
    %v2033 = vld [vmem:[%s1986 + $0x170] sm:$0xff]
    %v2034 = vld [vmem:[%s1986 + $0x178] sm:$0xff]
    %s2035 = scalar_lea.vmem %s4, 16
    %v2036 = vld [vmem:[%s2035] sm:$0xff]
    %v2037 = vld [vmem:[%s2035 + $0x8] sm:$0xff]
    %v2038 = vpack.c.bf16 %v1983, %v1982
    %v2039 = vpack.c.bf16 %v1985, %v1984
    %v2072 = vunpack.c.l.b16 %v1987
    %v2073 = vunpack.c.h.b16 %v1987
    %v2074 = vunpack.c.l.b16 %v1988
    %v2075 = vunpack.c.l.b16 %v1990
    %v2076 = vunpack.c.h.b16 %v1990
    %v2077 = vunpack.c.l.b16 %v1991
    %v2078 = vunpack.c.l.b16 %v1993
    %v2079 = vunpack.c.h.b16 %v1993
    %v2080 = vunpack.c.l.b16 %v1994
    %v2081 = vunpack.c.l.b16 %v1996
    %v2082 = vunpack.c.h.b16 %v1996
    %v2083 = vunpack.c.l.b16 %v1997
    %v2084 = vunpack.c.l.b16 %v1999
    %v2085 = vunpack.c.h.b16 %v1999
    %v2086 = vunpack.c.l.b16 %v2000
    %v2087 = vunpack.c.l.b16 %v2002
    %v2088 = vunpack.c.h.b16 %v2002
    %v2089 = vunpack.c.l.b16 %v2003
    %v2090 = vunpack.c.l.b16 %v2005
    %v2091 = vunpack.c.h.b16 %v2005
    %v2092 = vunpack.c.l.b16 %v2006
    %v2093 = vunpack.c.l.b16 %v2008
    %v2094 = vunpack.c.h.b16 %v2008
    %v2095 = vunpack.c.l.b16 %v2009
    %v2096 = vunpack.c.l.b16 %v2011
    %v2097 = vunpack.c.h.b16 %v2011
    %v2098 = vunpack.c.l.b16 %v2012
    %v2099 = vunpack.c.l.b16 %v2014
    %v2100 = vunpack.c.h.b16 %v2014
    %v2101 = vunpack.c.l.b16 %v2015
    %v2102 = vunpack.c.l.b16 %v2017
    %v2103 = vunpack.c.h.b16 %v2017
    %v2104 = vunpack.c.l.b16 %v2018
    %v2105 = vunpack.c.l.b16 %v2020
    %v2106 = vunpack.c.h.b16 %v2020
    %v2107 = vunpack.c.l.b16 %v2021
    %v2108 = vunpack.c.l.b16 %v2023
    %v2109 = vunpack.c.h.b16 %v2023
    %v2110 = vunpack.c.l.b16 %v2024
    %v2111 = vunpack.c.l.b16 %v2026
    %v2112 = vunpack.c.h.b16 %v2026
    %v2113 = vunpack.c.l.b16 %v2027
    %v2114 = vunpack.c.l.b16 %v2029
    %v2115 = vunpack.c.h.b16 %v2029
    %v2116 = vunpack.c.l.b16 %v2030
    %v2117 = vunpack.c.l.b16 %v2032
    %v2118 = vunpack.c.h.b16 %v2032
    %v2119 = vunpack.c.l.b16 %v2033
    %v2120 = vpack.c.b16 %v2075, %v2072
    %v2121 = vpack.c.b16 %v2076, %v2073
    %v2122 = vpack.c.b16 %v2077, %v2074
    %v2123 = vpack.c.b16 %v2081, %v2078
    %v2124 = vpack.c.b16 %v2082, %v2079
    %v2125 = vpack.c.b16 %v2083, %v2080
    %v2126 = vpack.c.b16 %v2087, %v2084
    %v2127 = vpack.c.b16 %v2088, %v2085
    %v2128 = vpack.c.b16 %v2089, %v2086
    %v2129 = vpack.c.b16 %v2093, %v2090
    %v2130 = vpack.c.b16 %v2094, %v2091
    %v2131 = vpack.c.b16 %v2095, %v2092
    %v2132 = vpack.c.b16 %v2099, %v2096
    %v2133 = vpack.c.b16 %v2100, %v2097
    %v2134 = vpack.c.b16 %v2101, %v2098
    %v2135 = vpack.c.b16 %v2105, %v2102
    %v2136 = vpack.c.b16 %v2106, %v2103
    %v2137 = vpack.c.b16 %v2107, %v2104
    %v2138 = vpack.c.b16 %v2111, %v2108
    %v2139 = vpack.c.b16 %v2112, %v2109
    %v2140 = vpack.c.b16 %v2113, %v2110
    %v2141 = vpack.c.b16 %v2117, %v2114
    %v2142 = vpack.c.b16 %v2118, %v2115
    %v2143 = vpack.c.b16 %v2119, %v2116
    %2168 = vmatprep.subr.bf16.mxu0 %v2121
    %2169 = vmatpush1.bf16.msra.mxu0 %v2120
    %2170 = vmatprep.subr.bf16.mxu0 %v2124
    %2171 = vmatpush1.bf16.msra.mxu0 %v2123
    %2172 = vmatprep.subr.bf16.mxu0 %v2127
    %2173 = vmatpush1.bf16.msra.mxu0 %v2126
    %2174 = vmatprep.subr.bf16.mxu0 %v2130
    %2175 = vmatpush1.bf16.msra.mxu0 %v2129
    %2176 = vmatprep.subr.bf16.mxu0 %v2133
    %2177 = vmatpush1.bf16.msra.mxu0 %v2132
    %2178 = vmatprep.subr.bf16.mxu0 %v2136
    %2179 = vmatpush1.bf16.msra.mxu0 %v2135
    %2180 = vmatprep.subr.bf16.mxu0 %v2139
    %2181 = vmatpush1.bf16.msra.mxu0 %v2138
    %2182 = vmatprep.subr.bf16.mxu0 %v2142
    %2183 = vmatpush1.bf16.msra.mxu0 %v2141
    %2184 = vmatprep.subr.bf16.mxu0 0
    %2185 = vmatpush1.bf16.msra.mxu0 0
    %2186 = vmatprep.subr.bf16.mxu0 0
    %2187 = vmatpush1.bf16.msra.mxu0 0
    %2188 = vmatprep.subr.bf16.mxu0 0
    %2189 = vmatpush1.bf16.msra.mxu0 0
    %2190 = vmatprep.subr.bf16.mxu0 0
    %2191 = vmatpush1.bf16.msra.mxu0 0
    %2192 = vmatprep.subr.bf16.mxu0 0
    %2193 = vmatpush1.bf16.msra.mxu0 0
    %2194 = vmatprep.subr.bf16.mxu0 0
    %2195 = vmatpush1.bf16.msra.mxu0 0
    %2196 = vmatprep.subr.bf16.mxu0 0
    %2197 = vmatpush1.bf16.msra.mxu0 0
    %2198 = vmatprep.subr.bf16.mxu0 0
    %2199 = vmatpush1.bf16.msra.mxu0 0
    %2200 = vmatprep.mubr.bf16.mxu0 0
    %2201 = vmatmul.mubr.bf16.gmra.mrb[0].mxu0 %v2038
    %v2202 = vpop.f32.mrb[0].mxu0
    %v2203 = vadd.f32 0.0, %v2202
    %v2204 = vpop.f32.mrb[0].mxu0
    %v2205 = vadd.f32 0.0, %v2204
    %v2206 = vpop.f32.mrb[0].mxu0
    %v2207 = vadd.f32 0.0, %v2206
    %v2208 = vpop.f32.mrb[0].mxu0
    %v2209 = vadd.f32 0.0, %v2208
    %2210 = vmatprep.mubr.bf16.mxu0 0
    %2211 = vmatmul.mubr.bf16.gmra.mrb[0].mxu0 %v2039
    %v2212 = vpop.f32.mrb[0].mxu0
    %v2213 = vadd.f32 0.0, %v2212
    %v2214 = vpop.f32.mrb[0].mxu0
    %v2215 = vadd.f32 0.0, %v2214
    %v2216 = vpop.f32.mrb[0].mxu0
    %v2217 = vadd.f32 0.0, %v2216
    %v2218 = vpop.f32.mrb[0].mxu0
    %v2219 = vadd.f32 0.0, %v2218
    %2220 = vdwg.mxu0
    %2221 = vmatprep.subr.bf16.mxu0 0
    %2222 = vmatpush1.bf16.msra.mxu0 %v2122
    %2223 = vmatprep.subr.bf16.mxu0 0
    %2224 = vmatpush1.bf16.msra.mxu0 %v2125
    %2225 = vmatprep.subr.bf16.mxu0 0
    %2226 = vmatpush1.bf16.msra.mxu0 %v2128
    %2227 = vmatprep.subr.bf16.mxu0 0
    %2228 = vmatpush1.bf16.msra.mxu0 %v2131
    %2229 = vmatprep.subr.bf16.mxu0 0
    %2230 = vmatpush1.bf16.msra.mxu0 %v2134
    %2231 = vmatprep.subr.bf16.mxu0 0
    %2232 = vmatpush1.bf16.msra.mxu0 %v2137
    %2233 = vmatprep.subr.bf16.mxu0 0
    %2234 = vmatpush1.bf16.msra.mxu0 %v2140
    %2235 = vmatprep.subr.bf16.mxu0 0
    %2236 = vmatpush1.bf16.msra.mxu0 %v2143
    %2237 = vmatprep.subr.bf16.mxu0 0
    %2238 = vmatpush1.bf16.msra.mxu0 0
    %2239 = vmatprep.subr.bf16.mxu0 0
    %2240 = vmatpush1.bf16.msra.mxu0 0
    %2241 = vmatprep.subr.bf16.mxu0 0
    %2242 = vmatpush1.bf16.msra.mxu0 0
    %2243 = vmatprep.subr.bf16.mxu0 0
    %2244 = vmatpush1.bf16.msra.mxu0 0
    %2245 = vmatprep.subr.bf16.mxu0 0
    %2246 = vmatpush1.bf16.msra.mxu0 0
    %2247 = vmatprep.subr.bf16.mxu0 0
    %2248 = vmatpush1.bf16.msra.mxu0 0
    %2249 = vmatprep.subr.bf16.mxu0 0
    %2250 = vmatpush1.bf16.msra.mxu0 0
    %2251 = vmatprep.subr.bf16.mxu0 0
    %2252 = vmatpush1.bf16.msra.mxu0 0
    %2253 = vmatprep.mubr.bf16.mxu0 0
    %2254 = vmatmul.mubr.bf16.gmra.mrb[0].mxu0 %v2038
    %v2255 = vpop.f32.mrb[0].mxu0
    %v2256 = vadd.f32 0.0, %v2255
    %v2257 = vpop.f32.mrb[0].mxu0
    %v2258 = vpop.f32.mrb[0].mxu0
    %v2259 = vadd.f32 0.0, %v2258
    %v2260 = vpop.f32.mrb[0].mxu0
    %2261 = vmatprep.mubr.bf16.mxu0 0
    %2262 = vmatmul.mubr.bf16.gmra.mrb[0].mxu0 %v2039
    %v2263 = vpop.f32.mrb[0].mxu0
    %v2264 = vadd.f32 0.0, %v2263
    %v2265 = vpop.f32.mrb[0].mxu0
    %v2266 = vpop.f32.mrb[0].mxu0
    %v2267 = vadd.f32 0.0, %v2266
    %v2268 = vpop.f32.mrb[0].mxu0
    %2269 = vdwg.mxu0
    %v2270 = vlaneseq
    %v2271 = vshrl.u32 %v2270, 7
    %v2272 = vsub.s32 0, %v2271
    %v2273 = vrot.slane %v2036, %v2272
    %v2274 = vadd.f32 %v2203, %v2273
    %v2275 = vadd.f32 %v2207, %v2273
    %v2276 = vadd.f32 %v2213, %v2273
    %v2277 = vadd.f32 %v2217, %v2273
    %v2278 = vpack.c.bf16 %v2275, %v2274
    %v2279 = vpack.c.bf16 %v2277, %v2276
    %v2280 = vpack.c.bf16 %v2209, %v2205
    %v2281 = vpack.c.bf16 %v2219, %v2215
    %v2282 = vpack.c.bf16 %v2259, %v2256
    %v2283 = vpack.c.bf16 %v2267, %v2264
    %v2285 = vsel %vm615, %v2278, 0
    %v2288 = vsel %vm615, %v2279, 0
    %v2291 = vsel %vm615, %v2280, 0
    %v2294 = vsel %vm615, %v2281, 0
    %2296 = vmatprep.subr.bf16.mxu0 0
    %2297 = vmatpush1.bf16.xpose.msra.mxu0 %v2291
    %2298 = vmatprep.subr.bf16.mxu0 0
    %2299 = vmatpush1.bf16.xpose.msra.mxu0 %v2294
    %2300 = vmatprep.subr.bf16.mxu0 0
    %2301 = vmatpush1.bf16.xpose.msra.mxu0 0
    %2302 = vmatprep.subr.bf16.mxu0 0
    %2303 = vmatpush1.bf16.xpose.msra.mxu0 0
    %2304 = vmatprep.subr.bf16.mxu0 0
    %2305 = vmatpush1.bf16.xpose.msra.mxu0 0
    %2306 = vmatprep.subr.bf16.mxu0 0
    %2307 = vmatpush1.bf16.xpose.msra.mxu0 0
    %2308 = vmatprep.subr.bf16.mxu0 0
    %2309 = vmatpush1.bf16.xpose.msra.mxu0 0
    %2310 = vmatprep.subr.bf16.mxu0 0
    %2311 = vmatpush1.bf16.xpose.msra.mxu0 0
    %2312 = vmatprep.subr.bf16.mxu0 0
    %2313 = vmatpush1.bf16.xpose.msra.mxu0 0
    %2314 = vmatprep.subr.bf16.mxu0 0
    %2315 = vmatpush1.bf16.xpose.msra.mxu0 0
    %2316 = vmatprep.subr.bf16.mxu0 0
    %2317 = vmatpush1.bf16.xpose.msra.mxu0 0
    %2318 = vmatprep.subr.bf16.mxu0 0
    %2319 = vmatpush1.bf16.xpose.msra.mxu0 0
    %2320 = vmatprep.subr.bf16.mxu0 0
    %2321 = vmatpush1.bf16.xpose.msra.mxu0 0
    %2322 = vmatprep.subr.bf16.mxu0 0
    %2323 = vmatpush1.bf16.xpose.msra.mxu0 0
    %2324 = vmatprep.subr.bf16.mxu0 0
    %2325 = vmatpush1.bf16.xpose.msra.mxu0 0
    %2326 = vmatprep.subr.bf16.mxu0 0
    %2327 = vmatpush1.bf16.xpose.msra.mxu0 0
    %2328 = vmatprep.mubr.bf16.mxu0 0
    %2329 = vmatmul.mubr.bf16.gmra.mrb[0].mxu0 %v2285
    %v2330 = vpop.f32.mrb[0].mxu0
    %v2331 = vadd.f32 %v315, %v2330
    %v2332 = vpop.f32.mrb[0].mxu0
    %v2333 = vpop.f32.mrb[0].mxu0
    %v2334 = vadd.f32 %v316, %v2333
    %v2335 = vpop.f32.mrb[0].mxu0
    %2336 = vmatprep.mubr.bf16.mxu0 0
    %2337 = vmatmul.mubr.bf16.gmra.mrb[0].mxu0 %v2288
    %v2338 = vpop.f32.mrb[0].mxu0
    %v2339 = vadd.f32 %v317, %v2338
    %v2340 = vpop.f32.mrb[0].mxu0
    %v2341 = vpop.f32.mrb[0].mxu0
    %v2342 = vadd.f32 %v318, %v2341
    %v2343 = vpop.f32.mrb[0].mxu0
    %2344 = vdwg.mxu0
    %v2345 = vsel %vm615, %v2331, -inf
    %2346 = vmax.xlane.f32.xlu0 %v2345
    %v2347 = vpop.xlane.xlu0 %2346
    %v2348 = vsel %vm615, %v2334, -inf
    %2349 = vmax.xlane.f32.xlu0 %v2348
    %v2350 = vpop.xlane.xlu0 %2349
    %v2351 = vsel %vm615, %v2339, -inf
    %2352 = vmax.xlane.f32.xlu0 %v2351
    %v2353 = vpop.xlane.xlu0 %2352
    %v2354 = vsel %vm615, %v2342, -inf
    %2355 = vmax.xlane.f32.xlu0 %v2354
    %v2356 = vpop.xlane.xlu0 %2355
    %v2357 = vsub.f32 %v2331, %v2347
    %v2358 = vsub.f32 %v2334, %v2350
    %v2359 = vsub.f32 %v2339, %v2353
    %v2360 = vsub.f32 %v2342, %v2356
    %v2361 = vmul.f32 %v2357, 1.442695
    %v2362 = vpow.pop %v2361
    %v2363 = vmul.f32 %v2358, 1.442695
    %v2364 = vpow.pop %v2363
    %v2365 = vmul.f32 %v2359, 1.442695
    %v2366 = vpow.pop %v2365
    %v2367 = vmul.f32 %v2360, 1.442695
    %v2368 = vpow.pop %v2367
    %v2369 = vsel %vm615, %v2362, 0.0
    %2370 = vadd.xlane.f32.xlu0 %v2369
    %v2371 = vpop.xlane.xlu0 %2370
    %v2372 = vsel %vm615, %v2364, 0.0
    %2373 = vadd.xlane.f32.xlu0 %v2372
    %v2374 = vpop.xlane.xlu0 %2373
    %v2375 = vsel %vm615, %v2366, 0.0
    %2376 = vadd.xlane.f32.xlu0 %v2375
    %v2377 = vpop.xlane.xlu0 %2376
    %v2378 = vsel %vm615, %v2368, 0.0
    %2379 = vadd.xlane.f32.xlu0 %v2378
    %v2380 = vpop.xlane.xlu0 %2379
    %v2381 = vrcp.pop %v2371
    %v2382 = vrcp.pop %v2374
    %v2383 = vrcp.pop %v2377
    %v2384 = vrcp.pop %v2380
    %v2385 = vmul.f32 %v2362, %v2381
    %v2386 = vmul.f32 %v2364, %v2382
    %v2387 = vmul.f32 %v2366, %v2383
    %v2388 = vmul.f32 %v2368, %v2384
    %v2389 = vpack.c.bf16 %v2386, %v2385
    %v2390 = vpack.c.bf16 %v2388, %v2387
    %v2392 = vsel %vm615, %v2389, 0
    %v2395 = vsel %vm615, %v2390, 0
    %2397 = vmatprep.subr.bf16.mxu0 0
    %2398 = vmatpush1.bf16.msra.mxu0 %v2282
    %2399 = vmatprep.subr.bf16.mxu0 0
    %2400 = vmatpush1.bf16.msra.mxu0 %v2283
    %2401 = vmatprep.subr.bf16.mxu0 0
    %2402 = vmatpush1.bf16.msra.mxu0 0
    %2403 = vmatprep.subr.bf16.mxu0 0
    %2404 = vmatpush1.bf16.msra.mxu0 0
    %2405 = vmatprep.subr.bf16.mxu0 0
    %2406 = vmatpush1.bf16.msra.mxu0 0
    %2407 = vmatprep.subr.bf16.mxu0 0
    %2408 = vmatpush1.bf16.msra.mxu0 0
    %2409 = vmatprep.subr.bf16.mxu0 0
    %2410 = vmatpush1.bf16.msra.mxu0 0
    %2411 = vmatprep.subr.bf16.mxu0 0
    %2412 = vmatpush1.bf16.msra.mxu0 0
    %2413 = vmatprep.subr.bf16.mxu0 0
    %2414 = vmatpush1.bf16.msra.mxu0 0
    %2415 = vmatprep.subr.bf16.mxu0 0
    %2416 = vmatpush1.bf16.msra.mxu0 0
    %2417 = vmatprep.subr.bf16.mxu0 0
    %2418 = vmatpush1.bf16.msra.mxu0 0
    %2419 = vmatprep.subr.bf16.mxu0 0
    %2420 = vmatpush1.bf16.msra.mxu0 0
    %2421 = vmatprep.subr.bf16.mxu0 0
    %2422 = vmatpush1.bf16.msra.mxu0 0
    %2423 = vmatprep.subr.bf16.mxu0 0
    %2424 = vmatpush1.bf16.msra.mxu0 0
    %2425 = vmatprep.subr.bf16.mxu0 0
    %2426 = vmatpush1.bf16.msra.mxu0 0
    %2427 = vmatprep.subr.bf16.mxu0 0
    %2428 = vmatpush1.bf16.msra.mxu0 0
    %2429 = vmatprep.mubr.bf16.mxu0 0
    %2430 = vmatmul.mubr.bf16.gmra.mrb[0].mxu0 %v2392
    %v2431 = vpop.f32.mrb[0].mxu0
    %v2432 = vadd.f32 0.0, %v2431
    %v2433 = vpop.f32.mrb[0].mxu0
    %v2434 = vpop.f32.mrb[0].mxu0
    %v2435 = vadd.f32 0.0, %v2434
    %v2436 = vpop.f32.mrb[0].mxu0
    %2437 = vmatprep.mubr.bf16.mxu0 0
    %2438 = vmatmul.mubr.bf16.gmra.mrb[0].mxu0 %v2395
    %v2439 = vpop.f32.mrb[0].mxu0
    %v2440 = vadd.f32 0.0, %v2439
    %v2441 = vpop.f32.mrb[0].mxu0
    %v2442 = vpop.f32.mrb[0].mxu0
    %v2443 = vadd.f32 0.0, %v2442
    %v2444 = vpop.f32.mrb[0].mxu0
    %2445 = vdwg.mxu0
    %2448 = vrot.lane.b32.xlu0 %v2278, 96
    %v2449 = vpop.permute.xlu0 %2448
    %2450 = vrot.lane.b32.xlu0 %v2279, 96
    %v2451 = vpop.permute.xlu0 %2450
    %2454 = vrot.lane.b32.xlu0 %v2280, 96
    %v2455 = vpop.permute.xlu0 %2454
    %2456 = vrot.lane.b32.xlu0 %v2281, 96
    %v2457 = vpop.permute.xlu0 %2456
    %v2459 = vsel %vm615, %v2449, 0
    %v2462 = vsel %vm615, %v2451, 0
    %v2465 = vsel %vm615, %v2455, 0
    %v2468 = vsel %vm615, %v2457, 0
    %2470 = vmatprep.subr.bf16.mxu0 0
    %2471 = vmatpush1.bf16.xpose.msra.mxu0 %v2465
    %2472 = vmatprep.subr.bf16.mxu0 0
    %2473 = vmatpush1.bf16.xpose.msra.mxu0 %v2468
    %2474 = vmatprep.subr.bf16.mxu0 0
    %2475 = vmatpush1.bf16.xpose.msra.mxu0 0
    %2476 = vmatprep.subr.bf16.mxu0 0
    %2477 = vmatpush1.bf16.xpose.msra.mxu0 0
    %2478 = vmatprep.subr.bf16.mxu0 0
    %2479 = vmatpush1.bf16.xpose.msra.mxu0 0
    %2480 = vmatprep.subr.bf16.mxu0 0
    %2481 = vmatpush1.bf16.xpose.msra.mxu0 0
    %2482 = vmatprep.subr.bf16.mxu0 0
    %2483 = vmatpush1.bf16.xpose.msra.mxu0 0
    %2484 = vmatprep.subr.bf16.mxu0 0
    %2485 = vmatpush1.bf16.xpose.msra.mxu0 0
    %2486 = vmatprep.subr.bf16.mxu0 0
    %2487 = vmatpush1.bf16.xpose.msra.mxu0 0
    %2488 = vmatprep.subr.bf16.mxu0 0
    %2489 = vmatpush1.bf16.xpose.msra.mxu0 0
    %2490 = vmatprep.subr.bf16.mxu0 0
    %2491 = vmatpush1.bf16.xpose.msra.mxu0 0
    %2492 = vmatprep.subr.bf16.mxu0 0
    %2493 = vmatpush1.bf16.xpose.msra.mxu0 0
    %2494 = vmatprep.subr.bf16.mxu0 0
    %2495 = vmatpush1.bf16.xpose.msra.mxu0 0
    %2496 = vmatprep.subr.bf16.mxu0 0
    %2497 = vmatpush1.bf16.xpose.msra.mxu0 0
    %2498 = vmatprep.subr.bf16.mxu0 0
    %2499 = vmatpush1.bf16.xpose.msra.mxu0 0
    %2500 = vmatprep.subr.bf16.mxu0 0
    %2501 = vmatpush1.bf16.xpose.msra.mxu0 0
    %2502 = vmatprep.mubr.bf16.mxu0 0
    %2503 = vmatmul.mubr.bf16.gmra.mrb[0].mxu0 %v2459
    %v2504 = vpop.f32.mrb[0].mxu0
    %v2505 = vadd.f32 %v315, %v2504
    %v2506 = vpop.f32.mrb[0].mxu0
    %v2507 = vpop.f32.mrb[0].mxu0
    %v2508 = vadd.f32 %v316, %v2507
    %v2509 = vpop.f32.mrb[0].mxu0
    %2510 = vmatprep.mubr.bf16.mxu0 0
    %2511 = vmatmul.mubr.bf16.gmra.mrb[0].mxu0 %v2462
    %v2512 = vpop.f32.mrb[0].mxu0
    %v2513 = vadd.f32 %v317, %v2512
    %v2514 = vpop.f32.mrb[0].mxu0
    %v2515 = vpop.f32.mrb[0].mxu0
    %v2516 = vadd.f32 %v318, %v2515
    %v2517 = vpop.f32.mrb[0].mxu0
    %2518 = vdwg.mxu0
    %v2519 = vsel %vm615, %v2505, -inf
    %2520 = vmax.xlane.f32.xlu0 %v2519
    %v2521 = vpop.xlane.xlu0 %2520
    %v2522 = vsel %vm615, %v2508, -inf
    %2523 = vmax.xlane.f32.xlu0 %v2522
    %v2524 = vpop.xlane.xlu0 %2523
    %v2525 = vsel %vm615, %v2513, -inf
    %2526 = vmax.xlane.f32.xlu0 %v2525
    %v2527 = vpop.xlane.xlu0 %2526
    %v2528 = vsel %vm615, %v2516, -inf
    %2529 = vmax.xlane.f32.xlu0 %v2528
    %v2530 = vpop.xlane.xlu0 %2529
    %v2531 = vsub.f32 %v2505, %v2521
    %v2532 = vsub.f32 %v2508, %v2524
    %v2533 = vsub.f32 %v2513, %v2527
    %v2534 = vsub.f32 %v2516, %v2530
    %v2535 = vmul.f32 %v2531, 1.442695
    %v2536 = vpow.pop %v2535
    %v2537 = vmul.f32 %v2532, 1.442695
    %v2538 = vpow.pop %v2537
    %v2539 = vmul.f32 %v2533, 1.442695
    %v2540 = vpow.pop %v2539
    %v2541 = vmul.f32 %v2534, 1.442695
    %v2542 = vpow.pop %v2541
    %v2543 = vsel %vm615, %v2536, 0.0
    %2544 = vadd.xlane.f32.xlu0 %v2543
    %v2545 = vpop.xlane.xlu0 %2544
    %v2546 = vsel %vm615, %v2538, 0.0
    %2547 = vadd.xlane.f32.xlu0 %v2546
    %v2548 = vpop.xlane.xlu0 %2547
    %v2549 = vsel %vm615, %v2540, 0.0
    %2550 = vadd.xlane.f32.xlu0 %v2549
    %v2551 = vpop.xlane.xlu0 %2550
    %v2552 = vsel %vm615, %v2542, 0.0
    %2553 = vadd.xlane.f32.xlu0 %v2552
    %v2554 = vpop.xlane.xlu0 %2553
    %v2555 = vrcp.pop %v2545
    %v2556 = vrcp.pop %v2548
    %v2557 = vrcp.pop %v2551
    %v2558 = vrcp.pop %v2554
    %v2559 = vmul.f32 %v2536, %v2555
    %v2560 = vmul.f32 %v2538, %v2556
    %v2561 = vmul.f32 %v2540, %v2557
    %v2562 = vmul.f32 %v2542, %v2558
    %v2563 = vpack.c.bf16 %v2560, %v2559
    %v2564 = vpack.c.bf16 %v2562, %v2561
    %2567 = vrot.lane.b32.xlu0 %v2282, 96
    %v2568 = vpop.permute.xlu0 %2567
    %2569 = vrot.lane.b32.xlu0 %v2283, 96
    %v2570 = vpop.permute.xlu0 %2569
    %v2574 = vsel %vm615, %v2563, 0
    %v2577 = vsel %vm615, %v2564, 0
    %2579 = vmatprep.subr.bf16.mxu0 0
    %2580 = vmatpush1.bf16.msra.mxu0 %v2568
    %2581 = vmatprep.subr.bf16.mxu0 0
    %2582 = vmatpush1.bf16.msra.mxu0 %v2570
    %2583 = vmatprep.subr.bf16.mxu0 0
    %2584 = vmatpush1.bf16.msra.mxu0 0
    %2585 = vmatprep.subr.bf16.mxu0 0
    %2586 = vmatpush1.bf16.msra.mxu0 0
    %2587 = vmatprep.subr.bf16.mxu0 0
    %2588 = vmatpush1.bf16.msra.mxu0 0
    %2589 = vmatprep.subr.bf16.mxu0 0
    %2590 = vmatpush1.bf16.msra.mxu0 0
    %2591 = vmatprep.subr.bf16.mxu0 0
    %2592 = vmatpush1.bf16.msra.mxu0 0
    %2593 = vmatprep.subr.bf16.mxu0 0
    %2594 = vmatpush1.bf16.msra.mxu0 0
    %2595 = vmatprep.subr.bf16.mxu0 0
    %2596 = vmatpush1.bf16.msra.mxu0 0
    %2597 = vmatprep.subr.bf16.mxu0 0
    %2598 = vmatpush1.bf16.msra.mxu0 0
    %2599 = vmatprep.subr.bf16.mxu0 0
    %2600 = vmatpush1.bf16.msra.mxu0 0
    %2601 = vmatprep.subr.bf16.mxu0 0
    %2602 = vmatpush1.bf16.msra.mxu0 0
    %2603 = vmatprep.subr.bf16.mxu0 0
    %2604 = vmatpush1.bf16.msra.mxu0 0
    %2605 = vmatprep.subr.bf16.mxu0 0
    %2606 = vmatpush1.bf16.msra.mxu0 0
    %2607 = vmatprep.subr.bf16.mxu0 0
    %2608 = vmatpush1.bf16.msra.mxu0 0
    %2609 = vmatprep.subr.bf16.mxu0 0
    %2610 = vmatpush1.bf16.msra.mxu0 0
    %2611 = vmatprep.mubr.bf16.mxu0 0
    %2612 = vmatmul.mubr.bf16.gmra.mrb[0].mxu0 %v2574
    %v2613 = vpop.f32.mrb[0].mxu0
    %v2614 = vadd.f32 0.0, %v2613
    %v2615 = vpop.f32.mrb[0].mxu0
    %v2616 = vpop.f32.mrb[0].mxu0
    %v2617 = vadd.f32 0.0, %v2616
    %v2618 = vpop.f32.mrb[0].mxu0
    %2619 = vmatprep.mubr.bf16.mxu0 0
    %2620 = vmatmul.mubr.bf16.gmra.mrb[0].mxu0 %v2577
    %v2621 = vpop.f32.mrb[0].mxu0
    %v2622 = vadd.f32 0.0, %v2621
    %v2623 = vpop.f32.mrb[0].mxu0
    %v2624 = vpop.f32.mrb[0].mxu0
    %v2625 = vadd.f32 0.0, %v2624
    %v2626 = vpop.f32.mrb[0].mxu0
    %2627 = vdwg.mxu0
    %2628 = vrot.lane.b32.xlu0 %v2278, 64
    %v2629 = vpop.permute.xlu0 %2628
    %2630 = vrot.lane.b32.xlu0 %v2279, 64
    %v2631 = vpop.permute.xlu0 %2630
    %2632 = vrot.lane.b32.xlu0 %v2280, 64
    %v2633 = vpop.permute.xlu0 %2632
    %2634 = vrot.lane.b32.xlu0 %v2281, 64
    %v2635 = vpop.permute.xlu0 %2634
    %v2637 = vsel %vm615, %v2629, 0
    %v2640 = vsel %vm615, %v2631, 0
    %v2643 = vsel %vm615, %v2633, 0
    %v2646 = vsel %vm615, %v2635, 0
    %2648 = vmatprep.subr.bf16.mxu0 0
    %2649 = vmatpush1.bf16.xpose.msra.mxu0 %v2643
    %2650 = vmatprep.subr.bf16.mxu0 0
    %2651 = vmatpush1.bf16.xpose.msra.mxu0 %v2646
    %2652 = vmatprep.subr.bf16.mxu0 0
    %2653 = vmatpush1.bf16.xpose.msra.mxu0 0
    %2654 = vmatprep.subr.bf16.mxu0 0
    %2655 = vmatpush1.bf16.xpose.msra.mxu0 0
    %2656 = vmatprep.subr.bf16.mxu0 0
    %2657 = vmatpush1.bf16.xpose.msra.mxu0 0
    %2658 = vmatprep.subr.bf16.mxu0 0
    %2659 = vmatpush1.bf16.xpose.msra.mxu0 0
    %2660 = vmatprep.subr.bf16.mxu0 0
    %2661 = vmatpush1.bf16.xpose.msra.mxu0 0
    %2662 = vmatprep.subr.bf16.mxu0 0
    %2663 = vmatpush1.bf16.xpose.msra.mxu0 0
    %2664 = vmatprep.subr.bf16.mxu0 0
    %2665 = vmatpush1.bf16.xpose.msra.mxu0 0
    %2666 = vmatprep.subr.bf16.mxu0 0
    %2667 = vmatpush1.bf16.xpose.msra.mxu0 0
    %2668 = vmatprep.subr.bf16.mxu0 0
    %2669 = vmatpush1.bf16.xpose.msra.mxu0 0
    %2670 = vmatprep.subr.bf16.mxu0 0
    %2671 = vmatpush1.bf16.xpose.msra.mxu0 0
    %2672 = vmatprep.subr.bf16.mxu0 0
    %2673 = vmatpush1.bf16.xpose.msra.mxu0 0
    %2674 = vmatprep.subr.bf16.mxu0 0
    %2675 = vmatpush1.bf16.xpose.msra.mxu0 0
    %2676 = vmatprep.subr.bf16.mxu0 0
    %2677 = vmatpush1.bf16.xpose.msra.mxu0 0
    %2678 = vmatprep.subr.bf16.mxu0 0
    %2679 = vmatpush1.bf16.xpose.msra.mxu0 0
    %2680 = vmatprep.mubr.bf16.mxu0 0
    %2681 = vmatmul.mubr.bf16.gmra.mrb[0].mxu0 %v2637
    %v2682 = vpop.f32.mrb[0].mxu0
    %v2683 = vadd.f32 %v315, %v2682
    %v2684 = vpop.f32.mrb[0].mxu0
    %v2685 = vpop.f32.mrb[0].mxu0
    %v2686 = vadd.f32 %v316, %v2685
    %v2687 = vpop.f32.mrb[0].mxu0
    %2688 = vmatprep.mubr.bf16.mxu0 0
    %2689 = vmatmul.mubr.bf16.gmra.mrb[0].mxu0 %v2640
    %v2690 = vpop.f32.mrb[0].mxu0
    %v2691 = vadd.f32 %v317, %v2690
    %v2692 = vpop.f32.mrb[0].mxu0
    %v2693 = vpop.f32.mrb[0].mxu0
    %v2694 = vadd.f32 %v318, %v2693
    %v2695 = vpop.f32.mrb[0].mxu0
    %2696 = vdwg.mxu0
    %v2697 = vsel %vm615, %v2683, -inf
    %2698 = vmax.xlane.f32.xlu0 %v2697
    %v2699 = vpop.xlane.xlu0 %2698
    %v2700 = vsel %vm615, %v2686, -inf
    %2701 = vmax.xlane.f32.xlu0 %v2700
    %v2702 = vpop.xlane.xlu0 %2701
    %v2703 = vsel %vm615, %v2691, -inf
    %2704 = vmax.xlane.f32.xlu0 %v2703
    %v2705 = vpop.xlane.xlu0 %2704
    %v2706 = vsel %vm615, %v2694, -inf
    %2707 = vmax.xlane.f32.xlu0 %v2706
    %v2708 = vpop.xlane.xlu0 %2707
    %v2709 = vsub.f32 %v2683, %v2699
    %v2710 = vsub.f32 %v2686, %v2702
    %v2711 = vsub.f32 %v2691, %v2705
    %v2712 = vsub.f32 %v2694, %v2708
    %v2713 = vmul.f32 %v2709, 1.442695
    %v2714 = vpow.pop %v2713
    %v2715 = vmul.f32 %v2710, 1.442695
    %v2716 = vpow.pop %v2715
    %v2717 = vmul.f32 %v2711, 1.442695
    %v2718 = vpow.pop %v2717
    %v2719 = vmul.f32 %v2712, 1.442695
    %v2720 = vpow.pop %v2719
    %v2721 = vsel %vm615, %v2714, 0.0
    %2722 = vadd.xlane.f32.xlu0 %v2721
    %v2723 = vpop.xlane.xlu0 %2722
    %v2724 = vsel %vm615, %v2716, 0.0
    %2725 = vadd.xlane.f32.xlu0 %v2724
    %v2726 = vpop.xlane.xlu0 %2725
    %v2727 = vsel %vm615, %v2718, 0.0
    %2728 = vadd.xlane.f32.xlu0 %v2727
    %v2729 = vpop.xlane.xlu0 %2728
    %v2730 = vsel %vm615, %v2720, 0.0
    %2731 = vadd.xlane.f32.xlu0 %v2730
    %v2732 = vpop.xlane.xlu0 %2731
    %v2733 = vrcp.pop %v2723
    %v2734 = vrcp.pop %v2726
    %v2735 = vrcp.pop %v2729
    %v2736 = vrcp.pop %v2732
    %v2737 = vmul.f32 %v2714, %v2733
    %v2738 = vmul.f32 %v2716, %v2734
    %v2739 = vmul.f32 %v2718, %v2735
    %v2740 = vmul.f32 %v2720, %v2736
    %v2741 = vpack.c.bf16 %v2738, %v2737
    %v2742 = vpack.c.bf16 %v2740, %v2739
    %2743 = vrot.lane.b32.xlu0 %v2282, 64
    %v2744 = vpop.permute.xlu0 %2743
    %2745 = vrot.lane.b32.xlu0 %v2283, 64
    %v2746 = vpop.permute.xlu0 %2745
    %v2750 = vsel %vm615, %v2741, 0
    %v2753 = vsel %vm615, %v2742, 0
    %2755 = vmatprep.subr.bf16.mxu0 0
    %2756 = vmatpush1.bf16.msra.mxu0 %v2744
    %2757 = vmatprep.subr.bf16.mxu0 0
    %2758 = vmatpush1.bf16.msra.mxu0 %v2746
    %2759 = vmatprep.subr.bf16.mxu0 0
    %2760 = vmatpush1.bf16.msra.mxu0 0
    %2761 = vmatprep.subr.bf16.mxu0 0
    %2762 = vmatpush1.bf16.msra.mxu0 0
    %2763 = vmatprep.subr.bf16.mxu0 0
    %2764 = vmatpush1.bf16.msra.mxu0 0
    %2765 = vmatprep.subr.bf16.mxu0 0
    %2766 = vmatpush1.bf16.msra.mxu0 0
    %2767 = vmatprep.subr.bf16.mxu0 0
    %2768 = vmatpush1.bf16.msra.mxu0 0
    %2769 = vmatprep.subr.bf16.mxu0 0
    %2770 = vmatpush1.bf16.msra.mxu0 0
    %2771 = vmatprep.subr.bf16.mxu0 0
    %2772 = vmatpush1.bf16.msra.mxu0 0
    %2773 = vmatprep.subr.bf16.mxu0 0
    %2774 = vmatpush1.bf16.msra.mxu0 0
    %2775 = vmatprep.subr.bf16.mxu0 0
    %2776 = vmatpush1.bf16.msra.mxu0 0
    %2777 = vmatprep.subr.bf16.mxu0 0
    %2778 = vmatpush1.bf16.msra.mxu0 0
    %2779 = vmatprep.subr.bf16.mxu0 0
    %2780 = vmatpush1.bf16.msra.mxu0 0
    %2781 = vmatprep.subr.bf16.mxu0 0
    %2782 = vmatpush1.bf16.msra.mxu0 0
    %2783 = vmatprep.subr.bf16.mxu0 0
    %2784 = vmatpush1.bf16.msra.mxu0 0
    %2785 = vmatprep.subr.bf16.mxu0 0
    %2786 = vmatpush1.bf16.msra.mxu0 0
    %2787 = vmatprep.mubr.bf16.mxu0 0
    %2788 = vmatmul.mubr.bf16.gmra.mrb[0].mxu0 %v2750
    %v2789 = vpop.f32.mrb[0].mxu0
    %v2790 = vadd.f32 0.0, %v2789
    %v2791 = vpop.f32.mrb[0].mxu0
    %v2792 = vpop.f32.mrb[0].mxu0
    %v2793 = vadd.f32 0.0, %v2792
    %v2794 = vpop.f32.mrb[0].mxu0
    %2795 = vmatprep.mubr.bf16.mxu0 0
    %2796 = vmatmul.mubr.bf16.gmra.mrb[0].mxu0 %v2753
    %v2797 = vpop.f32.mrb[0].mxu0
    %v2798 = vadd.f32 0.0, %v2797
    %v2799 = vpop.f32.mrb[0].mxu0
    %v2800 = vpop.f32.mrb[0].mxu0
    %v2801 = vadd.f32 0.0, %v2800
    %v2802 = vpop.f32.mrb[0].mxu0
    %2803 = vdwg.mxu0
    %2804 = vrot.lane.b32.xlu0 %v2278, 32
    %v2805 = vpop.permute.xlu0 %2804
    %2806 = vrot.lane.b32.xlu0 %v2279, 32
    %v2807 = vpop.permute.xlu0 %2806
    %2808 = vrot.lane.b32.xlu0 %v2280, 32
    %v2809 = vpop.permute.xlu0 %2808
    %2810 = vrot.lane.b32.xlu0 %v2281, 32
    %v2811 = vpop.permute.xlu0 %2810
    %v2813 = vsel %vm615, %v2805, 0
    %v2816 = vsel %vm615, %v2807, 0
    %v2819 = vsel %vm615, %v2809, 0
    %v2822 = vsel %vm615, %v2811, 0
    %2824 = vmatprep.subr.bf16.mxu0 0
    %2825 = vmatpush1.bf16.xpose.msra.mxu0 %v2819
    %2826 = vmatprep.subr.bf16.mxu0 0
    %2827 = vmatpush1.bf16.xpose.msra.mxu0 %v2822
    %2828 = vmatprep.subr.bf16.mxu0 0
    %2829 = vmatpush1.bf16.xpose.msra.mxu0 0
    %2830 = vmatprep.subr.bf16.mxu0 0
    %2831 = vmatpush1.bf16.xpose.msra.mxu0 0
    %2832 = vmatprep.subr.bf16.mxu0 0
    %2833 = vmatpush1.bf16.xpose.msra.mxu0 0
    %2834 = vmatprep.subr.bf16.mxu0 0
    %2835 = vmatpush1.bf16.xpose.msra.mxu0 0
    %2836 = vmatprep.subr.bf16.mxu0 0
    %2837 = vmatpush1.bf16.xpose.msra.mxu0 0
    %2838 = vmatprep.subr.bf16.mxu0 0
    %2839 = vmatpush1.bf16.xpose.msra.mxu0 0
    %2840 = vmatprep.subr.bf16.mxu0 0
    %2841 = vmatpush1.bf16.xpose.msra.mxu0 0
    %2842 = vmatprep.subr.bf16.mxu0 0
    %2843 = vmatpush1.bf16.xpose.msra.mxu0 0
    %2844 = vmatprep.subr.bf16.mxu0 0
    %2845 = vmatpush1.bf16.xpose.msra.mxu0 0
    %2846 = vmatprep.subr.bf16.mxu0 0
    %2847 = vmatpush1.bf16.xpose.msra.mxu0 0
    %2848 = vmatprep.subr.bf16.mxu0 0
    %2849 = vmatpush1.bf16.xpose.msra.mxu0 0
    %2850 = vmatprep.subr.bf16.mxu0 0
    %2851 = vmatpush1.bf16.xpose.msra.mxu0 0
    %2852 = vmatprep.subr.bf16.mxu0 0
    %2853 = vmatpush1.bf16.xpose.msra.mxu0 0
    %2854 = vmatprep.subr.bf16.mxu0 0
    %2855 = vmatpush1.bf16.xpose.msra.mxu0 0
    %2856 = vmatprep.mubr.bf16.mxu0 0
    %2857 = vmatmul.mubr.bf16.gmra.mrb[0].mxu0 %v2813
    %v2858 = vpop.f32.mrb[0].mxu0
    %v2859 = vadd.f32 %v315, %v2858
    %v2860 = vpop.f32.mrb[0].mxu0
    %v2861 = vpop.f32.mrb[0].mxu0
    %v2862 = vadd.f32 %v316, %v2861
    %v2863 = vpop.f32.mrb[0].mxu0
    %2864 = vmatprep.mubr.bf16.mxu0 0
    %2865 = vmatmul.mubr.bf16.gmra.mrb[0].mxu0 %v2816
    %v2866 = vpop.f32.mrb[0].mxu0
    %v2867 = vadd.f32 %v317, %v2866
    %v2868 = vpop.f32.mrb[0].mxu0
    %v2869 = vpop.f32.mrb[0].mxu0
    %v2870 = vadd.f32 %v318, %v2869
    %v2871 = vpop.f32.mrb[0].mxu0
    %2872 = vdwg.mxu0
    %v2873 = vsel %vm615, %v2859, -inf
    %2874 = vmax.xlane.f32.xlu0 %v2873
    %v2875 = vpop.xlane.xlu0 %2874
    %v2876 = vsel %vm615, %v2862, -inf
    %2877 = vmax.xlane.f32.xlu0 %v2876
    %v2878 = vpop.xlane.xlu0 %2877
    %v2879 = vsel %vm615, %v2867, -inf
    %2880 = vmax.xlane.f32.xlu0 %v2879
    %v2881 = vpop.xlane.xlu0 %2880
    %v2882 = vsel %vm615, %v2870, -inf
    %2883 = vmax.xlane.f32.xlu0 %v2882
    %v2884 = vpop.xlane.xlu0 %2883
    %v2885 = vsub.f32 %v2859, %v2875
    %v2886 = vsub.f32 %v2862, %v2878
    %v2887 = vsub.f32 %v2867, %v2881
    %v2888 = vsub.f32 %v2870, %v2884
    %v2889 = vmul.f32 %v2885, 1.442695
    %v2890 = vpow.pop %v2889
    %v2891 = vmul.f32 %v2886, 1.442695
    %v2892 = vpow.pop %v2891
    %v2893 = vmul.f32 %v2887, 1.442695
    %v2894 = vpow.pop %v2893
    %v2895 = vmul.f32 %v2888, 1.442695
    %v2896 = vpow.pop %v2895
    %v2897 = vsel %vm615, %v2890, 0.0
    %2898 = vadd.xlane.f32.xlu0 %v2897
    %v2899 = vpop.xlane.xlu0 %2898
    %v2900 = vsel %vm615, %v2892, 0.0
    %2901 = vadd.xlane.f32.xlu0 %v2900
    %v2902 = vpop.xlane.xlu0 %2901
    %v2903 = vsel %vm615, %v2894, 0.0
    %2904 = vadd.xlane.f32.xlu0 %v2903
    %v2905 = vpop.xlane.xlu0 %2904
    %v2906 = vsel %vm615, %v2896, 0.0
    %2907 = vadd.xlane.f32.xlu0 %v2906
    %v2908 = vpop.xlane.xlu0 %2907
    %v2909 = vrcp.pop %v2899
    %v2910 = vrcp.pop %v2902
    %v2911 = vrcp.pop %v2905
    %v2912 = vrcp.pop %v2908
    %v2913 = vmul.f32 %v2890, %v2909
    %v2914 = vmul.f32 %v2892, %v2910
    %v2915 = vmul.f32 %v2894, %v2911
    %v2916 = vmul.f32 %v2896, %v2912
    %v2917 = vpack.c.bf16 %v2914, %v2913
    %v2918 = vpack.c.bf16 %v2916, %v2915
    %2919 = vrot.lane.b32.xlu0 %v2282, 32
    %v2920 = vpop.permute.xlu0 %2919
    %2921 = vrot.lane.b32.xlu0 %v2283, 32
    %v2922 = vpop.permute.xlu0 %2921
    %v2926 = vsel %vm615, %v2917, 0
    %v2929 = vsel %vm615, %v2918, 0
    %2931 = vmatprep.subr.bf16.mxu0 0
    %2932 = vmatpush1.bf16.msra.mxu0 %v2920
    %2933 = vmatprep.subr.bf16.mxu0 0
    %2934 = vmatpush1.bf16.msra.mxu0 %v2922
    %2935 = vmatprep.subr.bf16.mxu0 0
    %2936 = vmatpush1.bf16.msra.mxu0 0
    %2937 = vmatprep.subr.bf16.mxu0 0
    %2938 = vmatpush1.bf16.msra.mxu0 0
    %2939 = vmatprep.subr.bf16.mxu0 0
    %2940 = vmatpush1.bf16.msra.mxu0 0
    %2941 = vmatprep.subr.bf16.mxu0 0
    %2942 = vmatpush1.bf16.msra.mxu0 0
    %2943 = vmatprep.subr.bf16.mxu0 0
    %2944 = vmatpush1.bf16.msra.mxu0 0
    %2945 = vmatprep.subr.bf16.mxu0 0
    %2946 = vmatpush1.bf16.msra.mxu0 0
    %2947 = vmatprep.subr.bf16.mxu0 0
    %2948 = vmatpush1.bf16.msra.mxu0 0
    %2949 = vmatprep.subr.bf16.mxu0 0
    %2950 = vmatpush1.bf16.msra.mxu0 0
    %2951 = vmatprep.subr.bf16.mxu0 0
    %2952 = vmatpush1.bf16.msra.mxu0 0
    %2953 = vmatprep.subr.bf16.mxu0 0
    %2954 = vmatpush1.bf16.msra.mxu0 0
    %2955 = vmatprep.subr.bf16.mxu0 0
    %2956 = vmatpush1.bf16.msra.mxu0 0
    %2957 = vmatprep.subr.bf16.mxu0 0
    %2958 = vmatpush1.bf16.msra.mxu0 0
    %2959 = vmatprep.subr.bf16.mxu0 0
    %2960 = vmatpush1.bf16.msra.mxu0 0
    %2961 = vmatprep.subr.bf16.mxu0 0
    %2962 = vmatpush1.bf16.msra.mxu0 0
    %2963 = vmatprep.mubr.bf16.mxu0 0
    %2964 = vmatmul.mubr.bf16.gmra.mrb[0].mxu0 %v2926
    %v2965 = vpop.f32.mrb[0].mxu0
    %v2966 = vadd.f32 0.0, %v2965
    %v2967 = vpop.f32.mrb[0].mxu0
    %v2968 = vpop.f32.mrb[0].mxu0
    %v2969 = vadd.f32 0.0, %v2968
    %v2970 = vpop.f32.mrb[0].mxu0
    %2971 = vmatprep.mubr.bf16.mxu0 0
    %2972 = vmatmul.mubr.bf16.gmra.mrb[0].mxu0 %v2929
    %v2973 = vpop.f32.mrb[0].mxu0
    %v2974 = vadd.f32 0.0, %v2973
    %v2975 = vpop.f32.mrb[0].mxu0
    %v2976 = vpop.f32.mrb[0].mxu0
    %v2977 = vadd.f32 0.0, %v2976
    %v2978 = vpop.f32.mrb[0].mxu0
    %2979 = vdwg.mxu0
    %2984 = vrot.lane.b32.xlu0 %v2614, 32
    %v2985 = vpop.permute.xlu0 %2984
    %2986 = vrot.lane.b32.xlu0 %v2617, 32
    %v2987 = vpop.permute.xlu0 %2986
    %2988 = vrot.lane.b32.xlu0 %v2622, 32
    %v2989 = vpop.permute.xlu0 %2988
    %2990 = vrot.lane.b32.xlu0 %v2625, 32
    %v2991 = vpop.permute.xlu0 %2990
    %3000 = vrot.lane.b32.xlu0 %v2790, 64
    %v3001 = vpop.permute.xlu0 %3000
    %3002 = vrot.lane.b32.xlu0 %v2793, 64
    %v3003 = vpop.permute.xlu0 %3002
    %3004 = vrot.lane.b32.xlu0 %v2798, 64
    %v3005 = vpop.permute.xlu0 %3004
    %3006 = vrot.lane.b32.xlu0 %v2801, 64
    %v3007 = vpop.permute.xlu0 %3006
    %3016 = vrot.lane.b32.xlu0 %v2966, 96
    %v3017 = vpop.permute.xlu0 %3016
    %3018 = vrot.lane.b32.xlu0 %v2969, 96
    %v3019 = vpop.permute.xlu0 %3018
    %3020 = vrot.lane.b32.xlu0 %v2974, 96
    %v3021 = vpop.permute.xlu0 %3020
    %3022 = vrot.lane.b32.xlu0 %v2977, 96
    %v3023 = vpop.permute.xlu0 %3022
    %v3028 = vsel %vm615, %v2432, %v2985
    %v3029 = vsel %vm615, %v2435, %v2987
    %v3030 = vsel %vm615, %v2440, %v2989
    %v3031 = vsel %vm615, %v2443, %v2991
    %v3032 = vsel %vm1364, %v3028, %v3001
    %v3033 = vsel %vm1364, %v3029, %v3003
    %v3034 = vsel %vm1364, %v3030, %v3005
    %v3035 = vsel %vm1364, %v3031, %v3007
    %v3036 = vsel %vm1369, %v3032, %v3017
    %v3037 = vsel %vm1369, %v3033, %v3019
    %v3038 = vsel %vm1369, %v3034, %v3021
    %v3039 = vsel %vm1369, %v3035, %v3023
    %v3040 = vpack.c.bf16 %v3037, %v3036
    %v3041 = vpack.c.bf16 %v3039, %v3038
    %v3042 = vunpack.c.h.b16 %v1988
    %v3043 = vunpack.c.h.b16 %v1991
    %v3044 = vunpack.c.h.b16 %v1994
    %v3045 = vunpack.c.h.b16 %v1997
    %v3046 = vunpack.c.h.b16 %v2000
    %v3047 = vunpack.c.h.b16 %v2003
    %v3048 = vunpack.c.h.b16 %v2006
    %v3049 = vunpack.c.h.b16 %v2009
    %v3050 = vunpack.c.h.b16 %v2012
    %v3051 = vunpack.c.h.b16 %v2015
    %v3052 = vunpack.c.h.b16 %v2018
    %v3053 = vunpack.c.h.b16 %v2021
    %v3054 = vunpack.c.h.b16 %v2024
    %v3055 = vunpack.c.h.b16 %v2027
    %v3056 = vunpack.c.h.b16 %v2030
    %v3057 = vunpack.c.h.b16 %v2033
    %v3058 = vpack.c.b16 %v3043, %v3042
    %v3059 = vpack.c.b16 %v3045, %v3044
    %v3060 = vpack.c.b16 %v3047, %v3046
    %v3061 = vpack.c.b16 %v3049, %v3048
    %v3062 = vpack.c.b16 %v3051, %v3050
    %v3063 = vpack.c.b16 %v3053, %v3052
    %v3064 = vpack.c.b16 %v3055, %v3054
    %v3065 = vpack.c.b16 %v3057, %v3056
    %3074 = vmatprep.subr.bf16.mxu0 0
    %3075 = vmatpush1.bf16.msra.mxu0 %v3058
    %3076 = vmatprep.subr.bf16.mxu0 0
    %3077 = vmatpush1.bf16.msra.mxu0 %v3059
    %3078 = vmatprep.subr.bf16.mxu0 0
    %3079 = vmatpush1.bf16.msra.mxu0 %v3060
    %3080 = vmatprep.subr.bf16.mxu0 0
    %3081 = vmatpush1.bf16.msra.mxu0 %v3061
    %3082 = vmatprep.subr.bf16.mxu0 0
    %3083 = vmatpush1.bf16.msra.mxu0 %v3062
    %3084 = vmatprep.subr.bf16.mxu0 0
    %3085 = vmatpush1.bf16.msra.mxu0 %v3063
    %3086 = vmatprep.subr.bf16.mxu0 0
    %3087 = vmatpush1.bf16.msra.mxu0 %v3064
    %3088 = vmatprep.subr.bf16.mxu0 0
    %3089 = vmatpush1.bf16.msra.mxu0 %v3065
    %3090 = vmatprep.subr.bf16.mxu0 0
    %3091 = vmatpush1.bf16.msra.mxu0 0
    %3092 = vmatprep.subr.bf16.mxu0 0
    %3093 = vmatpush1.bf16.msra.mxu0 0
    %3094 = vmatprep.subr.bf16.mxu0 0
    %3095 = vmatpush1.bf16.msra.mxu0 0
    %3096 = vmatprep.subr.bf16.mxu0 0
    %3097 = vmatpush1.bf16.msra.mxu0 0
    %3098 = vmatprep.subr.bf16.mxu0 0
    %3099 = vmatpush1.bf16.msra.mxu0 0
    %3100 = vmatprep.subr.bf16.mxu0 0
    %3101 = vmatpush1.bf16.msra.mxu0 0
    %3102 = vmatprep.subr.bf16.mxu0 0
    %3103 = vmatpush1.bf16.msra.mxu0 0
    %3104 = vmatprep.subr.bf16.mxu0 0
    %3105 = vmatpush1.bf16.msra.mxu0 0
    %3106 = vmatprep.mubr.bf16.mxu0 0
    %3107 = vmatmul.mubr.bf16.gmra.mrb[0].mxu0 %v3040
    %v3108 = vpop.f32.mrb[0].mxu0
    %v3109 = vadd.f32 0.0, %v3108
    %v3110 = vpop.f32.mrb[0].mxu0
    %v3111 = vpop.f32.mrb[0].mxu0
    %v3112 = vadd.f32 0.0, %v3111
    %v3113 = vpop.f32.mrb[0].mxu0
    %3114 = vmatprep.mubr.bf16.mxu0 0
    %3115 = vmatmul.mubr.bf16.gmra.mrb[0].mxu0 %v3041
    %v3116 = vpop.f32.mrb[0].mxu0
    %v3117 = vadd.f32 0.0, %v3116
    %v3118 = vpop.f32.mrb[0].mxu0
    %v3119 = vpop.f32.mrb[0].mxu0
    %v3120 = vadd.f32 0.0, %v3119
    %v3121 = vpop.f32.mrb[0].mxu0
    %3122 = vdwg.mxu0
    %v3123 = vadd.f32 %v1982, %v3109
    %v3124 = vadd.f32 %v1983, %v3112
    %v3125 = vadd.f32 %v1984, %v3117
    %v3126 = vadd.f32 %v1985, %v3120
    %3127 = vadd.xlane.f32.xlu0 %v3123
    %v3128 = vpop.xlane.xlu0 %3127
    %3129 = vadd.xlane.f32.xlu0 %v3124
    %v3130 = vpop.xlane.xlu0 %3129
    %3131 = vadd.xlane.f32.xlu0 %v3125
    %v3132 = vpop.xlane.xlu0 %3131
    %3133 = vadd.xlane.f32.xlu0 %v3126
    %v3134 = vpop.xlane.xlu0 %3133
    %v3135 = vmul.f32 %v3128, %v1469
    %v3136 = vmul.f32 %v3130, %v1469
    %v3137 = vmul.f32 %v3132, %v1469
    %v3138 = vmul.f32 %v3134, %v1469
    %v3139 = vsub.f32 %v3123, %v3135
    %v3140 = vsub.f32 %v3124, %v3136
    %v3141 = vsub.f32 %v3125, %v3137
    %v3142 = vsub.f32 %v3126, %v3138
    %v3143 = vmul.f32 %v3139, %v3139
    %v3144 = vmul.f32 %v3140, %v3140
    %v3145 = vmul.f32 %v3141, %v3141
    %v3146 = vmul.f32 %v3142, %v3142
    %3147 = vadd.xlane.f32.xlu0 %v3143
    %v3148 = vpop.xlane.xlu0 %3147
    %3149 = vadd.xlane.f32.xlu0 %v3144
    %v3150 = vpop.xlane.xlu0 %3149
    %3151 = vadd.xlane.f32.xlu0 %v3145
    %v3152 = vpop.xlane.xlu0 %3151
    %3153 = vadd.xlane.f32.xlu0 %v3146
    %v3154 = vpop.xlane.xlu0 %3153
    %v3155 = vmul.f32 %v3148, %v1469
    %v3156 = vmul.f32 %v3150, %v1469
    %v3157 = vmul.f32 %v3152, %v1469
    %v3158 = vmul.f32 %v3154, %v1469
    %v3159 = vadd.f32 %v3155, 1e-12
    %v3160 = vadd.f32 %v3156, 1e-12
    %v3161 = vadd.f32 %v3157, 1e-12
    %v3162 = vadd.f32 %v3158, 1e-12
    %v3163 = vrsqrt.pop %v3159
    %v3164 = vrsqrt.pop %v3160
    %v3165 = vrsqrt.pop %v3161
    %v3166 = vrsqrt.pop %v3162
    %v3167 = vmul.f32 %v3139, %v3163
    %v3168 = vmul.f32 %v3140, %v3164
    %v3169 = vmul.f32 %v3141, %v3165
    %v3170 = vmul.f32 %v3142, %v3166
    %v3171 = vlaneseq
    %v3172 = vshrl.u32 %v3171, 7
    %v3173 = vsub.s32 1, %v3172
    %v3174 = vrot.slane %v2036, %v3173
    %v3175 = vmul.f32 %v3167, %v3174
    %v3176 = vmul.f32 %v3168, %v3174
    %v3177 = vmul.f32 %v3169, %v3174
    %v3178 = vmul.f32 %v3170, %v3174
    %v3179 = vlaneseq
    %v3180 = vshrl.u32 %v3179, 7
    %v3181 = vsub.s32 2, %v3180
    %v3182 = vrot.slane %v2036, %v3181
    %v3183 = vadd.f32 %v3175, %v3182
    %v3184 = vadd.f32 %v3176, %v3182
    %v3185 = vadd.f32 %v3177, %v3182
    %v3186 = vadd.f32 %v3178, %v3182
    %v3187 = vpack.c.bf16 %v3184, %v3183
    %v3188 = vpack.c.bf16 %v3186, %v3185
    %v3189 = vlaneseq
    %v3190 = vshrl.u32 %v3189, 7
    %v3191 = vsub.s32 3, %v3190
    %v3192 = vrot.slane %v2036, %v3191
    %v3193 = vlaneseq
    %v3194 = vshrl.u32 %v3193, 7
    %v3195 = vsub.s32 3, %v3194
    %v3196 = vrot.slane %v2037, %v3195
    %v3213 = vunpack.c.l.b16 %v1989
    %v3214 = vunpack.c.h.b16 %v1989
    %v3215 = vunpack.c.l.b16 %v1992
    %v3216 = vunpack.c.h.b16 %v1992
    %v3217 = vunpack.c.l.b16 %v1995
    %v3218 = vunpack.c.h.b16 %v1995
    %v3219 = vunpack.c.l.b16 %v1998
    %v3220 = vunpack.c.h.b16 %v1998
    %v3221 = vunpack.c.l.b16 %v2001
    %v3222 = vunpack.c.h.b16 %v2001
    %v3223 = vunpack.c.l.b16 %v2004
    %v3224 = vunpack.c.h.b16 %v2004
    %v3225 = vunpack.c.l.b16 %v2007
    %v3226 = vunpack.c.h.b16 %v2007
    %v3227 = vunpack.c.l.b16 %v2010
    %v3228 = vunpack.c.h.b16 %v2010
    %v3229 = vunpack.c.l.b16 %v2013
    %v3230 = vunpack.c.h.b16 %v2013
    %v3231 = vunpack.c.l.b16 %v2016
    %v3232 = vunpack.c.h.b16 %v2016
    %v3233 = vunpack.c.l.b16 %v2019
    %v3234 = vunpack.c.h.b16 %v2019
    %v3235 = vunpack.c.l.b16 %v2022
    %v3236 = vunpack.c.h.b16 %v2022
    %v3237 = vunpack.c.l.b16 %v2025
    %v3238 = vunpack.c.h.b16 %v2025
    %v3239 = vunpack.c.l.b16 %v2028
    %v3240 = vunpack.c.h.b16 %v2028
    %v3241 = vunpack.c.l.b16 %v2031
    %v3242 = vunpack.c.h.b16 %v2031
    %v3243 = vunpack.c.l.b16 %v2034
    %v3244 = vunpack.c.h.b16 %v2034
    %v3245 = vpack.c.b16 %v3215, %v3213
    %v3246 = vpack.c.b16 %v3216, %v3214
    %v3247 = vpack.c.b16 %v3219, %v3217
    %v3248 = vpack.c.b16 %v3220, %v3218
    %v3249 = vpack.c.b16 %v3223, %v3221
    %v3250 = vpack.c.b16 %v3224, %v3222
    %v3251 = vpack.c.b16 %v3227, %v3225
    %v3252 = vpack.c.b16 %v3228, %v3226
    %v3253 = vpack.c.b16 %v3231, %v3229
    %v3254 = vpack.c.b16 %v3232, %v3230
    %v3255 = vpack.c.b16 %v3235, %v3233
    %v3256 = vpack.c.b16 %v3236, %v3234
    %v3257 = vpack.c.b16 %v3239, %v3237
    %v3258 = vpack.c.b16 %v3240, %v3238
    %v3259 = vpack.c.b16 %v3243, %v3241
    %v3260 = vpack.c.b16 %v3244, %v3242
    %3277 = vmatprep.subr.bf16.mxu0 %v3246
    %3278 = vmatpush1.bf16.msra.mxu0 %v3245
    %3279 = vmatprep.subr.bf16.mxu0 %v3248
    %3280 = vmatpush1.bf16.msra.mxu0 %v3247
    %3281 = vmatprep.subr.bf16.mxu0 %v3250
    %3282 = vmatpush1.bf16.msra.mxu0 %v3249
    %3283 = vmatprep.subr.bf16.mxu0 %v3252
    %3284 = vmatpush1.bf16.msra.mxu0 %v3251
    %3285 = vmatprep.subr.bf16.mxu0 %v3254
    %3286 = vmatpush1.bf16.msra.mxu0 %v3253
    %3287 = vmatprep.subr.bf16.mxu0 %v3256
    %3288 = vmatpush1.bf16.msra.mxu0 %v3255
    %3289 = vmatprep.subr.bf16.mxu0 %v3258
    %3290 = vmatpush1.bf16.msra.mxu0 %v3257
    %3291 = vmatprep.subr.bf16.mxu0 %v3260
    %3292 = vmatpush1.bf16.msra.mxu0 %v3259
    %3293 = vmatprep.subr.bf16.mxu0 0
    %3294 = vmatpush1.bf16.msra.mxu0 0
    %3295 = vmatprep.subr.bf16.mxu0 0
    %3296 = vmatpush1.bf16.msra.mxu0 0
    %3297 = vmatprep.subr.bf16.mxu0 0
    %3298 = vmatpush1.bf16.msra.mxu0 0
    %3299 = vmatprep.subr.bf16.mxu0 0
    %3300 = vmatpush1.bf16.msra.mxu0 0
    %3301 = vmatprep.subr.bf16.mxu0 0
    %3302 = vmatpush1.bf16.msra.mxu0 0
    %3303 = vmatprep.subr.bf16.mxu0 0
    %3304 = vmatpush1.bf16.msra.mxu0 0
    %3305 = vmatprep.subr.bf16.mxu0 0
    %3306 = vmatpush1.bf16.msra.mxu0 0
    %3307 = vmatprep.subr.bf16.mxu0 0
    %3308 = vmatpush1.bf16.msra.mxu0 0
    %3309 = vmatprep.mubr.bf16.mxu0 0
    %3310 = vmatmul.mubr.bf16.gmra.mrb[0].mxu0 %v3187
    %v3311 = vpop.f32.mrb[0].mxu0
    %v3312 = vadd.f32 %v3192, %v3311
    %v3313 = vpop.f32.mrb[0].mxu0
    %v3314 = vadd.f32 %v3196, %v3313
    %v3315 = vpop.f32.mrb[0].mxu0
    %v3316 = vadd.f32 %v3192, %v3315
    %v3317 = vpop.f32.mrb[0].mxu0
    %v3318 = vadd.f32 %v3196, %v3317
    %3319 = vmatprep.mubr.bf16.mxu0 0
    %3320 = vmatmul.mubr.bf16.gmra.mrb[0].mxu0 %v3188
    %v3321 = vpop.f32.mrb[0].mxu0
    %v3322 = vadd.f32 %v3192, %v3321
    %v3323 = vpop.f32.mrb[0].mxu0
    %v3324 = vadd.f32 %v3196, %v3323
    %v3325 = vpop.f32.mrb[0].mxu0
    %v3326 = vadd.f32 %v3192, %v3325
    %v3327 = vpop.f32.mrb[0].mxu0
    %v3328 = vadd.f32 %v3196, %v3327
    %3329 = vdwg.mxu0
    %v3330 = vmul.f32 %v3312, %v3312
    %v3331 = vmul.f32 %v3314, %v3314
    %v3332 = vmul.f32 %v3316, %v3316
    %v3333 = vmul.f32 %v3318, %v3318
    %v3334 = vmul.f32 %v3322, %v3322
    %v3335 = vmul.f32 %v3324, %v3324
    %v3336 = vmul.f32 %v3326, %v3326
    %v3337 = vmul.f32 %v3328, %v3328
    %v3338 = vmul.f32 %v3312, %v3330
    %v3339 = vmul.f32 %v3314, %v3331
    %v3340 = vmul.f32 %v3316, %v3332
    %v3341 = vmul.f32 %v3318, %v3333
    %v3342 = vmul.f32 %v3322, %v3334
    %v3343 = vmul.f32 %v3324, %v3335
    %v3344 = vmul.f32 %v3326, %v3336
    %v3345 = vmul.f32 %v3328, %v3337
    %v3346 = vmul.f32 %v3338, 0.044715
    %v3347 = vmul.f32 %v3339, 0.044715
    %v3348 = vmul.f32 %v3340, 0.044715
    %v3349 = vmul.f32 %v3341, 0.044715
    %v3350 = vmul.f32 %v3342, 0.044715
    %v3351 = vmul.f32 %v3343, 0.044715
    %v3352 = vmul.f32 %v3344, 0.044715
    %v3353 = vmul.f32 %v3345, 0.044715
    %v3354 = vadd.f32 %v3312, %v3346
    %v3355 = vadd.f32 %v3314, %v3347
    %v3356 = vadd.f32 %v3316, %v3348
    %v3357 = vadd.f32 %v3318, %v3349
    %v3358 = vadd.f32 %v3322, %v3350
    %v3359 = vadd.f32 %v3324, %v3351
    %v3360 = vadd.f32 %v3326, %v3352
    %v3361 = vadd.f32 %v3328, %v3353
    %v3362 = vmul.f32 %v3354, 0.7978846
    %v3363 = vmul.f32 %v3355, 0.7978846
    %v3364 = vmul.f32 %v3356, 0.7978846
    %v3365 = vmul.f32 %v3357, 0.7978846
    %v3366 = vmul.f32 %v3358, 0.7978846
    %v3367 = vmul.f32 %v3359, 0.7978846
    %v3368 = vmul.f32 %v3360, 0.7978846
    %v3369 = vmul.f32 %v3361, 0.7978846
    %v3370 = vtanh.pop %v3362
    %v3371 = vtanh.pop %v3363
    %v3372 = vtanh.pop %v3364
    %v3373 = vtanh.pop %v3365
    %v3374 = vtanh.pop %v3366
    %v3375 = vtanh.pop %v3367
    %v3376 = vtanh.pop %v3368
    %v3377 = vtanh.pop %v3369
    %v3378 = vadd.f32 %v3370, 1.0
    %v3379 = vadd.f32 %v3371, 1.0
    %v3380 = vadd.f32 %v3372, 1.0
    %v3381 = vadd.f32 %v3373, 1.0
    %v3382 = vadd.f32 %v3374, 1.0
    %v3383 = vadd.f32 %v3375, 1.0
    %v3384 = vadd.f32 %v3376, 1.0
    %v3385 = vadd.f32 %v3377, 1.0
    %v3386 = vmul.f32 %v3378, 0.5
    %v3387 = vmul.f32 %v3379, 0.5
    %v3388 = vmul.f32 %v3380, 0.5
    %v3389 = vmul.f32 %v3381, 0.5
    %v3390 = vmul.f32 %v3382, 0.5
    %v3391 = vmul.f32 %v3383, 0.5
    %v3392 = vmul.f32 %v3384, 0.5
    %v3393 = vmul.f32 %v3385, 0.5
    %v3394 = vmul.f32 %v3312, %v3386
    %v3395 = vmul.f32 %v3314, %v3387
    %v3396 = vmul.f32 %v3316, %v3388
    %v3397 = vmul.f32 %v3318, %v3389
    %v3398 = vmul.f32 %v3322, %v3390
    %v3399 = vmul.f32 %v3324, %v3391
    %v3400 = vmul.f32 %v3326, %v3392
    %v3401 = vmul.f32 %v3328, %v3393
    %v3402 = vld [vmem:[#allocation5 + $0x80] sm:$0xf]
    %v3403 = vld [vmem:[#allocation5 + $0x84] sm:$0xf]
    %v3404 = vld [vmem:[#allocation5 + $0x88] sm:$0xf]
    %v3405 = vld [vmem:[#allocation5 + $0x8c] sm:$0xf]
    %v3406 = vld [vmem:[#allocation5 + $0x90] sm:$0xf]
    %v3407 = vld [vmem:[#allocation5 + $0x94] sm:$0xf]
    %v3408 = vld [vmem:[#allocation5 + $0x98] sm:$0xf]
    %v3409 = vld [vmem:[#allocation5 + $0x9c] sm:$0xf]
    %v3410 = vld [vmem:[#allocation5 + $0xa0] sm:$0xf]
    %v3411 = vld [vmem:[#allocation5 + $0xa4] sm:$0xf]
    %v3412 = vld [vmem:[#allocation5 + $0xa8] sm:$0xf]
    %v3413 = vld [vmem:[#allocation5 + $0xac] sm:$0xf]
    %v3414 = vld [vmem:[#allocation5 + $0xb0] sm:$0xf]
    %v3415 = vld [vmem:[#allocation5 + $0xb4] sm:$0xf]
    %v3416 = vld [vmem:[#allocation5 + $0xb8] sm:$0xf]
    %v3417 = vld [vmem:[#allocation5 + $0xbc] sm:$0xf]
    %v3418 = vld [vmem:[#allocation5 + $0xc0] sm:$0xf]
    %v3419 = vld [vmem:[#allocation5 + $0xc4] sm:$0xf]
    %v3420 = vld [vmem:[#allocation5 + $0xc8] sm:$0xf]
    %v3421 = vld [vmem:[#allocation5 + $0xcc] sm:$0xf]
    %v3422 = vld [vmem:[#allocation5 + $0xd0] sm:$0xf]
    %v3423 = vld [vmem:[#allocation5 + $0xd4] sm:$0xf]
    %v3424 = vld [vmem:[#allocation5 + $0xd8] sm:$0xf]
    %v3425 = vld [vmem:[#allocation5 + $0xdc] sm:$0xf]
    %v3426 = vld [vmem:[#allocation5 + $0xe0] sm:$0xf]
    %v3427 = vld [vmem:[#allocation5 + $0xe4] sm:$0xf]
    %v3428 = vld [vmem:[#allocation5 + $0xe8] sm:$0xf]
    %v3429 = vld [vmem:[#allocation5 + $0xec] sm:$0xf]
    %v3430 = vld [vmem:[#allocation5 + $0xf0] sm:$0xf]
    %v3431 = vld [vmem:[#allocation5 + $0xf4] sm:$0xf]
    %v3432 = vld [vmem:[#allocation5 + $0xf8] sm:$0xf]
    %v3433 = vld [vmem:[#allocation5 + $0xfc] sm:$0xf]
    %v3434 = vpack.c.bf16 %v3396, %v3394
    %v3435 = vpack.c.bf16 %v3397, %v3395
    %v3436 = vpack.c.bf16 %v3400, %v3398
    %v3437 = vpack.c.bf16 %v3401, %v3399
    %v3438 = vlaneseq
    %v3439 = vshrl.u32 %v3438, 7
    %v3440 = vsub.s32 4, %v3439
    %v3441 = vrot.slane %v2036, %v3440
    %v3474 = vunpack.c.l.b16 %v3402
    %v3475 = vunpack.c.l.b16 %v3403
    %v3476 = vunpack.c.l.b16 %v3404
    %v3477 = vunpack.c.l.b16 %v3405
    %v3478 = vunpack.c.l.b16 %v3406
    %v3479 = vunpack.c.l.b16 %v3407
    %v3480 = vunpack.c.l.b16 %v3408
    %v3481 = vunpack.c.l.b16 %v3409
    %v3482 = vunpack.c.l.b16 %v3410
    %v3483 = vunpack.c.l.b16 %v3411
    %v3484 = vunpack.c.l.b16 %v3412
    %v3485 = vunpack.c.l.b16 %v3413
    %v3486 = vunpack.c.l.b16 %v3414
    %v3487 = vunpack.c.l.b16 %v3415
    %v3488 = vunpack.c.l.b16 %v3416
    %v3489 = vunpack.c.l.b16 %v3417
    %v3490 = vunpack.c.l.b16 %v3418
    %v3491 = vunpack.c.l.b16 %v3419
    %v3492 = vunpack.c.l.b16 %v3420
    %v3493 = vunpack.c.l.b16 %v3421
    %v3494 = vunpack.c.l.b16 %v3422
    %v3495 = vunpack.c.l.b16 %v3423
    %v3496 = vunpack.c.l.b16 %v3424
    %v3497 = vunpack.c.l.b16 %v3425
    %v3498 = vunpack.c.l.b16 %v3426
    %v3499 = vunpack.c.l.b16 %v3427
    %v3500 = vunpack.c.l.b16 %v3428
    %v3501 = vunpack.c.l.b16 %v3429
    %v3502 = vunpack.c.l.b16 %v3430
    %v3503 = vunpack.c.l.b16 %v3431
    %v3504 = vunpack.c.l.b16 %v3432
    %v3505 = vunpack.c.l.b16 %v3433
    %v3506 = vpack.c.b16 %v3475, %v3474
    %v3507 = vpack.c.b16 %v3477, %v3476
    %v3508 = vpack.c.b16 %v3479, %v3478
    %v3509 = vpack.c.b16 %v3481, %v3480
    %v3510 = vpack.c.b16 %v3483, %v3482
    %v3511 = vpack.c.b16 %v3485, %v3484
    %v3512 = vpack.c.b16 %v3487, %v3486
    %v3513 = vpack.c.b16 %v3489, %v3488
    %v3514 = vpack.c.b16 %v3491, %v3490
    %v3515 = vpack.c.b16 %v3493, %v3492
    %v3516 = vpack.c.b16 %v3495, %v3494
    %v3517 = vpack.c.b16 %v3497, %v3496
    %v3518 = vpack.c.b16 %v3499, %v3498
    %v3519 = vpack.c.b16 %v3501, %v3500
    %v3520 = vpack.c.b16 %v3503, %v3502
    %v3521 = vpack.c.b16 %v3505, %v3504
    %3538 = vmatprep.subr.bf16.mxu0 0
    %3539 = vmatpush1.bf16.msra.mxu0 %v3506
    %3540 = vmatprep.subr.bf16.mxu0 0
    %3541 = vmatpush1.bf16.msra.mxu0 %v3507
    %3542 = vmatprep.subr.bf16.mxu0 0
    %3543 = vmatpush1.bf16.msra.mxu0 %v3508
    %3544 = vmatprep.subr.bf16.mxu0 0
    %3545 = vmatpush1.bf16.msra.mxu0 %v3509
    %3546 = vmatprep.subr.bf16.mxu0 0
    %3547 = vmatpush1.bf16.msra.mxu0 %v3510
    %3548 = vmatprep.subr.bf16.mxu0 0
    %3549 = vmatpush1.bf16.msra.mxu0 %v3511
    %3550 = vmatprep.subr.bf16.mxu0 0
    %3551 = vmatpush1.bf16.msra.mxu0 %v3512
    %3552 = vmatprep.subr.bf16.mxu0 0
    %3553 = vmatpush1.bf16.msra.mxu0 %v3513
    %3554 = vmatprep.subr.bf16.mxu0 0
    %3555 = vmatpush1.bf16.msra.mxu0 %v3514
    %3556 = vmatprep.subr.bf16.mxu0 0
    %3557 = vmatpush1.bf16.msra.mxu0 %v3515
    %3558 = vmatprep.subr.bf16.mxu0 0
    %3559 = vmatpush1.bf16.msra.mxu0 %v3516
    %3560 = vmatprep.subr.bf16.mxu0 0
    %3561 = vmatpush1.bf16.msra.mxu0 %v3517
    %3562 = vmatprep.subr.bf16.mxu0 0
    %3563 = vmatpush1.bf16.msra.mxu0 %v3518
    %3564 = vmatprep.subr.bf16.mxu0 0
    %3565 = vmatpush1.bf16.msra.mxu0 %v3519
    %3566 = vmatprep.subr.bf16.mxu0 0
    %3567 = vmatpush1.bf16.msra.mxu0 %v3520
    %3568 = vmatprep.subr.bf16.mxu0 0
    %3569 = vmatpush1.bf16.msra.mxu0 %v3521
    %3570 = vmatprep.mubr.bf16.mxu0 %v3435
    %3571 = vmatmul.mubr.bf16.gmra.mrb[0].mxu0 %v3434
    %v3572 = vpop.f32.mrb[0].mxu0
    %v3573 = vadd.f32 %v3441, %v3572
    %v3574 = vpop.f32.mrb[0].mxu0
    %v3575 = vpop.f32.mrb[0].mxu0
    %v3576 = vadd.f32 %v3441, %v3575
    %v3577 = vpop.f32.mrb[0].mxu0
    %3578 = vmatprep.mubr.bf16.mxu0 %v3437
    %3579 = vmatmul.mubr.bf16.gmra.mrb[0].mxu0 %v3436
    %v3580 = vpop.f32.mrb[0].mxu0
    %v3581 = vadd.f32 %v3441, %v3580
    %v3582 = vpop.f32.mrb[0].mxu0
    %v3583 = vpop.f32.mrb[0].mxu0
    %v3584 = vadd.f32 %v3441, %v3583
    %v3585 = vpop.f32.mrb[0].mxu0
    %3586 = vdwg.mxu0
    %v3587 = vadd.f32 %v3183, %v3573
    %v3588 = vadd.f32 %v3184, %v3576
    %v3589 = vadd.f32 %v3185, %v3581
    %v3590 = vadd.f32 %v3186, %v3584
    %3591 = vadd.xlane.f32.xlu0 %v3587
    %v3592 = vpop.xlane.xlu0 %3591
    %3593 = vadd.xlane.f32.xlu0 %v3588
    %v3594 = vpop.xlane.xlu0 %3593
    %3595 = vadd.xlane.f32.xlu0 %v3589
    %v3596 = vpop.xlane.xlu0 %3595
    %3597 = vadd.xlane.f32.xlu0 %v3590
    %v3598 = vpop.xlane.xlu0 %3597
    %v3599 = vmul.f32 %v3592, %v1469
    %v3600 = vmul.f32 %v3594, %v1469
    %v3601 = vmul.f32 %v3596, %v1469
    %v3602 = vmul.f32 %v3598, %v1469
    %v3603 = vsub.f32 %v3587, %v3599
    %v3604 = vsub.f32 %v3588, %v3600
    %v3605 = vsub.f32 %v3589, %v3601
    %v3606 = vsub.f32 %v3590, %v3602
    %v3607 = vmul.f32 %v3603, %v3603
    %v3608 = vmul.f32 %v3604, %v3604
    %v3609 = vmul.f32 %v3605, %v3605
    %v3610 = vmul.f32 %v3606, %v3606
    %3611 = vadd.xlane.f32.xlu0 %v3607
    %v3612 = vpop.xlane.xlu0 %3611
    %3613 = vadd.xlane.f32.xlu0 %v3608
    %v3614 = vpop.xlane.xlu0 %3613
    %3615 = vadd.xlane.f32.xlu0 %v3609
    %v3616 = vpop.xlane.xlu0 %3615
    %3617 = vadd.xlane.f32.xlu0 %v3610
    %v3618 = vpop.xlane.xlu0 %3617
    %v3619 = vmul.f32 %v3612, %v1469
    %v3620 = vmul.f32 %v3614, %v1469
    %v3621 = vmul.f32 %v3616, %v1469
    %v3622 = vmul.f32 %v3618, %v1469
    %v3623 = vadd.f32 %v3619, 1e-12
    %v3624 = vadd.f32 %v3620, 1e-12
    %v3625 = vadd.f32 %v3621, 1e-12
    %v3626 = vadd.f32 %v3622, 1e-12
    %v3627 = vrsqrt.pop %v3623
    %v3628 = vrsqrt.pop %v3624
    %v3629 = vrsqrt.pop %v3625
    %v3630 = vrsqrt.pop %v3626
    %v3631 = vmul.f32 %v3603, %v3627
    %v3632 = vmul.f32 %v3604, %v3628
    %v3633 = vmul.f32 %v3605, %v3629
    %v3634 = vmul.f32 %v3606, %v3630
    %v3635 = vlaneseq
    %v3636 = vshrl.u32 %v3635, 7
    %v3637 = vsub.s32 5, %v3636
    %v3638 = vrot.slane %v2036, %v3637
    %v3639 = vmul.f32 %v3631, %v3638
    %v3640 = vmul.f32 %v3632, %v3638
    %v3641 = vmul.f32 %v3633, %v3638
    %v3642 = vmul.f32 %v3634, %v3638
    %v3643 = vlaneseq
    %v3644 = vshrl.u32 %v3643, 7
    %v3645 = vsub.s32 6, %v3644
    %v3646 = vrot.slane %v2036, %v3645
    %v3647 = vadd.f32 %v3639, %v3646
    %v3648 = vadd.f32 %v3640, %v3646
    %v3649 = vadd.f32 %v3641, %v3646
    %v3650 = vadd.f32 %v3642, %v3646
    %v3651 = vadd.f32 %v3647, %v3648
    %v3652 = vrot.slane %v3651, 4
    %v3653 = vadd.f32 %v3651, %v3652
    %v3654 = vrot.slane %v3653, 2
    %v3655 = vadd.f32 %v3653, %v3654
    %v3656 = vrot.slane %v3655, 1
    %v3657 = vadd.f32 %v3655, %v3656
    %v3658 = vadd.f32 %v3649, %v3650
    %v3659 = vrot.slane %v3658, 4
    %v3660 = vadd.f32 %v3658, %v3659
    %v3661 = vrot.slane %v3660, 2
    %v3662 = vadd.f32 %v3660, %v3661
    %v3663 = vrot.slane %v3662, 1
    %v3664 = vadd.f32 %v3662, %v3663
    %v3665 = vrcp.pop 16.0
    %v3666 = vmul.f32 %v3657, %v3665
    %v3667 = vmul.f32 %v3664, %v3665
    %v3668 = vld [vmem:[#allocation5 + $0x100] sm:$0xf]
    %v3669 = vld [vmem:[#allocation5 + $0x104] sm:$0xf]
    %v3670 = vld [vmem:[#allocation5 + $0x108] sm:$0xf]
    %v3671 = vld [vmem:[#allocation5 + $0x10c] sm:$0xf]
    %v3672 = vld [vmem:[#allocation5 + $0x110] sm:$0xf]
    %v3673 = vld [vmem:[#allocation5 + $0x114] sm:$0xf]
    %v3674 = vld [vmem:[#allocation5 + $0x118] sm:$0xf]
    %v3675 = vld [vmem:[#allocation5 + $0x11c] sm:$0xf]
    %v3676 = vld [vmem:[#allocation5 + $0x120] sm:$0xf]
    %v3677 = vld [vmem:[#allocation5 + $0x124] sm:$0xf]
    %v3678 = vld [vmem:[#allocation5 + $0x128] sm:$0xf]
    %v3679 = vld [vmem:[#allocation5 + $0x12c] sm:$0xf]
    %v3680 = vld [vmem:[#allocation5 + $0x130] sm:$0xf]
    %v3681 = vld [vmem:[#allocation5 + $0x134] sm:$0xf]
    %v3682 = vld [vmem:[#allocation5 + $0x138] sm:$0xf]
    %v3683 = vld [vmem:[#allocation5 + $0x13c] sm:$0xf]
    %v3684 = vpack.c.bf16 %v3666, %v3666
    %v3685 = vpack.c.bf16 %v3667, %v3667
    %v3686 = vlaneseq
    %v3687 = vshrl.u32 %v3686, 7
    %v3688 = vsub.s32 7, %v3687
    %v3689 = vrot.slane %v367, %v3688
    %v3692 = vunpack.c.l.b16 %v3684
    %v3693 = vunpack.c.l.b16 %v3685
    %vm3694 = vcmask 1041409
    %v3695 = vsel %vm3694, %v3693, %v3692
    %v3696 = vpack.c.b16 %v3695, %v3695
    %v3714 = vunpack.c.l.b16 %v3668
    %v3715 = vunpack.c.l.b16 %v3669
    %v3716 = vunpack.c.l.b16 %v3670
    %v3717 = vunpack.c.l.b16 %v3671
    %v3718 = vunpack.c.l.b16 %v3672
    %v3719 = vunpack.c.l.b16 %v3673
    %v3720 = vunpack.c.l.b16 %v3674
    %v3721 = vunpack.c.l.b16 %v3675
    %v3722 = vunpack.c.l.b16 %v3676
    %v3723 = vunpack.c.l.b16 %v3677
    %v3724 = vunpack.c.l.b16 %v3678
    %v3725 = vunpack.c.l.b16 %v3679
    %v3726 = vunpack.c.l.b16 %v3680
    %v3727 = vunpack.c.l.b16 %v3681
    %v3728 = vunpack.c.l.b16 %v3682
    %v3729 = vunpack.c.l.b16 %v3683
    %v3730 = vpack.c.b16 %v3715, %v3714
    %v3731 = vpack.c.b16 %v3717, %v3716
    %v3732 = vpack.c.b16 %v3719, %v3718
    %v3733 = vpack.c.b16 %v3721, %v3720
    %v3734 = vpack.c.b16 %v3723, %v3722
    %v3735 = vpack.c.b16 %v3725, %v3724
    %v3736 = vpack.c.b16 %v3727, %v3726
    %v3737 = vpack.c.b16 %v3729, %v3728
    %3746 = vmatprep.subr.bf16.mxu0 0
    %3747 = vmatpush1.bf16.msra.mxu0 %v3730
    %3748 = vmatprep.subr.bf16.mxu0 0
    %3749 = vmatpush1.bf16.msra.mxu0 %v3731
    %3750 = vmatprep.subr.bf16.mxu0 0
    %3751 = vmatpush1.bf16.msra.mxu0 %v3732
    %3752 = vmatprep.subr.bf16.mxu0 0
    %3753 = vmatpush1.bf16.msra.mxu0 %v3733
    %3754 = vmatprep.subr.bf16.mxu0 0
    %3755 = vmatpush1.bf16.msra.mxu0 %v3734
    %3756 = vmatprep.subr.bf16.mxu0 0
    %3757 = vmatpush1.bf16.msra.mxu0 %v3735
    %3758 = vmatprep.subr.bf16.mxu0 0
    %3759 = vmatpush1.bf16.msra.mxu0 %v3736
    %3760 = vmatprep.subr.bf16.mxu0 0
    %3761 = vmatpush1.bf16.msra.mxu0 %v3737
    %3762 = vmatprep.subr.bf16.mxu0 0
    %3763 = vmatpush1.bf16.msra.mxu0 0
    %3764 = vmatprep.subr.bf16.mxu0 0
    %3765 = vmatpush1.bf16.msra.mxu0 0
    %3766 = vmatprep.subr.bf16.mxu0 0
    %3767 = vmatpush1.bf16.msra.mxu0 0
    %3768 = vmatprep.subr.bf16.mxu0 0
    %3769 = vmatpush1.bf16.msra.mxu0 0
    %3770 = vmatprep.subr.bf16.mxu0 0
    %3771 = vmatpush1.bf16.msra.mxu0 0
    %3772 = vmatprep.subr.bf16.mxu0 0
    %3773 = vmatpush1.bf16.msra.mxu0 0
    %3774 = vmatprep.subr.bf16.mxu0 0
    %3775 = vmatpush1.bf16.msra.mxu0 0
    %3776 = vmatprep.subr.bf16.mxu0 0
    %3777 = vmatpush1.bf16.msra.mxu0 0
    %3778 = vmatprep.mubr.bf16.mxu0 0
    %3779 = vmatmul.mubr.bf16.gmra.mrb[0].mxu0 %v3696
    %v3780 = vpop.f32.mrb[0].mxu0
    %v3781 = vadd.f32 %v3689, %v3780
    %v3782 = vpop.f32.mrb[0].mxu0
    %v3783 = vpop.f32.mrb[0].mxu0
    %v3784 = vpop.f32.mrb[0].mxu0
    %3785 = vdwg.mxu0
    %3786 = vst [vmem:[#allocation7] sm:$0x3] %v3781
    // Predicated region
    $region30: #{xlnet_model_forward.1} parent=1 // pred_check
      _
    $region31: #{xlnet_model_forward.1} parent=1 // pred_check_branch
      %3788 = sbr.rel (0) target = $region33
    $region32: #{xlnet_model_forward.1} parent=1 // pred_region
      %s3790 = ssub.s32 32, 32
      %3791 = vsyncadd [#allocation4], %s3790
      %s3793 = sshll.u32 [#allocation7], 4
      %s3794 = int_to_ptr.vmem [resolvable:$true] %s3793
      %3796 = dma.vmem_to_hbm [thread:$0]  %s3794, 32, %s5, [#allocation4]
    $region33: #{xlnet_model_forward.1} parent=1 // pred_fallthru
      _
    // Predicated region
    $region34: #{xlnet_model_forward.1} parent=1 // pred_check
      _
    $region35: #{xlnet_model_forward.1} parent=1 // pred_check_branch
      %3798 = sbr.rel (0) target = $region37
    $region36: #{xlnet_model_forward.1} parent=1 // pred_region
      %3799 = dma.done [#allocation4], 32
    $region37: #{xlnet_model_forward.1} parent=1 // pred_fallthru
      _
    %3800 = vsyncpa [#allocation3], 1
    %3801 = vsyncpa [#allocation6], 1
    %3802 = vsyncpa [#allocation4], 1

</llo_original>
